<compile_context>
chip_gen: v7x
topology: tpu7x:2x2x1
jax: 0.10.0
libtpu: 0.0.40
codegen_flags: <defaults>
</compile_context>

<pallas_src>
import functools
import math

import jax
import jax.numpy as jnp
from jax import lax
from jax.experimental import pallas as pl
from jax.experimental.pallas import tpu as pltpu

BN_EPS = 1e-5
EXPANSION = 4


# --------------------------------------------------------------------------------------
# Fused kernel: conv1+bn1+relu -> conv2(3x3)+bn2+relu -> conv3+bn3 -> +residual -> relu
# --------------------------------------------------------------------------------------
def _bottleneck_kernel(H, W, x_ref, w1_ref, b1_ref, w2_ref, b2_ref, w3_ref, b3_ref, o_ref):
    # x_ref : (1, H*W, Cin)   input image, NHWC flattened (also the residual)
    # w1_ref: (Cin, P)        conv1 1x1, BN1 folded             b1_ref: (1, P)    f32
    # w2_ref: (3, 3P, P)      conv2 taps, dy-major, dx taps concatenated along K, BN2 folded
    # b2_ref: (1, P) f32
    # w3_ref: (P, Cout)       conv3 1x1, BN3 folded             b3_ref: (1, Cout) f32
    # o_ref : (1, H*W, Cout)
    HW = H * W
    M = (H + 2) * W
    P = w1_ref.shape[1]
    dtype = x_ref.dtype

    # ---- conv1 (1x1) + bn1 + relu ----
    h1 = jnp.dot(x_ref[0], w1_ref[...], preferred_element_type=jnp.float32)
    h1 = jnp.maximum(h1 + b1_ref[...], 0.0).astype(dtype)

    # ---- zero-pad one image row top & bottom (flattened row-major spatial layout) ----
    zrow = jnp.zeros((W, P), dtype)
    h1p = jnp.concatenate([zrow, h1, zrow], axis=0)                         # (M, P)

    # ---- dx = -1 / +1 taps: sublane rotate (XLU) + edge mask, then concat along channels ----
    col = lax.broadcasted_iota(jnp.int32, (M, 1), 0) % W
    left = jnp.where(col == 0, 0.0, pltpu.roll(h1p, shift=1, axis=0))        # h1p[.., x-1]
    right = jnp.where(col == W - 1, 0.0, pltpu.roll(h1p, shift=M - 1, axis=0))  # h1p[.., x+1]
    taps = jnp.concatenate([left, h1p, right], axis=-1)                     # (M, 3P)

    # ---- conv2 (3x3, pad=1, stride=1) + bn2 + relu : 3 matmuls with K = 3P ----
    acc = b2_ref[...]                                                       # broadcasts to (HW, P)
    for ky in range(3):
        acc = acc + jnp.dot(taps[ky * W:ky * W + HW, :], w2_ref[ky],
                            preferred_element_type=jnp.float32)
    h2 = jnp.maximum(acc, 0.0).astype(w3_ref.dtype)

    # ---- conv3 (1x1) + bn3 + residual + relu ----
    y = jnp.dot(h2, w3_ref[...], preferred_element_type=jnp.float32)
    y = y + b3_ref[...] + x_ref[0].astype(jnp.float32)
    o_ref[0] = jnp.maximum(y, 0.0).astype(o_ref.dtype)


# --------------------------------------------------------------------------------------
# Wrapper
# --------------------------------------------------------------------------------------
def _fold_bn(conv_w_oi, gamma, beta, mean, var):
    """Fold eval-mode BN into a (O, I) conv matrix -> ((I, O) weight, (O,) bias)."""
    scale = gamma / jnp.sqrt(var + BN_EPS)
    shift = beta - mean * scale
    return (conv_w_oi * scale[:, None]).T, shift


@jax.jit
def bottleneck_forward(x_nchw, params):
    N, Cin, H, W = x_nchw.shape
    w1 = params["conv1_w"]          # (P, Cin, 1, 1)
    w2 = params["conv2_w"]          # (P, P, 3, 3)
    w3 = params["conv3_w"]          # (Cout, P, 1, 1)
    P = w1.shape[0]
    Cout = w3.shape[0]
    assert Cout == P * EXPANSION and Cout == Cin, \
        "identity residual requires inplanes == planes * expansion (downsample=None)"

    dtype = x_nchw.dtype
    itemsize = jnp.dtype(dtype).itemsize
    sub = 32 // itemsize            # sublane packing: f32 -> 8, bf16 -> 16, int8 -> 32
    assert W % sub == 0, f"W must be a multiple of {sub} for dtype {dtype}"

    HW = H * W
    x = jnp.transpose(x_nchw, (0, 2, 3, 1)).reshape(N, HW, Cin)   # NHWC, flattened spatial

    # ---- fold eval-mode BatchNorm into conv weights / biases (cheap wrapper XLA) ----
    w1f, b1 = _fold_bn(w1.reshape(P, Cin), params["bn1_g"], params["bn1_b"],
                       params["bn1_m"], params["bn1_v"])
    w3f, b3 = _fold_bn(w3.reshape(Cout, P), params["bn3_g"], params["bn3_b"],
                       params["bn3_m"], params["bn3_v"])
    scale2 = params["bn2_g"] / jnp.sqrt(params["bn2_v"] + BN_EPS)
    b2 = params["bn2_b"] - params["bn2_m"] * scale2
    # (3, 3P, P): w2cat[ky][kx*P + i, o] = w2[o, i, ky, kx] * scale2[o]
    w2cat = jnp.transpose(w2 * scale2[:, None, None, None], (2, 3, 1, 0)).reshape(3, 3 * P, P)

    w1f = w1f.astype(dtype)
    w2cat = w2cat.astype(dtype)
    w3f = w3f.astype(dtype)
    b1 = b1.reshape(1, P).astype(jnp.float32)
    b2 = b2.reshape(1, P).astype(jnp.float32)
    b3 = b3.reshape(1, Cout).astype(jnp.float32)

    flops = 2 * N * HW * (Cin * P + 9 * P * P + P * Cout)
    bytes_accessed = int((x.size + N * HW * Cout + w1f.size + w2cat.size + w3f.size) * itemsize
                         + (b1.size + b2.size + b3.size) * 4)

    # Per-step VMEM: double-buffered image in/out + resident weights + f32 intermediates + slack.
    vmem_need = (2 * (HW * Cin + HW * Cout) * itemsize
                 + (w1f.size + w2cat.size + w3f.size) * itemsize
                 + ((H + 2) * W * 4 * P + HW * (P + Cout)) * 4
                 + (4 << 20))
    cp_kwargs = dict(dimension_semantics=("parallel",))
    if vmem_need > (16 << 20):
        cp_kwargs["vmem_limit_bytes"] = int(min(vmem_need, 100 << 20))

    kernel = functools.partial(_bottleneck_kernel, H, W)
    out = pl.pallas_call(
        kernel,
        out_shape=jax.ShapeDtypeStruct((N, HW, Cout), dtype),
        grid_spec=pltpu.PrefetchScalarGridSpec(
            num_scalar_prefetch=0,
            grid=(N,),
            in_specs=[
                pl.BlockSpec((1, HW, Cin), lambda n: (n, 0, 0)),
                pl.BlockSpec((Cin, P), lambda n: (0, 0)),
                pl.BlockSpec((1, P), lambda n: (0, 0)),
                pl.BlockSpec((3, 3 * P, P), lambda n: (0, 0, 0)),
                pl.BlockSpec((1, P), lambda n: (0, 0)),
                pl.BlockSpec((P, Cout), lambda n: (0, 0)),
                pl.BlockSpec((1, Cout), lambda n: (0, 0)),
            ],
            out_specs=pl.BlockSpec((1, HW, Cout), lambda n: (n, 0, 0)),
        ),
        compiler_params=pltpu.CompilerParams(**cp_kwargs),
        cost_estimate=pl.CostEstimate(flops=flops, transcendentals=0,
                                      bytes_accessed=bytes_accessed),
    )(x, w1f, b1, w2cat, b2, w3f, b3)

    return jnp.transpose(out.reshape(N, H, W, Cout), (0, 3, 1, 2))   # back to NCHW


# --------------------------------------------------------------------------------------
# Pure-JAX reference (exact eval-mode Bottleneck math, unfolded BN)
# --------------------------------------------------------------------------------------
def _reference(x_nchw, params):
    def bn(h, g, b, m, v):
        return (h - m) * (g / jnp.sqrt(v + BN_EPS)) + b

    x = jnp.transpose(x_nchw, (0, 2, 3, 1))
    dn = ("NHWC", "HWIO", "NHWC")
    w1 = jnp.transpose(params["conv1_w"], (2, 3, 1, 0))
    w2 = jnp.transpose(params["conv2_w"], (2, 3, 1, 0))
    w3 = jnp.transpose(params["conv3_w"], (2, 3, 1, 0))

    h = lax.conv_general_dilated(x, w1, (1, 1), "VALID", dimension_numbers=dn)
    h = jax.nn.relu(bn(h, params["bn1_g"], params["bn1_b"], params["bn1_m"], params["bn1_v"]))
    h = lax.conv_general_dilated(h, w2, (1, 1), ((1, 1), (1, 1)), dimension_numbers=dn)
    h = jax.nn.relu(bn(h, params["bn2_g"], params["bn2_b"], params["bn2_m"], params["bn2_v"]))
    h = lax.conv_general_dilated(h, w3, (1, 1), "VALID", dimension_numbers=dn)
    h = bn(h, params["bn3_g"], params["bn3_b"], params["bn3_m"], params["bn3_v"])
    out = jax.nn.relu(h + x)
    return jnp.transpose(out, (0, 3, 1, 2))


if __name__ == "__main__":
    key = jax.random.PRNGKey(0)
    N, planes, H, W = 2, 32, 16, 16
    Cin = planes * EXPANSION          # 128: identity residual (inplanes == planes * expansion)
    Cout = Cin

    ks = jax.random.split(key, 16)

    def u(k, shape, fan_in):
        lim = 1.0 / math.sqrt(fan_in)
        return jax.random.uniform(k, shape, jnp.float32, -lim, lim)

    params = {
        "conv1_w": u(ks[0], (planes, Cin, 1, 1), Cin),
        "conv2_w": u(ks[1], (planes, planes, 3, 3), planes * 9),
        "conv3_w": u(ks[2], (Cout, planes, 1, 1), planes),
        "bn1_g": 1.0 + 0.1 * jax.random.normal(ks[3], (planes,)),
        "bn1_b": 0.1 * jax.random.normal(ks[4], (planes,)),
        "bn1_m": 0.1 * jax.random.normal(ks[5], (planes,)),
        "bn1_v": jax.nn.softplus(jax.random.normal(ks[6], (planes,))) + 0.5,
        "bn2_g": 1.0 + 0.1 * jax.random.normal(ks[7], (planes,)),
        "bn2_b": 0.1 * jax.random.normal(ks[8], (planes,)),
        "bn2_m": 0.1 * jax.random.normal(ks[9], (planes,)),
        "bn2_v": jax.nn.softplus(jax.random.normal(ks[10], (planes,))) + 0.5,
        "bn3_g": 1.0 + 0.1 * jax.random.normal(ks[11], (Cout,)),
        "bn3_b": 0.1 * jax.random.normal(ks[12], (Cout,)),
        "bn3_m": 0.1 * jax.random.normal(ks[13], (Cout,)),
        "bn3_v": jax.nn.softplus(jax.random.normal(ks[14], (Cout,))) + 0.5,
    }
    x = jax.random.normal(ks[15], (N, Cin, H, W), jnp.float32)

    y = bottleneck_forward(x, params)
    jax.block_until_ready(y)

    y_ref = _reference(x, params)
    assert y.shape == y_ref.shape
    err = jnp.max(jnp.abs(y - y_ref))
    assert jnp.allclose(y, y_ref, atol=1e-4, rtol=1e-4), f"mismatch vs reference: max abs err {err}"

    print("KERNEL_OK")
</pallas_src>

<mosaic_0001>
module attributes {stable_mosaic.version = 11 : i64} {
  func.func @_bottleneck_kernel(%arg0: i32, %arg1: memref<1x256x128xf32, #tpu.memory_space<vmem>>, %arg2: memref<128x32xf32, #tpu.memory_space<vmem>>, %arg3: memref<1x32xf32, #tpu.memory_space<vmem>>, %arg4: memref<3x96x32xf32, #tpu.memory_space<vmem>>, %arg5: memref<1x32xf32, #tpu.memory_space<vmem>>, %arg6: memref<32x128xf32, #tpu.memory_space<vmem>>, %arg7: memref<1x128xf32, #tpu.memory_space<vmem>>, %arg8: memref<1x256x128xf32, #tpu.memory_space<vmem>>) attributes {dimension_semantics = [#tpu.dimension_semantics<parallel>], iteration_bounds = array<i64: 2>, scalar_prefetch = 0 : i64, scratch_operands = 0 : i64, tpu.core_type = #tpu.core_type<tc>, window_params = [{transform_indices = @transform_0, window_bounds = array<i64: 1, 256, 128>}, {pipeline_mode = #tpu.pipeline_mode<synchronous>, transform_indices = @transform_1, window_bounds = array<i64: 128, 32>}, {pipeline_mode = #tpu.pipeline_mode<synchronous>, transform_indices = @transform_2, window_bounds = array<i64: 1, 32>}, {pipeline_mode = #tpu.pipeline_mode<synchronous>, transform_indices = @transform_3, window_bounds = array<i64: 3, 96, 32>}, {pipeline_mode = #tpu.pipeline_mode<synchronous>, transform_indices = @transform_4, window_bounds = array<i64: 1, 32>}, {pipeline_mode = #tpu.pipeline_mode<synchronous>, transform_indices = @transform_5, window_bounds = array<i64: 32, 128>}, {pipeline_mode = #tpu.pipeline_mode<synchronous>, transform_indices = @transform_6, window_bounds = array<i64: 1, 128>}, {transform_indices = @transform_7, window_bounds = array<i64: 1, 256, 128>}]} {
    %c0 = arith.constant 0 : index
    %c0_0 = arith.constant 0 : index
    %c0_1 = arith.constant 0 : index
    %0 = vector.load %arg1[%c0, %c0_0, %c0_1] : memref<1x256x128xf32, #tpu.memory_space<vmem>>, vector<1x256x128xf32>
    %1 = vector.shape_cast %0 : vector<1x256x128xf32> to vector<256x128xf32>
    %c0_2 = arith.constant 0 : index
    %c0_3 = arith.constant 0 : index
    %2 = vector.load %arg2[%c0_2, %c0_3] : memref<128x32xf32, #tpu.memory_space<vmem>>, vector<128x32xf32>
    %cst = arith.constant dense<0.000000e+00> : vector<256x32xf32>
    %3 = tpu.matmul %1, %2, %cst {dimension_numbers = #tpu.dot_dimension_numbers<[1], [0], [0], [1], [0, 0, 1, 1], [], []>} : vector<256x128xf32>, vector<128x32xf32>, vector<256x32xf32> -> vector<256x32xf32>
    %c0_4 = arith.constant 0 : index
    %c0_5 = arith.constant 0 : index
    %4 = vector.load %arg3[%c0_4, %c0_5] : memref<1x32xf32, #tpu.memory_space<vmem>>, vector<1x32xf32>
    %5 = vector.broadcast %4 : vector<1x32xf32> to vector<256x32xf32>
    %6 = arith.addf %3, %5 : vector<256x32xf32>
    %cst_6 = arith.constant 0.000000e+00 : f32
    %7 = vector.broadcast %cst_6 : f32 to vector<256x32xf32>
    %8 = arith.maximumf %6, %7 : vector<256x32xf32>
    %cst_7 = arith.constant 0.000000e+00 : f32
    %9 = vector.broadcast %cst_7 : f32 to vector<16x32xf32>
    %10 = tpu.concatenate %9, %8, %9 in 0 : vector<16x32xf32>, vector<256x32xf32>, vector<16x32xf32> -> vector<288x32xf32>
    %11 = tpu.iota {dimensions = array<i32: 0>} : vector<288x1xi32>
    %c16_i32 = arith.constant 16 : i32
    %c0_i32 = arith.constant 0 : i32
    %12 = arith.cmpi eq, %c16_i32, %c0_i32 : i32
    %c1_i32 = arith.constant 1 : i32
    %13 = arith.select %12, %c1_i32, %c16_i32 : i32
    %14 = vector.broadcast %13 : i32 to vector<288x1xi32>
    %15 = arith.remsi %11, %14 : vector<288x1xi32>
    %c0_i32_8 = arith.constant 0 : i32
    %16 = vector.broadcast %c0_i32_8 : i32 to vector<288x1xi32>
    %17 = arith.cmpi ne, %15, %16 : vector<288x1xi32>
    %c0_i32_9 = arith.constant 0 : i32
    %18 = vector.broadcast %c0_i32_9 : i32 to vector<288x1xi32>
    %19 = arith.cmpi slt, %15, %18 : vector<288x1xi32>
    %c0_i32_10 = arith.constant 0 : i32
    %20 = arith.cmpi slt, %13, %c0_i32_10 : i32
    %21 = vector.broadcast %20 : i1 to vector<288x1xi1>
    %22 = vector.broadcast %21 : vector<288x1xi1> to vector<288x1xi1>
    %23 = arith.xori %19, %22 : vector<288x1xi1>
    %24 = arith.andi %23, %17 : vector<288x1xi1>
    %25 = vector.broadcast %13 : i32 to vector<288x1xi32>
    %26 = arith.addi %15, %25 : vector<288x1xi32>
    %27 = arith.select %24, %26, %15 : vector<288x1xi1>, vector<288x1xi32>
    %c0_i32_11 = arith.constant 0 : i32
    %28 = vector.broadcast %c0_i32_11 : i32 to vector<288x1xi32>
    %29 = arith.cmpi eq, %27, %28 : vector<288x1xi32>
    %c1_i32_12 = arith.constant 1 : i32
    %30 = tpu.dynamic_rotate %10 by %c1_i32_12 dim 0 : vector<288x32xf32>, i32 -> vector<288x32xf32>
    %cst_13 = arith.constant 0.000000e+00 : f32
    %31 = vector.shape_cast %29 : vector<288x1xi1> to vector<288x1xi1>
    %32 = vector.broadcast %31 : vector<288x1xi1> to vector<288x32xi1>
    %33 = vector.broadcast %cst_13 : f32 to vector<288x32xf32>
    %34 = arith.select %32, %33, %30 : vector<288x32xi1>, vector<288x32xf32>
    %c15_i32 = arith.constant 15 : i32
    %35 = vector.broadcast %c15_i32 : i32 to vector<288x1xi32>
    %36 = arith.cmpi eq, %27, %35 : vector<288x1xi32>
    %c287_i32 = arith.constant 287 : i32
    %37 = tpu.dynamic_rotate %10 by %c287_i32 dim 0 : vector<288x32xf32>, i32 -> vector<288x32xf32>
    %cst_14 = arith.constant 0.000000e+00 : f32
    %38 = vector.shape_cast %36 : vector<288x1xi1> to vector<288x1xi1>
    %39 = vector.broadcast %38 : vector<288x1xi1> to vector<288x32xi1>
    %40 = vector.broadcast %cst_14 : f32 to vector<288x32xf32>
    %41 = arith.select %39, %40, %37 : vector<288x32xi1>, vector<288x32xf32>
    %42 = tpu.concatenate %34, %10, %41 in 1 : vector<288x32xf32>, vector<288x32xf32>, vector<288x32xf32> -> vector<288x96xf32>
    %c0_15 = arith.constant 0 : index
    %c0_16 = arith.constant 0 : index
    %43 = vector.load %arg5[%c0_15, %c0_16] : memref<1x32xf32, #tpu.memory_space<vmem>>, vector<1x32xf32>
    %44 = vector.extract_strided_slice %42 {offsets = [0, 0], sizes = [256, 96], strides = [1, 1]} : vector<288x96xf32> to vector<256x96xf32>
    %c0_17 = arith.constant 0 : index
    %c0_18 = arith.constant 0 : index
    %c0_19 = arith.constant 0 : index
    %45 = vector.load %arg4[%c0_17, %c0_18, %c0_19] : memref<3x96x32xf32, #tpu.memory_space<vmem>>, vector<1x96x32xf32>
    %46 = vector.shape_cast %45 : vector<1x96x32xf32> to vector<96x32xf32>
    %cst_20 = arith.constant dense<0.000000e+00> : vector<256x32xf32>
    %47 = tpu.matmul %44, %46, %cst_20 {dimension_numbers = #tpu.dot_dimension_numbers<[1], [0], [0], [1], [0, 0, 1, 1], [], []>} : vector<256x96xf32>, vector<96x32xf32>, vector<256x32xf32> -> vector<256x32xf32>
    %48 = vector.broadcast %43 : vector<1x32xf32> to vector<256x32xf32>
    %49 = arith.addf %48, %47 : vector<256x32xf32>
    %50 = vector.extract_strided_slice %42 {offsets = [16, 0], sizes = [256, 96], strides = [1, 1]} : vector<288x96xf32> to vector<256x96xf32>
    %c1 = arith.constant 1 : index
    %c0_21 = arith.constant 0 : index
    %c0_22 = arith.constant 0 : index
    %51 = vector.load %arg4[%c1, %c0_21, %c0_22] : memref<3x96x32xf32, #tpu.memory_space<vmem>>, vector<1x96x32xf32>
    %52 = vector.shape_cast %51 : vector<1x96x32xf32> to vector<96x32xf32>
    %cst_23 = arith.constant dense<0.000000e+00> : vector<256x32xf32>
    %53 = tpu.matmul %50, %52, %cst_23 {dimension_numbers = #tpu.dot_dimension_numbers<[1], [0], [0], [1], [0, 0, 1, 1], [], []>} : vector<256x96xf32>, vector<96x32xf32>, vector<256x32xf32> -> vector<256x32xf32>
    %54 = arith.addf %49, %53 : vector<256x32xf32>
    %55 = vector.extract_strided_slice %42 {offsets = [32, 0], sizes = [256, 96], strides = [1, 1]} : vector<288x96xf32> to vector<256x96xf32>
    %c2 = arith.constant 2 : index
    %c0_24 = arith.constant 0 : index
    %c0_25 = arith.constant 0 : index
    %56 = vector.load %arg4[%c2, %c0_24, %c0_25] : memref<3x96x32xf32, #tpu.memory_space<vmem>>, vector<1x96x32xf32>
    %57 = vector.shape_cast %56 : vector<1x96x32xf32> to vector<96x32xf32>
    %cst_26 = arith.constant dense<0.000000e+00> : vector<256x32xf32>
    %58 = tpu.matmul %55, %57, %cst_26 {dimension_numbers = #tpu.dot_dimension_numbers<[1], [0], [0], [1], [0, 0, 1, 1], [], []>} : vector<256x96xf32>, vector<96x32xf32>, vector<256x32xf32> -> vector<256x32xf32>
    %59 = arith.addf %54, %58 : vector<256x32xf32>
    %cst_27 = arith.constant 0.000000e+00 : f32
    %60 = vector.broadcast %cst_27 : f32 to vector<256x32xf32>
    %61 = arith.maximumf %59, %60 : vector<256x32xf32>
    %c0_28 = arith.constant 0 : index
    %c0_29 = arith.constant 0 : index
    %62 = vector.load %arg6[%c0_28, %c0_29] : memref<32x128xf32, #tpu.memory_space<vmem>>, vector<32x128xf32>
    %cst_30 = arith.constant dense<0.000000e+00> : vector<256x128xf32>
    %63 = tpu.matmul %61, %62, %cst_30 {dimension_numbers = #tpu.dot_dimension_numbers<[1], [0], [0], [1], [0, 0, 1, 1], [], []>} : vector<256x32xf32>, vector<32x128xf32>, vector<256x128xf32> -> vector<256x128xf32>
    %c0_31 = arith.constant 0 : index
    %c0_32 = arith.constant 0 : index
    %64 = vector.load %arg7[%c0_31, %c0_32] : memref<1x128xf32, #tpu.memory_space<vmem>>, vector<1x128xf32>
    %65 = vector.broadcast %64 : vector<1x128xf32> to vector<256x128xf32>
    %66 = arith.addf %63, %65 : vector<256x128xf32>
    %c0_33 = arith.constant 0 : index
    %c0_34 = arith.constant 0 : index
    %c0_35 = arith.constant 0 : index
    %67 = vector.load %arg1[%c0_33, %c0_34, %c0_35] : memref<1x256x128xf32, #tpu.memory_space<vmem>>, vector<1x256x128xf32>
    %68 = vector.shape_cast %67 : vector<1x256x128xf32> to vector<256x128xf32>
    %69 = arith.addf %66, %68 : vector<256x128xf32>
    %cst_36 = arith.constant 0.000000e+00 : f32
    %70 = vector.broadcast %cst_36 : f32 to vector<256x128xf32>
    %71 = arith.maximumf %69, %70 : vector<256x128xf32>
    %c0_37 = arith.constant 0 : index
    %c0_38 = arith.constant 0 : index
    %c0_39 = arith.constant 0 : index
    %72 = vector.load %arg8[%c0_37, %c0_38, %c0_39] : memref<1x256x128xf32, #tpu.memory_space<vmem>>, vector<1x256x128xf32>
    %73 = vector.shape_cast %72 : vector<1x256x128xf32> to vector<256x128xf32>
    %74 = vector.shape_cast %71 : vector<256x128xf32> to vector<1x256x128xf32>
    tpu.vector_store %arg8[%c0_37, %c0_38, %c0_39], %74 {strides = array<i32>} : memref<1x256x128xf32, #tpu.memory_space<vmem>>, vector<1x256x128xf32>,
    return
  }
  func.func @transform_0(%arg0: i32) -> (i32, i32, i32) {
    %c0_i32 = arith.constant 0 : i32
    %c0_i32_0 = arith.constant 0 : i32
    %c0_i32_1 = arith.constant 0 : i32
    return %arg0, %c0_i32, %c0_i32_0 : i32, i32, i32
  }
  func.func @transform_1(%arg0: i32) -> (i32, i32) {
    %c0_i32 = arith.constant 0 : i32
    %c0_i32_0 = arith.constant 0 : i32
    %c0_i32_1 = arith.constant 0 : i32
    return %c0_i32, %c0_i32_0 : i32, i32
  }
  func.func @transform_2(%arg0: i32) -> (i32, i32) {
    %c0_i32 = arith.constant 0 : i32
    %c0_i32_0 = arith.constant 0 : i32
    %c0_i32_1 = arith.constant 0 : i32
    return %c0_i32, %c0_i32_0 : i32, i32
  }
  func.func @transform_3(%arg0: i32) -> (i32, i32, i32) {
    %c0_i32 = arith.constant 0 : i32
    %c0_i32_0 = arith.constant 0 : i32
    %c0_i32_1 = arith.constant 0 : i32
    %c0_i32_2 = arith.constant 0 : i32
    return %c0_i32, %c0_i32_0, %c0_i32_1 : i32, i32, i32
  }
  func.func @transform_4(%arg0: i32) -> (i32, i32) {
    %c0_i32 = arith.constant 0 : i32
    %c0_i32_0 = arith.constant 0 : i32
    %c0_i32_1 = arith.constant 0 : i32
    return %c0_i32, %c0_i32_0 : i32, i32
  }
  func.func @transform_5(%arg0: i32) -> (i32, i32) {
    %c0_i32 = arith.constant 0 : i32
    %c0_i32_0 = arith.constant 0 : i32
    %c0_i32_1 = arith.constant 0 : i32
    return %c0_i32, %c0_i32_0 : i32, i32
  }
  func.func @transform_6(%arg0: i32) -> (i32, i32) {
    %c0_i32 = arith.constant 0 : i32
    %c0_i32_0 = arith.constant 0 : i32
    %c0_i32_1 = arith.constant 0 : i32
    return %c0_i32, %c0_i32_0 : i32, i32
  }
  func.func @transform_7(%arg0: i32) -> (i32, i32, i32) {
    %c0_i32 = arith.constant 0 : i32
    %c0_i32_0 = arith.constant 0 : i32
    %c0_i32_1 = arith.constant 0 : i32
    return %arg0, %c0_i32, %c0_i32_0 : i32, i32, i32
  }
}

</mosaic_0001>

<llo_original>
// kernel: bottleneck_forward.1
$region0: #{bottleneck_forward.1}
  #allocation0 [shape = 'u32[]', space=smem, size = 0x4, offset = 0x4, fixed_abs, tag = 'smem constant byte address 0x4 - core index']
  #allocation1 [shape = 'u32[144,128]{1,0:T(1,128)}', space=vmem, size = 0x12000, scoped, tag = 'internal scratch']
  %s0 = inlined_call_operand.vmem [shape: f32[2,256,128], index: 0, kind: input, shape index: {}]
  %s1 = inlined_call_operand.vmem [shape: f32[128,32], index: 1, kind: input, shape index: {}]
  %s2 = inlined_call_operand.vmem [shape: f32[1,32], index: 2, kind: input, shape index: {}]
  %s3 = inlined_call_operand.vmem [shape: f32[3,96,32], index: 3, kind: input, shape index: {}]
  %s4 = inlined_call_operand.vmem [shape: f32[1,32], index: 4, kind: input, shape index: {}]
  %s5 = inlined_call_operand.vmem [shape: f32[32,128], index: 5, kind: input, shape index: {}]
  %s6 = inlined_call_operand.vmem [shape: f32[1,128], index: 6, kind: input, shape index: {}]
  %s7 = inlined_call_operand.hbm [shape: f32[2,256,128], index: 7, kind: output, shape index: {}]
  %s8 = sld [smem:[#allocation0]]
  $region61: #{bottleneck_forward.1} parent=0
    _
  %s10 = ssub.s32 1, %s8
  %s11 = scalar_select 0, %s10, %s8
  $region1: #{bottleneck_forward.1} parent=0
    #allocation2 [shape = 'u8[262144]{0}', space=vmem, size = 0x40000, scoped, tag = 'output window, operand 0']
    #allocation3 [shape = 's32[2]{0}', space=sflag, size = 0x8, scoped, tag = 'scoped memory for bottleneck_forward.1']
    %12 = vsyncpa [#allocation3], 0
    %s13 = scalar_lea.sflag [#allocation3], 1
    %14 = vsyncpa %s13, 0
    loop: start=0, step=1, limit=4
    $region2: #{bottleneck_forward.1} parent=1 // loop_pre_header
      _
    $region3: #{bottleneck_forward.1} parent=1 // loop_header
      %s16 = sphi 0, %s20
      %p17 = scmp.ge.s32.totalorder %s16, 4
      %s26 = sphi 0, %s28
      %s29 = sphi 0, %s26
      %s30 = sphi 0, %s29
      %s46 = sphi 0, %s30
      %s50 = sphi 0, %s50
      %s52 = sphi 0, %s50
      %s53 = sphi 0, %s52
      %s67 = sphi 0, %s53
      %s71 = sphi 0, %s71
      %s73 = sphi 0, %s71
      %s74 = sphi 0, %s73
      %s88 = sphi 0, %s74
      %s92 = sphi 0, %s92
      %s94 = sphi 0, %s92
      %s95 = sphi 0, %s94
      %s109 = sphi 0, %s95
      %s113 = sphi 0, %s113
      %s115 = sphi 0, %s113
      %s116 = sphi 0, %s115
      %s130 = sphi 0, %s116
      %s134 = sphi 0, %s134
      %s136 = sphi 0, %s134
      %s137 = sphi 0, %s136
      %s151 = sphi 0, %s137
      %s155 = sphi 0, %s155
      %s157 = sphi 0, %s155
      %s158 = sphi 0, %s157
      %s172 = sphi 0, %s158
      %s178 = sphi 0, %s180
      %s181 = sphi 0, %s178
      %s182 = sphi 0, %s181
      %s198 = sphi 0, %s182
    $region4: #{bottleneck_forward.1} parent=1 // loop_header_branch
      %19 = sbr.rel (%p17) target = $region8
    $region5: #{bottleneck_forward.1} parent=1 // loop_body
      %s21 = ssub.s32 %s16, 1
      %s22 = ssub.s32 %s16, 2
      %s23 = sadd.s32 %s16, 1
      %s24 = ssub.s32 %s16, %s23
      %p25 = scmp.eq.s32.totalorder %s24, 0
      %s27 = sadd.s32 %s26, 1
      %s28 = scalar_select %p25, %s26, %s27
      %p31 = pneg %p25
      %p32 = scmp.eq.s32.totalorder %s16, 1
      %p33 = por %p31, %p32
      %p34 = scmp.ne.s32.totalorder %s26, %s29
      %p35 = scmp.eq.s32.totalorder %s16, 0
      %p36 = por %p34, %p35
      %p37 = scmp.ne.s32.totalorder %s26, %s29
      %p38 = scmp.eq.s32.totalorder %s21, 1
      %p39 = por %p37, %p38
      %p40 = scmp.ne.s32.totalorder %s29, %s30
      %p41 = scmp.eq.s32.totalorder %s21, 0
      %p42 = por %p40, %p41
      %p43 = scmp.ne.s32.totalorder %s29, %s30
      %p44 = scmp.eq.s32.totalorder %s22, 1
      %p45 = por %p43, %p44
      %p47 = scmp.ne.s32.totalorder %s30, %s46
      %p48 = scmp.eq.s32.totalorder %s22, 0
      %p49 = por %p47, %p48
      %s51 = sadd.s32 %s50, 1
      %p54 = scmp.eq.s32.totalorder %s16, 1
      %p55 = scmp.ne.s32.totalorder %s50, %s52
      %p56 = scmp.eq.s32.totalorder %s16, 0
      %p57 = por %p55, %p56
      %p58 = scmp.ne.s32.totalorder %s50, %s52
      %p59 = scmp.eq.s32.totalorder %s21, 1
      %p60 = por %p58, %p59
      %p61 = scmp.ne.s32.totalorder %s52, %s53
      %p62 = scmp.eq.s32.totalorder %s21, 0
      %p63 = por %p61, %p62
      %p64 = scmp.ne.s32.totalorder %s52, %s53
      %p65 = scmp.eq.s32.totalorder %s22, 1
      %p66 = por %p64, %p65
      %p68 = scmp.ne.s32.totalorder %s53, %s67
      %p69 = scmp.eq.s32.totalorder %s22, 0
      %p70 = por %p68, %p69
      %s72 = sadd.s32 %s71, 1
      %p75 = scmp.eq.s32.totalorder %s16, 1
      %p76 = scmp.ne.s32.totalorder %s71, %s73
      %p77 = scmp.eq.s32.totalorder %s16, 0
      %p78 = por %p76, %p77
      %p79 = scmp.ne.s32.totalorder %s71, %s73
      %p80 = scmp.eq.s32.totalorder %s21, 1
      %p81 = por %p79, %p80
      %p82 = scmp.ne.s32.totalorder %s73, %s74
      %p83 = scmp.eq.s32.totalorder %s21, 0
      %p84 = por %p82, %p83
      %p85 = scmp.ne.s32.totalorder %s73, %s74
      %p86 = scmp.eq.s32.totalorder %s22, 1
      %p87 = por %p85, %p86
      %p89 = scmp.ne.s32.totalorder %s74, %s88
      %p90 = scmp.eq.s32.totalorder %s22, 0
      %p91 = por %p89, %p90
      %s93 = sadd.s32 %s92, 1
      %p96 = scmp.eq.s32.totalorder %s16, 1
      %p97 = scmp.ne.s32.totalorder %s92, %s94
      %p98 = scmp.eq.s32.totalorder %s16, 0
      %p99 = por %p97, %p98
      %p100 = scmp.ne.s32.totalorder %s92, %s94
      %p101 = scmp.eq.s32.totalorder %s21, 1
      %p102 = por %p100, %p101
      %p103 = scmp.ne.s32.totalorder %s94, %s95
      %p104 = scmp.eq.s32.totalorder %s21, 0
      %p105 = por %p103, %p104
      %p106 = scmp.ne.s32.totalorder %s94, %s95
      %p107 = scmp.eq.s32.totalorder %s22, 1
      %p108 = por %p106, %p107
      %p110 = scmp.ne.s32.totalorder %s95, %s109
      %p111 = scmp.eq.s32.totalorder %s22, 0
      %p112 = por %p110, %p111
      %s114 = sadd.s32 %s113, 1
      %p117 = scmp.eq.s32.totalorder %s16, 1
      %p118 = scmp.ne.s32.totalorder %s113, %s115
      %p119 = scmp.eq.s32.totalorder %s16, 0
      %p120 = por %p118, %p119
      %p121 = scmp.ne.s32.totalorder %s113, %s115
      %p122 = scmp.eq.s32.totalorder %s21, 1
      %p123 = por %p121, %p122
      %p124 = scmp.ne.s32.totalorder %s115, %s116
      %p125 = scmp.eq.s32.totalorder %s21, 0
      %p126 = por %p124, %p125
      %p127 = scmp.ne.s32.totalorder %s115, %s116
      %p128 = scmp.eq.s32.totalorder %s22, 1
      %p129 = por %p127, %p128
      %p131 = scmp.ne.s32.totalorder %s116, %s130
      %p132 = scmp.eq.s32.totalorder %s22, 0
      %p133 = por %p131, %p132
      %s135 = sadd.s32 %s134, 1
      %p138 = scmp.eq.s32.totalorder %s16, 1
      %p139 = scmp.ne.s32.totalorder %s134, %s136
      %p140 = scmp.eq.s32.totalorder %s16, 0
      %p141 = por %p139, %p140
      %p142 = scmp.ne.s32.totalorder %s134, %s136
      %p143 = scmp.eq.s32.totalorder %s21, 1
      %p144 = por %p142, %p143
      %p145 = scmp.ne.s32.totalorder %s136, %s137
      %p146 = scmp.eq.s32.totalorder %s21, 0
      %p147 = por %p145, %p146
      %p148 = scmp.ne.s32.totalorder %s136, %s137
      %p149 = scmp.eq.s32.totalorder %s22, 1
      %p150 = por %p148, %p149
      %p152 = scmp.ne.s32.totalorder %s137, %s151
      %p153 = scmp.eq.s32.totalorder %s22, 0
      %p154 = por %p152, %p153
      %s156 = sadd.s32 %s155, 1
      %p159 = scmp.eq.s32.totalorder %s16, 1
      %p160 = scmp.ne.s32.totalorder %s155, %s157
      %p161 = scmp.eq.s32.totalorder %s16, 0
      %p162 = por %p160, %p161
      %p163 = scmp.ne.s32.totalorder %s155, %s157
      %p164 = scmp.eq.s32.totalorder %s21, 1
      %p165 = por %p163, %p164
      %p166 = scmp.ne.s32.totalorder %s157, %s158
      %p167 = scmp.eq.s32.totalorder %s21, 0
      %p168 = por %p166, %p167
      %p169 = scmp.ne.s32.totalorder %s157, %s158
      %p170 = scmp.eq.s32.totalorder %s22, 1
      %p171 = por %p169, %p170
      %p173 = scmp.ne.s32.totalorder %s158, %s172
      %p174 = scmp.eq.s32.totalorder %s22, 0
      %p175 = por %p173, %p174
      %s176 = ssub.s32 %s16, %s23
      %p177 = scmp.eq.s32.totalorder %s176, 0
      %s179 = sadd.s32 %s178, 1
      %s180 = scalar_select %p177, %s178, %s179
      %p183 = pneg %p177
      %p184 = scmp.eq.s32.totalorder %s16, 1
      %p185 = por %p183, %p184
      %p186 = scmp.ne.s32.totalorder %s178, %s181
      %p187 = scmp.eq.s32.totalorder %s16, 0
      %p188 = por %p186, %p187
      %p189 = scmp.ne.s32.totalorder %s178, %s181
      %p190 = scmp.eq.s32.totalorder %s21, 1
      %p191 = por %p189, %p190
      %p192 = scmp.ne.s32.totalorder %s181, %s182
      %p193 = scmp.eq.s32.totalorder %s21, 0
      %p194 = por %p192, %p193
      %p195 = scmp.ne.s32.totalorder %s181, %s182
      %p196 = scmp.eq.s32.totalorder %s22, 1
      %p197 = por %p195, %p196
      %p199 = scmp.ne.s32.totalorder %s182, %s198
      %p200 = scmp.eq.s32.totalorder %s22, 0
      %p201 = por %p199, %p200
      %p202 = scmp.le.s32.totalorder 1, %s16
      %p203 = scmp.lt.s32.totalorder %s16, 3
      %p204 = pnand %p202, %p203
      %p205 = pneg %p204
      // Predicated region
      $region9: #{bottleneck_forward.1} parent=5 // pred_check
        _
      $region10: #{bottleneck_forward.1} parent=5 // pred_check_branch
        %207 = sbr.rel (%p204) target = $region12
      $region11: #{bottleneck_forward.1} parent=5 // pred_region
        %s208 = ssub.s32 %s16, 1
        // Predicated region
        $region13: #{bottleneck_forward.1} parent=11 // pred_check
          %p209 = pneg %p63
        $region14: #{bottleneck_forward.1} parent=11 // pred_check_branch
          %211 = sbr.rel (%p209) target = $region16
        $region15: #{bottleneck_forward.1} parent=11 // pred_region
          _
        $region16: #{bottleneck_forward.1} parent=11 // pred_fallthru
          _
        // Predicated region
        $region17: #{bottleneck_forward.1} parent=11 // pred_check
          %p212 = pneg %p84
        $region18: #{bottleneck_forward.1} parent=11 // pred_check_branch
          %214 = sbr.rel (%p212) target = $region20
        $region19: #{bottleneck_forward.1} parent=11 // pred_region
          _
        $region20: #{bottleneck_forward.1} parent=11 // pred_fallthru
          _
        // Predicated region
        $region21: #{bottleneck_forward.1} parent=11 // pred_check
          %p215 = pneg %p105
        $region22: #{bottleneck_forward.1} parent=11 // pred_check_branch
          %217 = sbr.rel (%p215) target = $region24
        $region23: #{bottleneck_forward.1} parent=11 // pred_region
          _
        $region24: #{bottleneck_forward.1} parent=11 // pred_fallthru
          _
        // Predicated region
        $region25: #{bottleneck_forward.1} parent=11 // pred_check
          %p218 = pneg %p126
        $region26: #{bottleneck_forward.1} parent=11 // pred_check_branch
          %220 = sbr.rel (%p218) target = $region28
        $region27: #{bottleneck_forward.1} parent=11 // pred_region
          _
        $region28: #{bottleneck_forward.1} parent=11 // pred_fallthru
          _
        // Predicated region
        $region29: #{bottleneck_forward.1} parent=11 // pred_check
          %p221 = pneg %p147
        $region30: #{bottleneck_forward.1} parent=11 // pred_check_branch
          %223 = sbr.rel (%p221) target = $region32
        $region31: #{bottleneck_forward.1} parent=11 // pred_region
          _
        $region32: #{bottleneck_forward.1} parent=11 // pred_fallthru
          _
        // Predicated region
        $region33: #{bottleneck_forward.1} parent=11 // pred_check
          %p224 = pneg %p168
        $region34: #{bottleneck_forward.1} parent=11 // pred_check_branch
          %226 = sbr.rel (%p224) target = $region36
        $region35: #{bottleneck_forward.1} parent=11 // pred_region
          _
        $region36: #{bottleneck_forward.1} parent=11 // pred_fallthru
          _
      $region12: #{bottleneck_forward.1} parent=5 // pred_fallthru
        _
      %p227 = scmp.lt.s32.totalorder %s16, 2
      // Predicated region
      $region37: #{bottleneck_forward.1} parent=5 // pred_check
        %p228 = pneg %p227
      $region38: #{bottleneck_forward.1} parent=5 // pred_check_branch
        %230 = sbr.rel (%p228) target = $region40
      $region39: #{bottleneck_forward.1} parent=5 // pred_region
        // Predicated region
        $region41: #{bottleneck_forward.1} parent=39 // pred_check
          %p231 = pneg %p36
        $region42: #{bottleneck_forward.1} parent=39 // pred_check_branch
          %233 = sbr.rel (%p231) target = $region44
        $region43: #{bottleneck_forward.1} parent=39 // pred_region
          %p234 = scmp.lt.s32.totalorder %s16, 1
          %s235 = scalar_select %p234, %s16, 1
          %s236 = smul.addr %s235, 32
          %s237 = smul.addr %s236, 8
          %s238 = scalar_lea.vmem %s0, %s237
        $region44: #{bottleneck_forward.1} parent=39 // pred_fallthru
          _
      $region40: #{bottleneck_forward.1} parent=5 // pred_fallthru
        _
      %p239 = scmp.le.s32.totalorder 1, %s16
      %p240 = scmp.lt.s32.totalorder %s16, 3
      %p241 = pnand %p239, %p240
      %p242 = pneg %p241
      // Predicated region
      $region45: #{bottleneck_forward.1} parent=5 // pred_check
        _
      $region46: #{bottleneck_forward.1} parent=5 // pred_check_branch
        %244 = sbr.rel (%p241) target = $region48
      $region47: #{bottleneck_forward.1} parent=5 // pred_region
        %s245 = ssub.s32 %s16, 1
        %p246 = scmp.lt.s32.totalorder %s21, 1
        %s247 = scalar_select %p246, %s21, 1
        %s248 = smul.addr %s247, 32
        %s249 = smul.addr %s248, 8
        %s250 = scalar_lea.vmem %s0, %s249
        %p251 = pneg %p42
        %p252 = pneg %p39
        %p253 = pneg %p63
        %p254 = pneg %p60
        %p255 = pneg %p84
        %p256 = pneg %p81
        %p257 = pneg %p105
        %p258 = pneg %p102
        %p259 = pneg %p126
        %p260 = pneg %p123
        %p261 = pneg %p147
        %p262 = pneg %p144
        %p263 = pneg %p168
        %p264 = pneg %p165
        %p265 = pneg %p194
        %p266 = pneg %p191
        %s267 = sand.u32 %s181, 1
        %s268 = scalar_lea.sflag [#allocation3], %s267
        %s269 = sand.u32 %s181, 1
        %s270 = smul.addr %s269, 256
        %s271 = scalar_lea.vmem [#allocation2], %s270
        %p272 = scmp.lt.s32.totalorder %s21, 1
        %s273 = scalar_select %p272, %s21, 1
        %s274 = smul.addr %s273, 32
        %s275 = smul.addr %s274, 8
        %s276 = scalar_lea.vmem %s0, %s275
        %v277 = vld [vmem:[%s276] sm:$0xff]
        %v278 = vld [vmem:[%s276 + $0x8] sm:$0xff]
        %v279 = vld [vmem:[%s276 + $0x10] sm:$0xff]
        %v280 = vld [vmem:[%s276 + $0x18] sm:$0xff]
        %v281 = vld [vmem:[%s276 + $0x20] sm:$0xff]
        %v282 = vld [vmem:[%s276 + $0x28] sm:$0xff]
        %v283 = vld [vmem:[%s276 + $0x30] sm:$0xff]
        %v284 = vld [vmem:[%s276 + $0x38] sm:$0xff]
        %v285 = vld [vmem:[%s276 + $0x40] sm:$0xff]
        %v286 = vld [vmem:[%s276 + $0x48] sm:$0xff]
        %v287 = vld [vmem:[%s276 + $0x50] sm:$0xff]
        %v288 = vld [vmem:[%s276 + $0x58] sm:$0xff]
        %v289 = vld [vmem:[%s276 + $0x60] sm:$0xff]
        %v290 = vld [vmem:[%s276 + $0x68] sm:$0xff]
        %v291 = vld [vmem:[%s276 + $0x70] sm:$0xff]
        %v292 = vld [vmem:[%s276 + $0x78] sm:$0xff]
        %v293 = vld [vmem:[%s276 + $0x80] sm:$0xff]
        %v294 = vld [vmem:[%s276 + $0x88] sm:$0xff]
        %v295 = vld [vmem:[%s276 + $0x90] sm:$0xff]
        %v296 = vld [vmem:[%s276 + $0x98] sm:$0xff]
        %v297 = vld [vmem:[%s276 + $0xa0] sm:$0xff]
        %v298 = vld [vmem:[%s276 + $0xa8] sm:$0xff]
        %v299 = vld [vmem:[%s276 + $0xb0] sm:$0xff]
        %v300 = vld [vmem:[%s276 + $0xb8] sm:$0xff]
        %v301 = vld [vmem:[%s276 + $0xc0] sm:$0xff]
        %v302 = vld [vmem:[%s276 + $0xc8] sm:$0xff]
        %v303 = vld [vmem:[%s276 + $0xd0] sm:$0xff]
        %v304 = vld [vmem:[%s276 + $0xd8] sm:$0xff]
        %v305 = vld [vmem:[%s276 + $0xe0] sm:$0xff]
        %v306 = vld [vmem:[%s276 + $0xe8] sm:$0xff]
        %v307 = vld [vmem:[%s276 + $0xf0] sm:$0xff]
        %v308 = vld [vmem:[%s276 + $0xf8] sm:$0xff]
        %v309 = vld [vmem:[%s1] sm:$0xff]
        %v310 = vld [vmem:[%s1 + $0x8] sm:$0xff]
        %v311 = vld [vmem:[%s1 + $0x10] sm:$0xff]
        %v312 = vld [vmem:[%s1 + $0x18] sm:$0xff]
        %v313 = vld [vmem:[%s1 + $0x20] sm:$0xff]
        %v314 = vld [vmem:[%s1 + $0x28] sm:$0xff]
        %v315 = vld [vmem:[%s1 + $0x30] sm:$0xff]
        %v316 = vld [vmem:[%s1 + $0x38] sm:$0xff]
        %v317 = vld [vmem:[%s1 + $0x40] sm:$0xff]
        %v318 = vld [vmem:[%s1 + $0x48] sm:$0xff]
        %v319 = vld [vmem:[%s1 + $0x50] sm:$0xff]
        %v320 = vld [vmem:[%s1 + $0x58] sm:$0xff]
        %v321 = vld [vmem:[%s1 + $0x60] sm:$0xff]
        %v322 = vld [vmem:[%s1 + $0x68] sm:$0xff]
        %v323 = vld [vmem:[%s1 + $0x70] sm:$0xff]
        %v324 = vld [vmem:[%s1 + $0x78] sm:$0xff]
        %v325 = vld [vmem:[%s2] sm:$0x1]
        %v327 = vlaneseq
        %v328 = vshrl.u32 %v327, 7
        %v329 = vsub.s32 0, %v328
        %v330 = vrot.slane %v325, %v329
        %332 = vmatprep.subr.mxu0 0.0
        %333 = vmatpush1.msra.mxu0 %v309
        %334 = vmatprep.subr.mxu0 0.0
        %335 = vmatpush1.msra.mxu0 %v310
        %336 = vmatprep.subr.mxu0 0.0
        %337 = vmatpush1.msra.mxu0 %v311
        %338 = vmatprep.subr.mxu0 0.0
        %339 = vmatpush1.msra.mxu0 %v312
        %340 = vmatprep.subr.mxu0 0.0
        %341 = vmatpush1.msra.mxu0 %v313
        %342 = vmatprep.subr.mxu0 0.0
        %343 = vmatpush1.msra.mxu0 %v314
        %344 = vmatprep.subr.mxu0 0.0
        %345 = vmatpush1.msra.mxu0 %v315
        %346 = vmatprep.subr.mxu0 0.0
        %347 = vmatpush1.msra.mxu0 %v316
        %348 = vmatprep.subr.mxu0 0.0
        %349 = vmatpush1.msra.mxu0 %v317
        %350 = vmatprep.subr.mxu0 0.0
        %351 = vmatpush1.msra.mxu0 %v318
        %352 = vmatprep.subr.mxu0 0.0
        %353 = vmatpush1.msra.mxu0 %v319
        %354 = vmatprep.subr.mxu0 0.0
        %355 = vmatpush1.msra.mxu0 %v320
        %356 = vmatprep.subr.mxu0 0.0
        %357 = vmatpush1.msra.mxu0 %v321
        %358 = vmatprep.subr.mxu0 0.0
        %359 = vmatpush1.msra.mxu0 %v322
        %360 = vmatprep.subr.mxu0 0.0
        %361 = vmatpush1.msra.mxu0 %v323
        %362 = vmatprep.subr.mxu0 0.0
        %363 = vmatpush1.msra.mxu0 %v324
        %364 = vmatprep.subr.mxu0 0.0
        %365 = vmatpush1.msra.mxu0 0.0
        %366 = vmatprep.subr.mxu0 0.0
        %367 = vmatpush1.msra.mxu0 0.0
        %368 = vmatprep.subr.mxu0 0.0
        %369 = vmatpush1.msra.mxu0 0.0
        %370 = vmatprep.subr.mxu0 0.0
        %371 = vmatpush1.msra.mxu0 0.0
        %372 = vmatprep.subr.mxu0 0.0
        %373 = vmatpush1.msra.mxu0 0.0
        %374 = vmatprep.subr.mxu0 0.0
        %375 = vmatpush1.msra.mxu0 0.0
        %376 = vmatprep.subr.mxu0 0.0
        %377 = vmatpush1.msra.mxu0 0.0
        %378 = vmatprep.subr.mxu0 0.0
        %379 = vmatpush1.msra.mxu0 0.0
        %380 = vmatprep.subr.mxu0 0.0
        %381 = vmatpush1.msra.mxu0 0.0
        %382 = vmatprep.subr.mxu0 0.0
        %383 = vmatpush1.msra.mxu0 0.0
        %384 = vmatprep.subr.mxu0 0.0
        %385 = vmatpush1.msra.mxu0 0.0
        %386 = vmatprep.subr.mxu0 0.0
        %387 = vmatpush1.msra.mxu0 0.0
        %388 = vmatprep.subr.mxu0 0.0
        %389 = vmatpush1.msra.mxu0 0.0
        %390 = vmatprep.subr.mxu0 0.0
        %391 = vmatpush1.msra.mxu0 0.0
        %392 = vmatprep.subr.mxu0 0.0
        %393 = vmatpush1.msra.mxu0 0.0
        %394 = vmatprep.subr.mxu0 0.0
        %395 = vmatpush1.msra.mxu0 0.0
        %396 = vmatprep.mubr.f32.mxu0 0.0
        %397 = vmatmul.mubr.f32.gmra.mrb[0].mxu0 %v277
        %v398 = vpop.f32.mrb[0].mxu0
        %v399 = vadd.f32 %v330, %v398
        %v400 = vpop.f32.mrb[0].mxu0
        %401 = vmatprep.mubr.f32.mxu0 0.0
        %402 = vmatmul.mubr.f32.gmra.mrb[0].mxu0 %v278
        %v403 = vpop.f32.mrb[0].mxu0
        %v404 = vadd.f32 %v330, %v403
        %v405 = vpop.f32.mrb[0].mxu0
        %406 = vmatprep.mubr.f32.mxu0 0.0
        %407 = vmatmul.mubr.f32.gmra.mrb[0].mxu0 %v279
        %v408 = vpop.f32.mrb[0].mxu0
        %v409 = vadd.f32 %v330, %v408
        %v410 = vpop.f32.mrb[0].mxu0
        %411 = vmatprep.mubr.f32.mxu0 0.0
        %412 = vmatmul.mubr.f32.gmra.mrb[0].mxu0 %v280
        %v413 = vpop.f32.mrb[0].mxu0
        %v414 = vadd.f32 %v330, %v413
        %v415 = vpop.f32.mrb[0].mxu0
        %416 = vmatprep.mubr.f32.mxu0 0.0
        %417 = vmatmul.mubr.f32.gmra.mrb[0].mxu0 %v281
        %v418 = vpop.f32.mrb[0].mxu0
        %v419 = vadd.f32 %v330, %v418
        %v420 = vpop.f32.mrb[0].mxu0
        %421 = vmatprep.mubr.f32.mxu0 0.0
        %422 = vmatmul.mubr.f32.gmra.mrb[0].mxu0 %v282
        %v423 = vpop.f32.mrb[0].mxu0
        %v424 = vadd.f32 %v330, %v423
        %v425 = vpop.f32.mrb[0].mxu0
        %426 = vmatprep.mubr.f32.mxu0 0.0
        %427 = vmatmul.mubr.f32.gmra.mrb[0].mxu0 %v283
        %v428 = vpop.f32.mrb[0].mxu0
        %v429 = vadd.f32 %v330, %v428
        %v430 = vpop.f32.mrb[0].mxu0
        %431 = vmatprep.mubr.f32.mxu0 0.0
        %432 = vmatmul.mubr.f32.gmra.mrb[0].mxu0 %v284
        %v433 = vpop.f32.mrb[0].mxu0
        %v434 = vadd.f32 %v330, %v433
        %v435 = vpop.f32.mrb[0].mxu0
        %436 = vmatprep.mubr.f32.mxu0 0.0
        %437 = vmatmul.mubr.f32.gmra.mrb[0].mxu0 %v285
        %v438 = vpop.f32.mrb[0].mxu0
        %v439 = vadd.f32 %v330, %v438
        %v440 = vpop.f32.mrb[0].mxu0
        %441 = vmatprep.mubr.f32.mxu0 0.0
        %442 = vmatmul.mubr.f32.gmra.mrb[0].mxu0 %v286
        %v443 = vpop.f32.mrb[0].mxu0
        %v444 = vadd.f32 %v330, %v443
        %v445 = vpop.f32.mrb[0].mxu0
        %446 = vmatprep.mubr.f32.mxu0 0.0
        %447 = vmatmul.mubr.f32.gmra.mrb[0].mxu0 %v287
        %v448 = vpop.f32.mrb[0].mxu0
        %v449 = vadd.f32 %v330, %v448
        %v450 = vpop.f32.mrb[0].mxu0
        %451 = vmatprep.mubr.f32.mxu0 0.0
        %452 = vmatmul.mubr.f32.gmra.mrb[0].mxu0 %v288
        %v453 = vpop.f32.mrb[0].mxu0
        %v454 = vadd.f32 %v330, %v453
        %v455 = vpop.f32.mrb[0].mxu0
        %456 = vmatprep.mubr.f32.mxu0 0.0
        %457 = vmatmul.mubr.f32.gmra.mrb[0].mxu0 %v289
        %v458 = vpop.f32.mrb[0].mxu0
        %v459 = vadd.f32 %v330, %v458
        %v460 = vpop.f32.mrb[0].mxu0
        %461 = vmatprep.mubr.f32.mxu0 0.0
        %462 = vmatmul.mubr.f32.gmra.mrb[0].mxu0 %v290
        %v463 = vpop.f32.mrb[0].mxu0
        %v464 = vadd.f32 %v330, %v463
        %v465 = vpop.f32.mrb[0].mxu0
        %466 = vmatprep.mubr.f32.mxu0 0.0
        %467 = vmatmul.mubr.f32.gmra.mrb[0].mxu0 %v291
        %v468 = vpop.f32.mrb[0].mxu0
        %v469 = vadd.f32 %v330, %v468
        %v470 = vpop.f32.mrb[0].mxu0
        %471 = vmatprep.mubr.f32.mxu0 0.0
        %472 = vmatmul.mubr.f32.gmra.mrb[0].mxu0 %v292
        %v473 = vpop.f32.mrb[0].mxu0
        %v474 = vadd.f32 %v330, %v473
        %v475 = vpop.f32.mrb[0].mxu0
        %476 = vmatprep.mubr.f32.mxu0 0.0
        %477 = vmatmul.mubr.f32.gmra.mrb[0].mxu0 %v293
        %v478 = vpop.f32.mrb[0].mxu0
        %v479 = vadd.f32 %v330, %v478
        %v480 = vpop.f32.mrb[0].mxu0
        %481 = vmatprep.mubr.f32.mxu0 0.0
        %482 = vmatmul.mubr.f32.gmra.mrb[0].mxu0 %v294
        %v483 = vpop.f32.mrb[0].mxu0
        %v484 = vadd.f32 %v330, %v483
        %v485 = vpop.f32.mrb[0].mxu0
        %486 = vmatprep.mubr.f32.mxu0 0.0
        %487 = vmatmul.mubr.f32.gmra.mrb[0].mxu0 %v295
        %v488 = vpop.f32.mrb[0].mxu0
        %v489 = vadd.f32 %v330, %v488
        %v490 = vpop.f32.mrb[0].mxu0
        %491 = vmatprep.mubr.f32.mxu0 0.0
        %492 = vmatmul.mubr.f32.gmra.mrb[0].mxu0 %v296
        %v493 = vpop.f32.mrb[0].mxu0
        %v494 = vadd.f32 %v330, %v493
        %v495 = vpop.f32.mrb[0].mxu0
        %496 = vmatprep.mubr.f32.mxu0 0.0
        %497 = vmatmul.mubr.f32.gmra.mrb[0].mxu0 %v297
        %v498 = vpop.f32.mrb[0].mxu0
        %v499 = vadd.f32 %v330, %v498
        %v500 = vpop.f32.mrb[0].mxu0
        %501 = vmatprep.mubr.f32.mxu0 0.0
        %502 = vmatmul.mubr.f32.gmra.mrb[0].mxu0 %v298
        %v503 = vpop.f32.mrb[0].mxu0
        %v504 = vadd.f32 %v330, %v503
        %v505 = vpop.f32.mrb[0].mxu0
        %506 = vmatprep.mubr.f32.mxu0 0.0
        %507 = vmatmul.mubr.f32.gmra.mrb[0].mxu0 %v299
        %v508 = vpop.f32.mrb[0].mxu0
        %v509 = vadd.f32 %v330, %v508
        %v510 = vpop.f32.mrb[0].mxu0
        %511 = vmatprep.mubr.f32.mxu0 0.0
        %512 = vmatmul.mubr.f32.gmra.mrb[0].mxu0 %v300
        %v513 = vpop.f32.mrb[0].mxu0
        %v514 = vadd.f32 %v330, %v513
        %v515 = vpop.f32.mrb[0].mxu0
        %516 = vmatprep.mubr.f32.mxu0 0.0
        %517 = vmatmul.mubr.f32.gmra.mrb[0].mxu0 %v301
        %v518 = vpop.f32.mrb[0].mxu0
        %v519 = vadd.f32 %v330, %v518
        %v520 = vpop.f32.mrb[0].mxu0
        %521 = vmatprep.mubr.f32.mxu0 0.0
        %522 = vmatmul.mubr.f32.gmra.mrb[0].mxu0 %v302
        %v523 = vpop.f32.mrb[0].mxu0
        %v524 = vadd.f32 %v330, %v523
        %v525 = vpop.f32.mrb[0].mxu0
        %526 = vmatprep.mubr.f32.mxu0 0.0
        %527 = vmatmul.mubr.f32.gmra.mrb[0].mxu0 %v303
        %v528 = vpop.f32.mrb[0].mxu0
        %v529 = vadd.f32 %v330, %v528
        %v530 = vpop.f32.mrb[0].mxu0
        %531 = vmatprep.mubr.f32.mxu0 0.0
        %532 = vmatmul.mubr.f32.gmra.mrb[0].mxu0 %v304
        %v533 = vpop.f32.mrb[0].mxu0
        %v534 = vadd.f32 %v330, %v533
        %v535 = vpop.f32.mrb[0].mxu0
        %536 = vmatprep.mubr.f32.mxu0 0.0
        %537 = vmatmul.mubr.f32.gmra.mrb[0].mxu0 %v305
        %v538 = vpop.f32.mrb[0].mxu0
        %v539 = vadd.f32 %v330, %v538
        %v540 = vpop.f32.mrb[0].mxu0
        %541 = vmatprep.mubr.f32.mxu0 0.0
        %542 = vmatmul.mubr.f32.gmra.mrb[0].mxu0 %v306
        %v543 = vpop.f32.mrb[0].mxu0
        %v544 = vadd.f32 %v330, %v543
        %v545 = vpop.f32.mrb[0].mxu0
        %546 = vmatprep.mubr.f32.mxu0 0.0
        %547 = vmatmul.mubr.f32.gmra.mrb[0].mxu0 %v307
        %v548 = vpop.f32.mrb[0].mxu0
        %v549 = vadd.f32 %v330, %v548
        %v550 = vpop.f32.mrb[0].mxu0
        %551 = vmatprep.mubr.f32.mxu0 0.0
        %552 = vmatmul.mubr.f32.gmra.mrb[0].mxu0 %v308
        %v553 = vpop.f32.mrb[0].mxu0
        %v554 = vadd.f32 %v330, %v553
        %v555 = vpop.f32.mrb[0].mxu0
        %556 = vdwg.mxu0
        %v557 = vmax.f32 %v399, 0.0
        %v558 = vmax.f32 %v404, 0.0
        %v559 = vmax.f32 %v409, 0.0
        %v560 = vmax.f32 %v414, 0.0
        %v561 = vmax.f32 %v419, 0.0
        %v562 = vmax.f32 %v424, 0.0
        %v563 = vmax.f32 %v429, 0.0
        %v564 = vmax.f32 %v434, 0.0
        %v565 = vmax.f32 %v439, 0.0
        %v566 = vmax.f32 %v444, 0.0
        %v567 = vmax.f32 %v449, 0.0
        %v568 = vmax.f32 %v454, 0.0
        %v569 = vmax.f32 %v459, 0.0
        %v570 = vmax.f32 %v464, 0.0
        %v571 = vmax.f32 %v469, 0.0
        %v572 = vmax.f32 %v474, 0.0
        %v573 = vmax.f32 %v479, 0.0
        %v574 = vmax.f32 %v484, 0.0
        %v575 = vmax.f32 %v489, 0.0
        %v576 = vmax.f32 %v494, 0.0
        %v577 = vmax.f32 %v499, 0.0
        %v578 = vmax.f32 %v504, 0.0
        %v579 = vmax.f32 %v509, 0.0
        %v580 = vmax.f32 %v514, 0.0
        %v581 = vmax.f32 %v519, 0.0
        %v582 = vmax.f32 %v524, 0.0
        %v583 = vmax.f32 %v529, 0.0
        %v584 = vmax.f32 %v534, 0.0
        %v585 = vmax.f32 %v539, 0.0
        %v586 = vmax.f32 %v544, 0.0
        %v587 = vmax.f32 %v549, 0.0
        %v588 = vmax.f32 %v554, 0.0
        %v589 = vlaneseq
        %v590 = vshrl.u32 %v589, 7
        %v591 = vadd.s32 %v590, 8
        %v592 = vadd.s32 %v590, 16
        %v593 = vadd.s32 %v590, 24
        %v594 = vadd.s32 %v590, 32
        %v595 = vadd.s32 %v590, 40
        %v596 = vadd.s32 %v590, 48
        %v597 = vadd.s32 %v590, 56
        %v598 = vadd.s32 %v590, 64
        %v599 = vadd.s32 %v590, 72
        %v600 = vadd.s32 %v590, 80
        %v601 = vadd.s32 %v590, 88
        %v602 = vadd.s32 %v590, 96
        %v603 = vadd.s32 %v590, 104
        %v604 = vadd.s32 %v590, 112
        %v605 = vadd.s32 %v590, 120
        %v606 = vadd.s32 %v590, 128
        %v607 = vadd.s32 %v590, 136
        %v608 = vadd.s32 %v590, 144
        %v609 = vadd.s32 %v590, 152
        %v610 = vadd.s32 %v590, 160
        %v611 = vadd.s32 %v590, 168
        %v612 = vadd.s32 %v590, 176
        %v613 = vadd.s32 %v590, 184
        %v614 = vadd.s32 %v590, 192
        %v615 = vadd.s32 %v590, 200
        %v616 = vadd.s32 %v590, 208
        %v617 = vadd.s32 %v590, 216
        %v618 = vadd.s32 %v590, 224
        %v619 = vadd.s32 %v590, 232
        %v620 = vadd.s32 %v590, 240
        %v621 = vadd.s32 %v590, 248
        %v622 = vadd.s32 %v590, 256
        %v623 = vadd.s32 %v590, 264
        %v624 = vadd.s32 %v590, 272
        %v625 = vadd.s32 %v590, 280
        %vm626 = vcmp.lt.s32.totalorder %v590, 0
        %v627 = vsub.s32 0, %v590
        %v628 = vsel %vm626, %v627, %v590
        %v629 = vshrl.u32 %v628, 4
        %v630 = vand.u32 %v628, 15
        %v631 = vsub.s32 0, %v630
        %v632 = vsel %vm626, %v631, %v630
        %vm633 = vcmp.lt.s32.totalorder %v591, 0
        %v634 = vsub.s32 0, %v591
        %v635 = vsel %vm633, %v634, %v591
        %v636 = vshrl.u32 %v635, 4
        %v637 = vand.u32 %v635, 15
        %v638 = vsub.s32 0, %v637
        %v639 = vsel %vm633, %v638, %v637
        %vm640 = vcmp.lt.s32.totalorder %v592, 0
        %v641 = vsub.s32 0, %v592
        %v642 = vsel %vm640, %v641, %v592
        %v643 = vshrl.u32 %v642, 4
        %v644 = vand.u32 %v642, 15
        %v645 = vsub.s32 0, %v644
        %v646 = vsel %vm640, %v645, %v644
        %vm647 = vcmp.lt.s32.totalorder %v593, 0
        %v648 = vsub.s32 0, %v593
        %v649 = vsel %vm647, %v648, %v593
        %v650 = vshrl.u32 %v649, 4
        %v651 = vand.u32 %v649, 15
        %v652 = vsub.s32 0, %v651
        %v653 = vsel %vm647, %v652, %v651
        %vm654 = vcmp.lt.s32.totalorder %v594, 0
        %v655 = vsub.s32 0, %v594
        %v656 = vsel %vm654, %v655, %v594
        %v657 = vshrl.u32 %v656, 4
        %v658 = vand.u32 %v656, 15
        %v659 = vsub.s32 0, %v658
        %v660 = vsel %vm654, %v659, %v658
        %vm661 = vcmp.lt.s32.totalorder %v595, 0
        %v662 = vsub.s32 0, %v595
        %v663 = vsel %vm661, %v662, %v595
        %v664 = vshrl.u32 %v663, 4
        %v665 = vand.u32 %v663, 15
        %v666 = vsub.s32 0, %v665
        %v667 = vsel %vm661, %v666, %v665
        %vm668 = vcmp.lt.s32.totalorder %v596, 0
        %v669 = vsub.s32 0, %v596
        %v670 = vsel %vm668, %v669, %v596
        %v671 = vshrl.u32 %v670, 4
        %v672 = vand.u32 %v670, 15
        %v673 = vsub.s32 0, %v672
        %v674 = vsel %vm668, %v673, %v672
        %vm675 = vcmp.lt.s32.totalorder %v597, 0
        %v676 = vsub.s32 0, %v597
        %v677 = vsel %vm675, %v676, %v597
        %v678 = vshrl.u32 %v677, 4
        %v679 = vand.u32 %v677, 15
        %v680 = vsub.s32 0, %v679
        %v681 = vsel %vm675, %v680, %v679
        %vm682 = vcmp.lt.s32.totalorder %v598, 0
        %v683 = vsub.s32 0, %v598
        %v684 = vsel %vm682, %v683, %v598
        %v685 = vshrl.u32 %v684, 4
        %v686 = vand.u32 %v684, 15
        %v687 = vsub.s32 0, %v686
        %v688 = vsel %vm682, %v687, %v686
        %vm689 = vcmp.lt.s32.totalorder %v599, 0
        %v690 = vsub.s32 0, %v599
        %v691 = vsel %vm689, %v690, %v599
        %v692 = vshrl.u32 %v691, 4
        %v693 = vand.u32 %v691, 15
        %v694 = vsub.s32 0, %v693
        %v695 = vsel %vm689, %v694, %v693
        %vm696 = vcmp.lt.s32.totalorder %v600, 0
        %v697 = vsub.s32 0, %v600
        %v698 = vsel %vm696, %v697, %v600
        %v699 = vshrl.u32 %v698, 4
        %v700 = vand.u32 %v698, 15
        %v701 = vsub.s32 0, %v700
        %v702 = vsel %vm696, %v701, %v700
        %vm703 = vcmp.lt.s32.totalorder %v601, 0
        %v704 = vsub.s32 0, %v601
        %v705 = vsel %vm703, %v704, %v601
        %v706 = vshrl.u32 %v705, 4
        %v707 = vand.u32 %v705, 15
        %v708 = vsub.s32 0, %v707
        %v709 = vsel %vm703, %v708, %v707
        %vm710 = vcmp.lt.s32.totalorder %v602, 0
        %v711 = vsub.s32 0, %v602
        %v712 = vsel %vm710, %v711, %v602
        %v713 = vshrl.u32 %v712, 4
        %v714 = vand.u32 %v712, 15
        %v715 = vsub.s32 0, %v714
        %v716 = vsel %vm710, %v715, %v714
        %vm717 = vcmp.lt.s32.totalorder %v603, 0
        %v718 = vsub.s32 0, %v603
        %v719 = vsel %vm717, %v718, %v603
        %v720 = vshrl.u32 %v719, 4
        %v721 = vand.u32 %v719, 15
        %v722 = vsub.s32 0, %v721
        %v723 = vsel %vm717, %v722, %v721
        %vm724 = vcmp.lt.s32.totalorder %v604, 0
        %v725 = vsub.s32 0, %v604
        %v726 = vsel %vm724, %v725, %v604
        %v727 = vshrl.u32 %v726, 4
        %v728 = vand.u32 %v726, 15
        %v729 = vsub.s32 0, %v728
        %v730 = vsel %vm724, %v729, %v728
        %vm731 = vcmp.lt.s32.totalorder %v605, 0
        %v732 = vsub.s32 0, %v605
        %v733 = vsel %vm731, %v732, %v605
        %v734 = vshrl.u32 %v733, 4
        %v735 = vand.u32 %v733, 15
        %v736 = vsub.s32 0, %v735
        %v737 = vsel %vm731, %v736, %v735
        %vm738 = vcmp.lt.s32.totalorder %v606, 0
        %v739 = vsub.s32 0, %v606
        %v740 = vsel %vm738, %v739, %v606
        %v741 = vshrl.u32 %v740, 4
        %v742 = vand.u32 %v740, 15
        %v743 = vsub.s32 0, %v742
        %v744 = vsel %vm738, %v743, %v742
        %vm745 = vcmp.lt.s32.totalorder %v607, 0
        %v746 = vsub.s32 0, %v607
        %v747 = vsel %vm745, %v746, %v607
        %v748 = vshrl.u32 %v747, 4
        %v749 = vand.u32 %v747, 15
        %v750 = vsub.s32 0, %v749
        %v751 = vsel %vm745, %v750, %v749
        %vm752 = vcmp.lt.s32.totalorder %v608, 0
        %v753 = vsub.s32 0, %v608
        %v754 = vsel %vm752, %v753, %v608
        %v755 = vshrl.u32 %v754, 4
        %v756 = vand.u32 %v754, 15
        %v757 = vsub.s32 0, %v756
        %v758 = vsel %vm752, %v757, %v756
        %vm759 = vcmp.lt.s32.totalorder %v609, 0
        %v760 = vsub.s32 0, %v609
        %v761 = vsel %vm759, %v760, %v609
        %v762 = vshrl.u32 %v761, 4
        %v763 = vand.u32 %v761, 15
        %v764 = vsub.s32 0, %v763
        %v765 = vsel %vm759, %v764, %v763
        %vm766 = vcmp.lt.s32.totalorder %v610, 0
        %v767 = vsub.s32 0, %v610
        %v768 = vsel %vm766, %v767, %v610
        %v769 = vshrl.u32 %v768, 4
        %v770 = vand.u32 %v768, 15
        %v771 = vsub.s32 0, %v770
        %v772 = vsel %vm766, %v771, %v770
        %vm773 = vcmp.lt.s32.totalorder %v611, 0
        %v774 = vsub.s32 0, %v611
        %v775 = vsel %vm773, %v774, %v611
        %v776 = vshrl.u32 %v775, 4
        %v777 = vand.u32 %v775, 15
        %v778 = vsub.s32 0, %v777
        %v779 = vsel %vm773, %v778, %v777
        %vm780 = vcmp.lt.s32.totalorder %v612, 0
        %v781 = vsub.s32 0, %v612
        %v782 = vsel %vm780, %v781, %v612
        %v783 = vshrl.u32 %v782, 4
        %v784 = vand.u32 %v782, 15
        %v785 = vsub.s32 0, %v784
        %v786 = vsel %vm780, %v785, %v784
        %vm787 = vcmp.lt.s32.totalorder %v613, 0
        %v788 = vsub.s32 0, %v613
        %v789 = vsel %vm787, %v788, %v613
        %v790 = vshrl.u32 %v789, 4
        %v791 = vand.u32 %v789, 15
        %v792 = vsub.s32 0, %v791
        %v793 = vsel %vm787, %v792, %v791
        %vm794 = vcmp.lt.s32.totalorder %v614, 0
        %v795 = vsub.s32 0, %v614
        %v796 = vsel %vm794, %v795, %v614
        %v797 = vshrl.u32 %v796, 4
        %v798 = vand.u32 %v796, 15
        %v799 = vsub.s32 0, %v798
        %v800 = vsel %vm794, %v799, %v798
        %vm801 = vcmp.lt.s32.totalorder %v615, 0
        %v802 = vsub.s32 0, %v615
        %v803 = vsel %vm801, %v802, %v615
        %v804 = vshrl.u32 %v803, 4
        %v805 = vand.u32 %v803, 15
        %v806 = vsub.s32 0, %v805
        %v807 = vsel %vm801, %v806, %v805
        %vm808 = vcmp.lt.s32.totalorder %v616, 0
        %v809 = vsub.s32 0, %v616
        %v810 = vsel %vm808, %v809, %v616
        %v811 = vshrl.u32 %v810, 4
        %v812 = vand.u32 %v810, 15
        %v813 = vsub.s32 0, %v812
        %v814 = vsel %vm808, %v813, %v812
        %vm815 = vcmp.lt.s32.totalorder %v617, 0
        %v816 = vsub.s32 0, %v617
        %v817 = vsel %vm815, %v816, %v617
        %v818 = vshrl.u32 %v817, 4
        %v819 = vand.u32 %v817, 15
        %v820 = vsub.s32 0, %v819
        %v821 = vsel %vm815, %v820, %v819
        %vm822 = vcmp.lt.s32.totalorder %v618, 0
        %v823 = vsub.s32 0, %v618
        %v824 = vsel %vm822, %v823, %v618
        %v825 = vshrl.u32 %v824, 4
        %v826 = vand.u32 %v824, 15
        %v827 = vsub.s32 0, %v826
        %v828 = vsel %vm822, %v827, %v826
        %vm829 = vcmp.lt.s32.totalorder %v619, 0
        %v830 = vsub.s32 0, %v619
        %v831 = vsel %vm829, %v830, %v619
        %v832 = vshrl.u32 %v831, 4
        %v833 = vand.u32 %v831, 15
        %v834 = vsub.s32 0, %v833
        %v835 = vsel %vm829, %v834, %v833
        %vm836 = vcmp.lt.s32.totalorder %v620, 0
        %v837 = vsub.s32 0, %v620
        %v838 = vsel %vm836, %v837, %v620
        %v839 = vshrl.u32 %v838, 4
        %v840 = vand.u32 %v838, 15
        %v841 = vsub.s32 0, %v840
        %v842 = vsel %vm836, %v841, %v840
        %vm843 = vcmp.lt.s32.totalorder %v621, 0
        %v844 = vsub.s32 0, %v621
        %v845 = vsel %vm843, %v844, %v621
        %v846 = vshrl.u32 %v845, 4
        %v847 = vand.u32 %v845, 15
        %v848 = vsub.s32 0, %v847
        %v849 = vsel %vm843, %v848, %v847
        %vm850 = vcmp.lt.s32.totalorder %v622, 0
        %v851 = vsub.s32 0, %v622
        %v852 = vsel %vm850, %v851, %v622
        %v853 = vshrl.u32 %v852, 4
        %v854 = vand.u32 %v852, 15
        %v855 = vsub.s32 0, %v854
        %v856 = vsel %vm850, %v855, %v854
        %vm857 = vcmp.lt.s32.totalorder %v623, 0
        %v858 = vsub.s32 0, %v623
        %v859 = vsel %vm857, %v858, %v623
        %v860 = vshrl.u32 %v859, 4
        %v861 = vand.u32 %v859, 15
        %v862 = vsub.s32 0, %v861
        %v863 = vsel %vm857, %v862, %v861
        %vm864 = vcmp.lt.s32.totalorder %v624, 0
        %v865 = vsub.s32 0, %v624
        %v866 = vsel %vm864, %v865, %v624
        %v867 = vshrl.u32 %v866, 4
        %v868 = vand.u32 %v866, 15
        %v869 = vsub.s32 0, %v868
        %v870 = vsel %vm864, %v869, %v868
        %vm871 = vcmp.lt.s32.totalorder %v625, 0
        %v872 = vsub.s32 0, %v625
        %v873 = vsel %vm871, %v872, %v625
        %v874 = vshrl.u32 %v873, 4
        %v875 = vand.u32 %v873, 15
        %v876 = vsub.s32 0, %v875
        %v877 = vsel %vm871, %v876, %v875
        %vm878 = vcmp.ne.s32.totalorder %v632, 0
        %vm879 = vcmp.ne.s32.totalorder %v639, 0
        %vm880 = vcmp.ne.s32.totalorder %v646, 0
        %vm881 = vcmp.ne.s32.totalorder %v653, 0
        %vm882 = vcmp.ne.s32.totalorder %v660, 0
        %vm883 = vcmp.ne.s32.totalorder %v667, 0
        %vm884 = vcmp.ne.s32.totalorder %v674, 0
        %vm885 = vcmp.ne.s32.totalorder %v681, 0
        %vm886 = vcmp.ne.s32.totalorder %v688, 0
        %vm887 = vcmp.ne.s32.totalorder %v695, 0
        %vm888 = vcmp.ne.s32.totalorder %v702, 0
        %vm889 = vcmp.ne.s32.totalorder %v709, 0
        %vm890 = vcmp.ne.s32.totalorder %v716, 0
        %vm891 = vcmp.ne.s32.totalorder %v723, 0
        %vm892 = vcmp.ne.s32.totalorder %v730, 0
        %vm893 = vcmp.ne.s32.totalorder %v737, 0
        %vm894 = vcmp.ne.s32.totalorder %v744, 0
        %vm895 = vcmp.ne.s32.totalorder %v751, 0
        %vm896 = vcmp.ne.s32.totalorder %v758, 0
        %vm897 = vcmp.ne.s32.totalorder %v765, 0
        %vm898 = vcmp.ne.s32.totalorder %v772, 0
        %vm899 = vcmp.ne.s32.totalorder %v779, 0
        %vm900 = vcmp.ne.s32.totalorder %v786, 0
        %vm901 = vcmp.ne.s32.totalorder %v793, 0
        %vm902 = vcmp.ne.s32.totalorder %v800, 0
        %vm903 = vcmp.ne.s32.totalorder %v807, 0
        %vm904 = vcmp.ne.s32.totalorder %v814, 0
        %vm905 = vcmp.ne.s32.totalorder %v821, 0
        %vm906 = vcmp.ne.s32.totalorder %v828, 0
        %vm907 = vcmp.ne.s32.totalorder %v835, 0
        %vm908 = vcmp.ne.s32.totalorder %v842, 0
        %vm909 = vcmp.ne.s32.totalorder %v849, 0
        %vm910 = vcmp.ne.s32.totalorder %v856, 0
        %vm911 = vcmp.ne.s32.totalorder %v863, 0
        %vm912 = vcmp.ne.s32.totalorder %v870, 0
        %vm913 = vcmp.ne.s32.totalorder %v877, 0
        %vm914 = vcmp.lt.s32.totalorder %v632, 0
        %vm915 = vcmp.lt.s32.totalorder %v639, 0
        %vm916 = vcmp.lt.s32.totalorder %v646, 0
        %vm917 = vcmp.lt.s32.totalorder %v653, 0
        %vm918 = vcmp.lt.s32.totalorder %v660, 0
        %vm919 = vcmp.lt.s32.totalorder %v667, 0
        %vm920 = vcmp.lt.s32.totalorder %v674, 0
        %vm921 = vcmp.lt.s32.totalorder %v681, 0
        %vm922 = vcmp.lt.s32.totalorder %v688, 0
        %vm923 = vcmp.lt.s32.totalorder %v695, 0
        %vm924 = vcmp.lt.s32.totalorder %v702, 0
        %vm925 = vcmp.lt.s32.totalorder %v709, 0
        %vm926 = vcmp.lt.s32.totalorder %v716, 0
        %vm927 = vcmp.lt.s32.totalorder %v723, 0
        %vm928 = vcmp.lt.s32.totalorder %v730, 0
        %vm929 = vcmp.lt.s32.totalorder %v737, 0
        %vm930 = vcmp.lt.s32.totalorder %v744, 0
        %vm931 = vcmp.lt.s32.totalorder %v751, 0
        %vm932 = vcmp.lt.s32.totalorder %v758, 0
        %vm933 = vcmp.lt.s32.totalorder %v765, 0
        %vm934 = vcmp.lt.s32.totalorder %v772, 0
        %vm935 = vcmp.lt.s32.totalorder %v779, 0
        %vm936 = vcmp.lt.s32.totalorder %v786, 0
        %vm937 = vcmp.lt.s32.totalorder %v793, 0
        %vm938 = vcmp.lt.s32.totalorder %v800, 0
        %vm939 = vcmp.lt.s32.totalorder %v807, 0
        %vm940 = vcmp.lt.s32.totalorder %v814, 0
        %vm941 = vcmp.lt.s32.totalorder %v821, 0
        %vm942 = vcmp.lt.s32.totalorder %v828, 0
        %vm943 = vcmp.lt.s32.totalorder %v835, 0
        %vm944 = vcmp.lt.s32.totalorder %v842, 0
        %vm945 = vcmp.lt.s32.totalorder %v849, 0
        %vm946 = vcmp.lt.s32.totalorder %v856, 0
        %vm947 = vcmp.lt.s32.totalorder %v863, 0
        %vm948 = vcmp.lt.s32.totalorder %v870, 0
        %vm949 = vcmp.lt.s32.totalorder %v877, 0
        %vm950 = vmand %vm914, %vm878
        %vm951 = vmand %vm915, %vm879
        %vm952 = vmand %vm916, %vm880
        %vm953 = vmand %vm917, %vm881
        %vm954 = vmand %vm918, %vm882
        %vm955 = vmand %vm919, %vm883
        %vm956 = vmand %vm920, %vm884
        %vm957 = vmand %vm921, %vm885
        %vm958 = vmand %vm922, %vm886
        %vm959 = vmand %vm923, %vm887
        %vm960 = vmand %vm924, %vm888
        %vm961 = vmand %vm925, %vm889
        %vm962 = vmand %vm926, %vm890
        %vm963 = vmand %vm927, %vm891
        %vm964 = vmand %vm928, %vm892
        %vm965 = vmand %vm929, %vm893
        %vm966 = vmand %vm930, %vm894
        %vm967 = vmand %vm931, %vm895
        %vm968 = vmand %vm932, %vm896
        %vm969 = vmand %vm933, %vm897
        %vm970 = vmand %vm934, %vm898
        %vm971 = vmand %vm935, %vm899
        %vm972 = vmand %vm936, %vm900
        %vm973 = vmand %vm937, %vm901
        %vm974 = vmand %vm938, %vm902
        %vm975 = vmand %vm939, %vm903
        %vm976 = vmand %vm940, %vm904
        %vm977 = vmand %vm941, %vm905
        %vm978 = vmand %vm942, %vm906
        %vm979 = vmand %vm943, %vm907
        %vm980 = vmand %vm944, %vm908
        %vm981 = vmand %vm945, %vm909
        %vm982 = vmand %vm946, %vm910
        %vm983 = vmand %vm947, %vm911
        %vm984 = vmand %vm948, %vm912
        %vm985 = vmand %vm949, %vm913
        %v986 = vadd.s32 %v632, 16
        %v987 = vadd.s32 %v639, 16
        %v988 = vadd.s32 %v646, 16
        %v989 = vadd.s32 %v653, 16
        %v990 = vadd.s32 %v660, 16
        %v991 = vadd.s32 %v667, 16
        %v992 = vadd.s32 %v674, 16
        %v993 = vadd.s32 %v681, 16
        %v994 = vadd.s32 %v688, 16
        %v995 = vadd.s32 %v695, 16
        %v996 = vadd.s32 %v702, 16
        %v997 = vadd.s32 %v709, 16
        %v998 = vadd.s32 %v716, 16
        %v999 = vadd.s32 %v723, 16
        %v1000 = vadd.s32 %v730, 16
        %v1001 = vadd.s32 %v737, 16
        %v1002 = vadd.s32 %v744, 16
        %v1003 = vadd.s32 %v751, 16
        %v1004 = vadd.s32 %v758, 16
        %v1005 = vadd.s32 %v765, 16
        %v1006 = vadd.s32 %v772, 16
        %v1007 = vadd.s32 %v779, 16
        %v1008 = vadd.s32 %v786, 16
        %v1009 = vadd.s32 %v793, 16
        %v1010 = vadd.s32 %v800, 16
        %v1011 = vadd.s32 %v807, 16
        %v1012 = vadd.s32 %v814, 16
        %v1013 = vadd.s32 %v821, 16
        %v1014 = vadd.s32 %v828, 16
        %v1015 = vadd.s32 %v835, 16
        %v1016 = vadd.s32 %v842, 16
        %v1017 = vadd.s32 %v849, 16
        %v1018 = vadd.s32 %v856, 16
        %v1019 = vadd.s32 %v863, 16
        %v1020 = vadd.s32 %v870, 16
        %v1021 = vadd.s32 %v877, 16
        %v1022 = vsel %vm950, %v986, %v632
        %v1023 = vsel %vm951, %v987, %v639
        %v1024 = vsel %vm952, %v988, %v646
        %v1025 = vsel %vm953, %v989, %v653
        %v1026 = vsel %vm954, %v990, %v660
        %v1027 = vsel %vm955, %v991, %v667
        %v1028 = vsel %vm956, %v992, %v674
        %v1029 = vsel %vm957, %v993, %v681
        %v1030 = vsel %vm958, %v994, %v688
        %v1031 = vsel %vm959, %v995, %v695
        %v1032 = vsel %vm960, %v996, %v702
        %v1033 = vsel %vm961, %v997, %v709
        %v1034 = vsel %vm962, %v998, %v716
        %v1035 = vsel %vm963, %v999, %v723
        %v1036 = vsel %vm964, %v1000, %v730
        %v1037 = vsel %vm965, %v1001, %v737
        %v1038 = vsel %vm966, %v1002, %v744
        %v1039 = vsel %vm967, %v1003, %v751
        %v1040 = vsel %vm968, %v1004, %v758
        %v1041 = vsel %vm969, %v1005, %v765
        %v1042 = vsel %vm970, %v1006, %v772
        %v1043 = vsel %vm971, %v1007, %v779
        %v1044 = vsel %vm972, %v1008, %v786
        %v1045 = vsel %vm973, %v1009, %v793
        %v1046 = vsel %vm974, %v1010, %v800
        %v1047 = vsel %vm975, %v1011, %v807
        %v1048 = vsel %vm976, %v1012, %v814
        %v1049 = vsel %vm977, %v1013, %v821
        %v1050 = vsel %vm978, %v1014, %v828
        %v1051 = vsel %vm979, %v1015, %v835
        %v1052 = vsel %vm980, %v1016, %v842
        %v1053 = vsel %vm981, %v1017, %v849
        %v1054 = vsel %vm982, %v1018, %v856
        %v1055 = vsel %vm983, %v1019, %v863
        %v1056 = vsel %vm984, %v1020, %v870
        %v1057 = vsel %vm985, %v1021, %v877
        %vm1058 = vcmp.eq.s32.totalorder %v1022, 0
        %vm1059 = vcmp.eq.s32.totalorder %v1023, 0
        %vm1060 = vcmp.eq.s32.totalorder %v1024, 0
        %vm1061 = vcmp.eq.s32.totalorder %v1025, 0
        %vm1062 = vcmp.eq.s32.totalorder %v1026, 0
        %vm1063 = vcmp.eq.s32.totalorder %v1027, 0
        %vm1064 = vcmp.eq.s32.totalorder %v1028, 0
        %vm1065 = vcmp.eq.s32.totalorder %v1029, 0
        %vm1066 = vcmp.eq.s32.totalorder %v1030, 0
        %vm1067 = vcmp.eq.s32.totalorder %v1031, 0
        %vm1068 = vcmp.eq.s32.totalorder %v1032, 0
        %vm1069 = vcmp.eq.s32.totalorder %v1033, 0
        %vm1070 = vcmp.eq.s32.totalorder %v1034, 0
        %vm1071 = vcmp.eq.s32.totalorder %v1035, 0
        %vm1072 = vcmp.eq.s32.totalorder %v1036, 0
        %vm1073 = vcmp.eq.s32.totalorder %v1037, 0
        %vm1074 = vcmp.eq.s32.totalorder %v1038, 0
        %vm1075 = vcmp.eq.s32.totalorder %v1039, 0
        %vm1076 = vcmp.eq.s32.totalorder %v1040, 0
        %vm1077 = vcmp.eq.s32.totalorder %v1041, 0
        %vm1078 = vcmp.eq.s32.totalorder %v1042, 0
        %vm1079 = vcmp.eq.s32.totalorder %v1043, 0
        %vm1080 = vcmp.eq.s32.totalorder %v1044, 0
        %vm1081 = vcmp.eq.s32.totalorder %v1045, 0
        %vm1082 = vcmp.eq.s32.totalorder %v1046, 0
        %vm1083 = vcmp.eq.s32.totalorder %v1047, 0
        %vm1084 = vcmp.eq.s32.totalorder %v1048, 0
        %vm1085 = vcmp.eq.s32.totalorder %v1049, 0
        %vm1086 = vcmp.eq.s32.totalorder %v1050, 0
        %vm1087 = vcmp.eq.s32.totalorder %v1051, 0
        %vm1088 = vcmp.eq.s32.totalorder %v1052, 0
        %vm1089 = vcmp.eq.s32.totalorder %v1053, 0
        %vm1090 = vcmp.eq.s32.totalorder %v1054, 0
        %vm1091 = vcmp.eq.s32.totalorder %v1055, 0
        %vm1092 = vcmp.eq.s32.totalorder %v1056, 0
        %vm1093 = vcmp.eq.s32.totalorder %v1057, 0
        %v1094 = vrot.slane %v557, 7
        %v1095 = vrot.slane %v558, 7
        %v1096 = vrot.slane %v559, 7
        %v1097 = vrot.slane %v560, 7
        %v1098 = vrot.slane %v561, 7
        %v1099 = vrot.slane %v562, 7
        %v1100 = vrot.slane %v563, 7
        %v1101 = vrot.slane %v564, 7
        %v1102 = vrot.slane %v565, 7
        %v1103 = vrot.slane %v566, 7
        %v1104 = vrot.slane %v567, 7
        %v1105 = vrot.slane %v568, 7
        %v1106 = vrot.slane %v569, 7
        %v1107 = vrot.slane %v570, 7
        %v1108 = vrot.slane %v571, 7
        %v1109 = vrot.slane %v572, 7
        %v1110 = vrot.slane %v573, 7
        %v1111 = vrot.slane %v574, 7
        %v1112 = vrot.slane %v575, 7
        %v1113 = vrot.slane %v576, 7
        %v1114 = vrot.slane %v577, 7
        %v1115 = vrot.slane %v578, 7
        %v1116 = vrot.slane %v579, 7
        %v1117 = vrot.slane %v580, 7
        %v1118 = vrot.slane %v581, 7
        %v1119 = vrot.slane %v582, 7
        %v1120 = vrot.slane %v583, 7
        %v1121 = vrot.slane %v584, 7
        %v1122 = vrot.slane %v585, 7
        %v1123 = vrot.slane %v586, 7
        %v1124 = vrot.slane %v587, 7
        %v1125 = vrot.slane %v588, 7
        %vm1126 = vcmp.lt.s32.totalorder %v590, 1
        %v1127 = vsel %vm1126, %v1125, 0.0
        %v1128 = vsel %vm1126, %v1124, %v1125
        %v1129 = vsel %vm1126, %v1123, %v1124
        %v1130 = vsel %vm1126, %v1122, %v1123
        %v1131 = vsel %vm1126, %v1121, %v1122
        %v1132 = vsel %vm1126, %v1120, %v1121
        %v1133 = vsel %vm1126, %v1119, %v1120
        %v1134 = vsel %vm1126, %v1118, %v1119
        %v1135 = vsel %vm1126, %v1117, %v1118
        %v1136 = vsel %vm1126, %v1116, %v1117
        %v1137 = vsel %vm1126, %v1115, %v1116
        %v1138 = vsel %vm1126, %v1114, %v1115
        %v1139 = vsel %vm1126, %v1113, %v1114
        %v1140 = vsel %vm1126, %v1112, %v1113
        %v1141 = vsel %vm1126, %v1111, %v1112
        %v1142 = vsel %vm1126, %v1110, %v1111
        %v1143 = vsel %vm1126, %v1109, %v1110
        %v1144 = vsel %vm1126, %v1108, %v1109
        %v1145 = vsel %vm1126, %v1107, %v1108
        %v1146 = vsel %vm1126, %v1106, %v1107
        %v1147 = vsel %vm1126, %v1105, %v1106
        %v1148 = vsel %vm1126, %v1104, %v1105
        %v1149 = vsel %vm1126, %v1103, %v1104
        %v1150 = vsel %vm1126, %v1102, %v1103
        %v1151 = vsel %vm1126, %v1101, %v1102
        %v1152 = vsel %vm1126, %v1100, %v1101
        %v1153 = vsel %vm1126, %v1099, %v1100
        %v1154 = vsel %vm1126, %v1098, %v1099
        %v1155 = vsel %vm1126, %v1097, %v1098
        %v1156 = vsel %vm1126, %v1096, %v1097
        %v1157 = vsel %vm1126, %v1095, %v1096
        %v1158 = vsel %vm1126, %v1094, %v1095
        %v1159 = vsel %vm1126, 0.0, %v1094
        %v1160 = vsel %vm1058, 1, 0
        %v1161 = vsel %vm1059, 1, 0
        %v1162 = vsel %vm1060, 1, 0
        %v1163 = vsel %vm1061, 1, 0
        %v1164 = vsel %vm1062, 1, 0
        %v1165 = vsel %vm1063, 1, 0
        %v1166 = vsel %vm1064, 1, 0
        %v1167 = vsel %vm1065, 1, 0
        %v1168 = vsel %vm1066, 1, 0
        %v1169 = vsel %vm1067, 1, 0
        %v1170 = vsel %vm1068, 1, 0
        %v1171 = vsel %vm1069, 1, 0
        %v1172 = vsel %vm1070, 1, 0
        %v1173 = vsel %vm1071, 1, 0
        %v1174 = vsel %vm1072, 1, 0
        %v1175 = vsel %vm1073, 1, 0
        %v1176 = vsel %vm1074, 1, 0
        %v1177 = vsel %vm1075, 1, 0
        %v1178 = vsel %vm1076, 1, 0
        %v1179 = vsel %vm1077, 1, 0
        %v1180 = vsel %vm1078, 1, 0
        %v1181 = vsel %vm1079, 1, 0
        %v1182 = vsel %vm1080, 1, 0
        %v1183 = vsel %vm1081, 1, 0
        %v1184 = vsel %vm1082, 1, 0
        %v1185 = vsel %vm1083, 1, 0
        %v1186 = vsel %vm1084, 1, 0
        %v1187 = vsel %vm1085, 1, 0
        %v1188 = vsel %vm1086, 1, 0
        %v1189 = vsel %vm1087, 1, 0
        %v1190 = vsel %vm1088, 1, 0
        %v1191 = vsel %vm1089, 1, 0
        %v1192 = vsel %vm1090, 1, 0
        %v1193 = vsel %vm1091, 1, 0
        %v1194 = vsel %vm1092, 1, 0
        %v1195 = vsel %vm1093, 1, 0
        %vm1196 = vcmp.eq.s32.totalorder %v1160, 1
        %vm1197 = vcmp.eq.s32.totalorder %v1161, 1
        %vm1198 = vcmp.eq.s32.totalorder %v1162, 1
        %vm1199 = vcmp.eq.s32.totalorder %v1163, 1
        %vm1200 = vcmp.eq.s32.totalorder %v1164, 1
        %vm1201 = vcmp.eq.s32.totalorder %v1165, 1
        %vm1202 = vcmp.eq.s32.totalorder %v1166, 1
        %vm1203 = vcmp.eq.s32.totalorder %v1167, 1
        %vm1204 = vcmp.eq.s32.totalorder %v1168, 1
        %vm1205 = vcmp.eq.s32.totalorder %v1169, 1
        %vm1206 = vcmp.eq.s32.totalorder %v1170, 1
        %vm1207 = vcmp.eq.s32.totalorder %v1171, 1
        %vm1208 = vcmp.eq.s32.totalorder %v1172, 1
        %vm1209 = vcmp.eq.s32.totalorder %v1173, 1
        %vm1210 = vcmp.eq.s32.totalorder %v1174, 1
        %vm1211 = vcmp.eq.s32.totalorder %v1175, 1
        %vm1212 = vcmp.eq.s32.totalorder %v1176, 1
        %vm1213 = vcmp.eq.s32.totalorder %v1177, 1
        %vm1214 = vcmp.eq.s32.totalorder %v1178, 1
        %vm1215 = vcmp.eq.s32.totalorder %v1179, 1
        %vm1216 = vcmp.eq.s32.totalorder %v1180, 1
        %vm1217 = vcmp.eq.s32.totalorder %v1181, 1
        %vm1218 = vcmp.eq.s32.totalorder %v1182, 1
        %vm1219 = vcmp.eq.s32.totalorder %v1183, 1
        %vm1220 = vcmp.eq.s32.totalorder %v1184, 1
        %vm1221 = vcmp.eq.s32.totalorder %v1185, 1
        %vm1222 = vcmp.eq.s32.totalorder %v1186, 1
        %vm1223 = vcmp.eq.s32.totalorder %v1187, 1
        %vm1224 = vcmp.eq.s32.totalorder %v1188, 1
        %vm1225 = vcmp.eq.s32.totalorder %v1189, 1
        %vm1226 = vcmp.eq.s32.totalorder %v1190, 1
        %vm1227 = vcmp.eq.s32.totalorder %v1191, 1
        %vm1228 = vcmp.eq.s32.totalorder %v1192, 1
        %vm1229 = vcmp.eq.s32.totalorder %v1193, 1
        %vm1230 = vcmp.eq.s32.totalorder %v1194, 1
        %vm1231 = vcmp.eq.s32.totalorder %v1195, 1
        %v1232 = vsel %vm1196, 0.0, 0.0
        %v1233 = vsel %vm1197, 0.0, 0.0
        %v1234 = vsel %vm1198, 0.0, %v1159
        %v1235 = vsel %vm1199, 0.0, %v1158
        %v1236 = vsel %vm1200, 0.0, %v1157
        %v1237 = vsel %vm1201, 0.0, %v1156
        %v1238 = vsel %vm1202, 0.0, %v1155
        %v1239 = vsel %vm1203, 0.0, %v1154
        %v1240 = vsel %vm1204, 0.0, %v1153
        %v1241 = vsel %vm1205, 0.0, %v1152
        %v1242 = vsel %vm1206, 0.0, %v1151
        %v1243 = vsel %vm1207, 0.0, %v1150
        %v1244 = vsel %vm1208, 0.0, %v1149
        %v1245 = vsel %vm1209, 0.0, %v1148
        %v1246 = vsel %vm1210, 0.0, %v1147
        %v1247 = vsel %vm1211, 0.0, %v1146
        %v1248 = vsel %vm1212, 0.0, %v1145
        %v1249 = vsel %vm1213, 0.0, %v1144
        %v1250 = vsel %vm1214, 0.0, %v1143
        %v1251 = vsel %vm1215, 0.0, %v1142
        %v1252 = vsel %vm1216, 0.0, %v1141
        %v1253 = vsel %vm1217, 0.0, %v1140
        %v1254 = vsel %vm1218, 0.0, %v1139
        %v1255 = vsel %vm1219, 0.0, %v1138
        %v1256 = vsel %vm1220, 0.0, %v1137
        %v1257 = vsel %vm1221, 0.0, %v1136
        %v1258 = vsel %vm1222, 0.0, %v1135
        %v1259 = vsel %vm1223, 0.0, %v1134
        %v1260 = vsel %vm1224, 0.0, %v1133
        %v1261 = vsel %vm1225, 0.0, %v1132
        %v1262 = vsel %vm1226, 0.0, %v1131
        %v1263 = vsel %vm1227, 0.0, %v1130
        %v1264 = vsel %vm1228, 0.0, %v1129
        %v1265 = vsel %vm1229, 0.0, %v1128
        %v1266 = vsel %vm1230, 0.0, %v1127
        %v1267 = vsel %vm1231, 0.0, 0.0
        %vm1268 = vcmp.eq.s32.totalorder %v1022, 15
        %vm1269 = vcmp.eq.s32.totalorder %v1023, 15
        %vm1270 = vcmp.eq.s32.totalorder %v1024, 15
        %vm1271 = vcmp.eq.s32.totalorder %v1025, 15
        %vm1272 = vcmp.eq.s32.totalorder %v1026, 15
        %vm1273 = vcmp.eq.s32.totalorder %v1027, 15
        %vm1274 = vcmp.eq.s32.totalorder %v1028, 15
        %vm1275 = vcmp.eq.s32.totalorder %v1029, 15
        %vm1276 = vcmp.eq.s32.totalorder %v1030, 15
        %vm1277 = vcmp.eq.s32.totalorder %v1031, 15
        %vm1278 = vcmp.eq.s32.totalorder %v1032, 15
        %vm1279 = vcmp.eq.s32.totalorder %v1033, 15
        %vm1280 = vcmp.eq.s32.totalorder %v1034, 15
        %vm1281 = vcmp.eq.s32.totalorder %v1035, 15
        %vm1282 = vcmp.eq.s32.totalorder %v1036, 15
        %vm1283 = vcmp.eq.s32.totalorder %v1037, 15
        %vm1284 = vcmp.eq.s32.totalorder %v1038, 15
        %vm1285 = vcmp.eq.s32.totalorder %v1039, 15
        %vm1286 = vcmp.eq.s32.totalorder %v1040, 15
        %vm1287 = vcmp.eq.s32.totalorder %v1041, 15
        %vm1288 = vcmp.eq.s32.totalorder %v1042, 15
        %vm1289 = vcmp.eq.s32.totalorder %v1043, 15
        %vm1290 = vcmp.eq.s32.totalorder %v1044, 15
        %vm1291 = vcmp.eq.s32.totalorder %v1045, 15
        %vm1292 = vcmp.eq.s32.totalorder %v1046, 15
        %vm1293 = vcmp.eq.s32.totalorder %v1047, 15
        %vm1294 = vcmp.eq.s32.totalorder %v1048, 15
        %vm1295 = vcmp.eq.s32.totalorder %v1049, 15
        %vm1296 = vcmp.eq.s32.totalorder %v1050, 15
        %vm1297 = vcmp.eq.s32.totalorder %v1051, 15
        %vm1298 = vcmp.eq.s32.totalorder %v1052, 15
        %vm1299 = vcmp.eq.s32.totalorder %v1053, 15
        %vm1300 = vcmp.eq.s32.totalorder %v1054, 15
        %vm1301 = vcmp.eq.s32.totalorder %v1055, 15
        %vm1302 = vcmp.eq.s32.totalorder %v1056, 15
        %vm1303 = vcmp.eq.s32.totalorder %v1057, 15
        %v1304 = vrot.slane %v557, 1
        %v1305 = vrot.slane %v558, 1
        %v1306 = vrot.slane %v559, 1
        %v1307 = vrot.slane %v560, 1
        %v1308 = vrot.slane %v561, 1
        %v1309 = vrot.slane %v562, 1
        %v1310 = vrot.slane %v563, 1
        %v1311 = vrot.slane %v564, 1
        %v1312 = vrot.slane %v565, 1
        %v1313 = vrot.slane %v566, 1
        %v1314 = vrot.slane %v567, 1
        %v1315 = vrot.slane %v568, 1
        %v1316 = vrot.slane %v569, 1
        %v1317 = vrot.slane %v570, 1
        %v1318 = vrot.slane %v571, 1
        %v1319 = vrot.slane %v572, 1
        %v1320 = vrot.slane %v573, 1
        %v1321 = vrot.slane %v574, 1
        %v1322 = vrot.slane %v575, 1
        %v1323 = vrot.slane %v576, 1
        %v1324 = vrot.slane %v577, 1
        %v1325 = vrot.slane %v578, 1
        %v1326 = vrot.slane %v579, 1
        %v1327 = vrot.slane %v580, 1
        %v1328 = vrot.slane %v581, 1
        %v1329 = vrot.slane %v582, 1
        %v1330 = vrot.slane %v583, 1
        %v1331 = vrot.slane %v584, 1
        %v1332 = vrot.slane %v585, 1
        %v1333 = vrot.slane %v586, 1
        %v1334 = vrot.slane %v587, 1
        %v1335 = vrot.slane %v588, 1
        %vm1336 = vcmp.lt.s32.totalorder %v590, 7
        %v1337 = vsel %vm1336, %v1335, 0.0
        %v1338 = vsel %vm1336, %v1334, %v1335
        %v1339 = vsel %vm1336, %v1333, %v1334
        %v1340 = vsel %vm1336, %v1332, %v1333
        %v1341 = vsel %vm1336, %v1331, %v1332
        %v1342 = vsel %vm1336, %v1330, %v1331
        %v1343 = vsel %vm1336, %v1329, %v1330
        %v1344 = vsel %vm1336, %v1328, %v1329
        %v1345 = vsel %vm1336, %v1327, %v1328
        %v1346 = vsel %vm1336, %v1326, %v1327
        %v1347 = vsel %vm1336, %v1325, %v1326
        %v1348 = vsel %vm1336, %v1324, %v1325
        %v1349 = vsel %vm1336, %v1323, %v1324
        %v1350 = vsel %vm1336, %v1322, %v1323
        %v1351 = vsel %vm1336, %v1321, %v1322
        %v1352 = vsel %vm1336, %v1320, %v1321
        %v1353 = vsel %vm1336, %v1319, %v1320
        %v1354 = vsel %vm1336, %v1318, %v1319
        %v1355 = vsel %vm1336, %v1317, %v1318
        %v1356 = vsel %vm1336, %v1316, %v1317
        %v1357 = vsel %vm1336, %v1315, %v1316
        %v1358 = vsel %vm1336, %v1314, %v1315
        %v1359 = vsel %vm1336, %v1313, %v1314
        %v1360 = vsel %vm1336, %v1312, %v1313
        %v1361 = vsel %vm1336, %v1311, %v1312
        %v1362 = vsel %vm1336, %v1310, %v1311
        %v1363 = vsel %vm1336, %v1309, %v1310
        %v1364 = vsel %vm1336, %v1308, %v1309
        %v1365 = vsel %vm1336, %v1307, %v1308
        %v1366 = vsel %vm1336, %v1306, %v1307
        %v1367 = vsel %vm1336, %v1305, %v1306
        %v1368 = vsel %vm1336, %v1304, %v1305
        %v1369 = vsel %vm1336, 0.0, %v1304
        %v1370 = vsel %vm1268, 1, 0
        %v1371 = vsel %vm1269, 1, 0
        %v1372 = vsel %vm1270, 1, 0
        %v1373 = vsel %vm1271, 1, 0
        %v1374 = vsel %vm1272, 1, 0
        %v1375 = vsel %vm1273, 1, 0
        %v1376 = vsel %vm1274, 1, 0
        %v1377 = vsel %vm1275, 1, 0
        %v1378 = vsel %vm1276, 1, 0
        %v1379 = vsel %vm1277, 1, 0
        %v1380 = vsel %vm1278, 1, 0
        %v1381 = vsel %vm1279, 1, 0
        %v1382 = vsel %vm1280, 1, 0
        %v1383 = vsel %vm1281, 1, 0
        %v1384 = vsel %vm1282, 1, 0
        %v1385 = vsel %vm1283, 1, 0
        %v1386 = vsel %vm1284, 1, 0
        %v1387 = vsel %vm1285, 1, 0
        %v1388 = vsel %vm1286, 1, 0
        %v1389 = vsel %vm1287, 1, 0
        %v1390 = vsel %vm1288, 1, 0
        %v1391 = vsel %vm1289, 1, 0
        %v1392 = vsel %vm1290, 1, 0
        %v1393 = vsel %vm1291, 1, 0
        %v1394 = vsel %vm1292, 1, 0
        %v1395 = vsel %vm1293, 1, 0
        %v1396 = vsel %vm1294, 1, 0
        %v1397 = vsel %vm1295, 1, 0
        %v1398 = vsel %vm1296, 1, 0
        %v1399 = vsel %vm1297, 1, 0
        %v1400 = vsel %vm1298, 1, 0
        %v1401 = vsel %vm1299, 1, 0
        %v1402 = vsel %vm1300, 1, 0
        %v1403 = vsel %vm1301, 1, 0
        %v1404 = vsel %vm1302, 1, 0
        %v1405 = vsel %vm1303, 1, 0
        %vm1406 = vcmp.eq.s32.totalorder %v1370, 1
        %vm1407 = vcmp.eq.s32.totalorder %v1371, 1
        %vm1408 = vcmp.eq.s32.totalorder %v1372, 1
        %vm1409 = vcmp.eq.s32.totalorder %v1373, 1
        %vm1410 = vcmp.eq.s32.totalorder %v1374, 1
        %vm1411 = vcmp.eq.s32.totalorder %v1375, 1
        %vm1412 = vcmp.eq.s32.totalorder %v1376, 1
        %vm1413 = vcmp.eq.s32.totalorder %v1377, 1
        %vm1414 = vcmp.eq.s32.totalorder %v1378, 1
        %vm1415 = vcmp.eq.s32.totalorder %v1379, 1
        %vm1416 = vcmp.eq.s32.totalorder %v1380, 1
        %vm1417 = vcmp.eq.s32.totalorder %v1381, 1
        %vm1418 = vcmp.eq.s32.totalorder %v1382, 1
        %vm1419 = vcmp.eq.s32.totalorder %v1383, 1
        %vm1420 = vcmp.eq.s32.totalorder %v1384, 1
        %vm1421 = vcmp.eq.s32.totalorder %v1385, 1
        %vm1422 = vcmp.eq.s32.totalorder %v1386, 1
        %vm1423 = vcmp.eq.s32.totalorder %v1387, 1
        %vm1424 = vcmp.eq.s32.totalorder %v1388, 1
        %vm1425 = vcmp.eq.s32.totalorder %v1389, 1
        %vm1426 = vcmp.eq.s32.totalorder %v1390, 1
        %vm1427 = vcmp.eq.s32.totalorder %v1391, 1
        %vm1428 = vcmp.eq.s32.totalorder %v1392, 1
        %vm1429 = vcmp.eq.s32.totalorder %v1393, 1
        %vm1430 = vcmp.eq.s32.totalorder %v1394, 1
        %vm1431 = vcmp.eq.s32.totalorder %v1395, 1
        %vm1432 = vcmp.eq.s32.totalorder %v1396, 1
        %vm1433 = vcmp.eq.s32.totalorder %v1397, 1
        %vm1434 = vcmp.eq.s32.totalorder %v1398, 1
        %vm1435 = vcmp.eq.s32.totalorder %v1399, 1
        %vm1436 = vcmp.eq.s32.totalorder %v1400, 1
        %vm1437 = vcmp.eq.s32.totalorder %v1401, 1
        %vm1438 = vcmp.eq.s32.totalorder %v1402, 1
        %vm1439 = vcmp.eq.s32.totalorder %v1403, 1
        %vm1440 = vcmp.eq.s32.totalorder %v1404, 1
        %vm1441 = vcmp.eq.s32.totalorder %v1405, 1
        %v1442 = vsel %vm1406, 0.0, 0.0
        %v1443 = vsel %vm1407, 0.0, %v1369
        %v1444 = vsel %vm1408, 0.0, %v1368
        %v1445 = vsel %vm1409, 0.0, %v1367
        %v1446 = vsel %vm1410, 0.0, %v1366
        %v1447 = vsel %vm1411, 0.0, %v1365
        %v1448 = vsel %vm1412, 0.0, %v1364
        %v1449 = vsel %vm1413, 0.0, %v1363
        %v1450 = vsel %vm1414, 0.0, %v1362
        %v1451 = vsel %vm1415, 0.0, %v1361
        %v1452 = vsel %vm1416, 0.0, %v1360
        %v1453 = vsel %vm1417, 0.0, %v1359
        %v1454 = vsel %vm1418, 0.0, %v1358
        %v1455 = vsel %vm1419, 0.0, %v1357
        %v1456 = vsel %vm1420, 0.0, %v1356
        %v1457 = vsel %vm1421, 0.0, %v1355
        %v1458 = vsel %vm1422, 0.0, %v1354
        %v1459 = vsel %vm1423, 0.0, %v1353
        %v1460 = vsel %vm1424, 0.0, %v1352
        %v1461 = vsel %vm1425, 0.0, %v1351
        %v1462 = vsel %vm1426, 0.0, %v1350
        %v1463 = vsel %vm1427, 0.0, %v1349
        %v1464 = vsel %vm1428, 0.0, %v1348
        %v1465 = vsel %vm1429, 0.0, %v1347
        %v1466 = vsel %vm1430, 0.0, %v1346
        %v1467 = vsel %vm1431, 0.0, %v1345
        %v1468 = vsel %vm1432, 0.0, %v1344
        %v1469 = vsel %vm1433, 0.0, %v1343
        %v1470 = vsel %vm1434, 0.0, %v1342
        %v1471 = vsel %vm1435, 0.0, %v1341
        %v1472 = vsel %vm1436, 0.0, %v1340
        %v1473 = vsel %vm1437, 0.0, %v1339
        %v1474 = vsel %vm1438, 0.0, %v1338
        %v1475 = vsel %vm1439, 0.0, %v1337
        %v1476 = vsel %vm1440, 0.0, 0.0
        %v1477 = vsel %vm1441, 0.0, 0.0
        %1511 = vrot.lane.b32.xlu0 0.0, 32
        %v1512 = vpop.permute.xlu0 %1511
        %1513 = vrot.lane.b32.xlu0 %v557, 32
        %v1514 = vpop.permute.xlu0 %1513
        %1515 = vrot.lane.b32.xlu0 %v558, 32
        %v1516 = vpop.permute.xlu0 %1515
        %1517 = vrot.lane.b32.xlu0 %v559, 32
        %v1518 = vpop.permute.xlu0 %1517
        %1519 = vrot.lane.b32.xlu0 %v560, 32
        %v1520 = vpop.permute.xlu0 %1519
        %1521 = vrot.lane.b32.xlu0 %v561, 32
        %v1522 = vpop.permute.xlu0 %1521
        %1523 = vrot.lane.b32.xlu0 %v562, 32
        %v1524 = vpop.permute.xlu0 %1523
        %1525 = vrot.lane.b32.xlu0 %v563, 32
        %v1526 = vpop.permute.xlu0 %1525
        %1527 = vrot.lane.b32.xlu0 %v564, 32
        %v1528 = vpop.permute.xlu0 %1527
        %1529 = vrot.lane.b32.xlu0 %v565, 32
        %v1530 = vpop.permute.xlu0 %1529
        %1531 = vrot.lane.b32.xlu0 %v566, 32
        %v1532 = vpop.permute.xlu0 %1531
        %1533 = vrot.lane.b32.xlu0 %v567, 32
        %v1534 = vpop.permute.xlu0 %1533
        %1535 = vrot.lane.b32.xlu0 %v568, 32
        %v1536 = vpop.permute.xlu0 %1535
        %1537 = vrot.lane.b32.xlu0 %v569, 32
        %v1538 = vpop.permute.xlu0 %1537
        %1539 = vrot.lane.b32.xlu0 %v570, 32
        %v1540 = vpop.permute.xlu0 %1539
        %1541 = vrot.lane.b32.xlu0 %v571, 32
        %v1542 = vpop.permute.xlu0 %1541
        %1543 = vrot.lane.b32.xlu0 %v572, 32
        %v1544 = vpop.permute.xlu0 %1543
        %1545 = vrot.lane.b32.xlu0 %v573, 32
        %v1546 = vpop.permute.xlu0 %1545
        %1547 = vrot.lane.b32.xlu0 %v574, 32
        %v1548 = vpop.permute.xlu0 %1547
        %1549 = vrot.lane.b32.xlu0 %v575, 32
        %v1550 = vpop.permute.xlu0 %1549
        %1551 = vrot.lane.b32.xlu0 %v576, 32
        %v1552 = vpop.permute.xlu0 %1551
        %1553 = vrot.lane.b32.xlu0 %v577, 32
        %v1554 = vpop.permute.xlu0 %1553
        %1555 = vrot.lane.b32.xlu0 %v578, 32
        %v1556 = vpop.permute.xlu0 %1555
        %1557 = vrot.lane.b32.xlu0 %v579, 32
        %v1558 = vpop.permute.xlu0 %1557
        %1559 = vrot.lane.b32.xlu0 %v580, 32
        %v1560 = vpop.permute.xlu0 %1559
        %1561 = vrot.lane.b32.xlu0 %v581, 32
        %v1562 = vpop.permute.xlu0 %1561
        %1563 = vrot.lane.b32.xlu0 %v582, 32
        %v1564 = vpop.permute.xlu0 %1563
        %1565 = vrot.lane.b32.xlu0 %v583, 32
        %v1566 = vpop.permute.xlu0 %1565
        %1567 = vrot.lane.b32.xlu0 %v584, 32
        %v1568 = vpop.permute.xlu0 %1567
        %1569 = vrot.lane.b32.xlu0 %v585, 32
        %v1570 = vpop.permute.xlu0 %1569
        %1571 = vrot.lane.b32.xlu0 %v586, 32
        %v1572 = vpop.permute.xlu0 %1571
        %1573 = vrot.lane.b32.xlu0 %v587, 32
        %v1574 = vpop.permute.xlu0 %1573
        %1575 = vrot.lane.b32.xlu0 %v588, 32
        %v1576 = vpop.permute.xlu0 %1575
        %1646 = vrot.lane.b32.xlu0 %v1442, 64
        %v1647 = vpop.permute.xlu0 %1646
        %1648 = vrot.lane.b32.xlu0 %v1443, 64
        %v1649 = vpop.permute.xlu0 %1648
        %1650 = vrot.lane.b32.xlu0 %v1444, 64
        %v1651 = vpop.permute.xlu0 %1650
        %1652 = vrot.lane.b32.xlu0 %v1445, 64
        %v1653 = vpop.permute.xlu0 %1652
        %1654 = vrot.lane.b32.xlu0 %v1446, 64
        %v1655 = vpop.permute.xlu0 %1654
        %1656 = vrot.lane.b32.xlu0 %v1447, 64
        %v1657 = vpop.permute.xlu0 %1656
        %1658 = vrot.lane.b32.xlu0 %v1448, 64
        %v1659 = vpop.permute.xlu0 %1658
        %1660 = vrot.lane.b32.xlu0 %v1449, 64
        %v1661 = vpop.permute.xlu0 %1660
        %1662 = vrot.lane.b32.xlu0 %v1450, 64
        %v1663 = vpop.permute.xlu0 %1662
        %1664 = vrot.lane.b32.xlu0 %v1451, 64
        %v1665 = vpop.permute.xlu0 %1664
        %1666 = vrot.lane.b32.xlu0 %v1452, 64
        %v1667 = vpop.permute.xlu0 %1666
        %1668 = vrot.lane.b32.xlu0 %v1453, 64
        %v1669 = vpop.permute.xlu0 %1668
        %1670 = vrot.lane.b32.xlu0 %v1454, 64
        %v1671 = vpop.permute.xlu0 %1670
        %1672 = vrot.lane.b32.xlu0 %v1455, 64
        %v1673 = vpop.permute.xlu0 %1672
        %1674 = vrot.lane.b32.xlu0 %v1456, 64
        %v1675 = vpop.permute.xlu0 %1674
        %1676 = vrot.lane.b32.xlu0 %v1457, 64
        %v1677 = vpop.permute.xlu0 %1676
        %1678 = vrot.lane.b32.xlu0 %v1458, 64
        %v1679 = vpop.permute.xlu0 %1678
        %1680 = vrot.lane.b32.xlu0 %v1459, 64
        %v1681 = vpop.permute.xlu0 %1680
        %1682 = vrot.lane.b32.xlu0 %v1460, 64
        %v1683 = vpop.permute.xlu0 %1682
        %1684 = vrot.lane.b32.xlu0 %v1461, 64
        %v1685 = vpop.permute.xlu0 %1684
        %1686 = vrot.lane.b32.xlu0 %v1462, 64
        %v1687 = vpop.permute.xlu0 %1686
        %1688 = vrot.lane.b32.xlu0 %v1463, 64
        %v1689 = vpop.permute.xlu0 %1688
        %1690 = vrot.lane.b32.xlu0 %v1464, 64
        %v1691 = vpop.permute.xlu0 %1690
        %1692 = vrot.lane.b32.xlu0 %v1465, 64
        %v1693 = vpop.permute.xlu0 %1692
        %1694 = vrot.lane.b32.xlu0 %v1466, 64
        %v1695 = vpop.permute.xlu0 %1694
        %1696 = vrot.lane.b32.xlu0 %v1467, 64
        %v1697 = vpop.permute.xlu0 %1696
        %1698 = vrot.lane.b32.xlu0 %v1468, 64
        %v1699 = vpop.permute.xlu0 %1698
        %1700 = vrot.lane.b32.xlu0 %v1469, 64
        %v1701 = vpop.permute.xlu0 %1700
        %1702 = vrot.lane.b32.xlu0 %v1470, 64
        %v1703 = vpop.permute.xlu0 %1702
        %1704 = vrot.lane.b32.xlu0 %v1471, 64
        %v1705 = vpop.permute.xlu0 %1704
        %1706 = vrot.lane.b32.xlu0 %v1472, 64
        %v1707 = vpop.permute.xlu0 %1706
        %1708 = vrot.lane.b32.xlu0 %v1473, 64
        %v1709 = vpop.permute.xlu0 %1708
        %1710 = vrot.lane.b32.xlu0 %v1474, 64
        %v1711 = vpop.permute.xlu0 %1710
        %1712 = vrot.lane.b32.xlu0 %v1475, 64
        %v1713 = vpop.permute.xlu0 %1712
        %1714 = vrot.lane.b32.xlu0 %v1476, 64
        %v1715 = vpop.permute.xlu0 %1714
        %1716 = vrot.lane.b32.xlu0 %v1477, 64
        %v1717 = vpop.permute.xlu0 %1716
        %vm1754 = vcmask 261120
        %v1755 = vsel %vm1754, %v1232, %v1512
        %v1756 = vsel %vm1754, %v1233, %v1512
        %v1757 = vsel %vm1754, %v1234, %v1514
        %v1758 = vsel %vm1754, %v1235, %v1516
        %v1759 = vsel %vm1754, %v1236, %v1518
        %v1760 = vsel %vm1754, %v1237, %v1520
        %v1761 = vsel %vm1754, %v1238, %v1522
        %v1762 = vsel %vm1754, %v1239, %v1524
        %v1763 = vsel %vm1754, %v1240, %v1526
        %v1764 = vsel %vm1754, %v1241, %v1528
        %v1765 = vsel %vm1754, %v1242, %v1530
        %v1766 = vsel %vm1754, %v1243, %v1532
        %v1767 = vsel %vm1754, %v1244, %v1534
        %v1768 = vsel %vm1754, %v1245, %v1536
        %v1769 = vsel %vm1754, %v1246, %v1538
        %v1770 = vsel %vm1754, %v1247, %v1540
        %v1771 = vsel %vm1754, %v1248, %v1542
        %v1772 = vsel %vm1754, %v1249, %v1544
        %v1773 = vsel %vm1754, %v1250, %v1546
        %v1774 = vsel %vm1754, %v1251, %v1548
        %v1775 = vsel %vm1754, %v1252, %v1550
        %v1776 = vsel %vm1754, %v1253, %v1552
        %v1777 = vsel %vm1754, %v1254, %v1554
        %v1778 = vsel %vm1754, %v1255, %v1556
        %v1779 = vsel %vm1754, %v1256, %v1558
        %v1780 = vsel %vm1754, %v1257, %v1560
        %v1781 = vsel %vm1754, %v1258, %v1562
        %v1782 = vsel %vm1754, %v1259, %v1564
        %v1783 = vsel %vm1754, %v1260, %v1566
        %v1784 = vsel %vm1754, %v1261, %v1568
        %v1785 = vsel %vm1754, %v1262, %v1570
        %v1786 = vsel %vm1754, %v1263, %v1572
        %v1787 = vsel %vm1754, %v1264, %v1574
        %v1788 = vsel %vm1754, %v1265, %v1576
        %v1789 = vsel %vm1754, %v1266, %v1512
        %v1790 = vsel %vm1754, %v1267, %v1512
        %vm1791 = vcmask 523264
        %v1792 = vsel %vm1791, %v1755, %v1647
        %v1793 = vsel %vm1791, %v1756, %v1649
        %v1794 = vsel %vm1791, %v1757, %v1651
        %v1795 = vsel %vm1791, %v1758, %v1653
        %v1796 = vsel %vm1791, %v1759, %v1655
        %v1797 = vsel %vm1791, %v1760, %v1657
        %v1798 = vsel %vm1791, %v1761, %v1659
        %v1799 = vsel %vm1791, %v1762, %v1661
        %v1800 = vsel %vm1791, %v1763, %v1663
        %v1801 = vsel %vm1791, %v1764, %v1665
        %v1802 = vsel %vm1791, %v1765, %v1667
        %v1803 = vsel %vm1791, %v1766, %v1669
        %v1804 = vsel %vm1791, %v1767, %v1671
        %v1805 = vsel %vm1791, %v1768, %v1673
        %v1806 = vsel %vm1791, %v1769, %v1675
        %v1807 = vsel %vm1791, %v1770, %v1677
        %v1808 = vsel %vm1791, %v1771, %v1679
        %v1809 = vsel %vm1791, %v1772, %v1681
        %v1810 = vsel %vm1791, %v1773, %v1683
        %v1811 = vsel %vm1791, %v1774, %v1685
        %v1812 = vsel %vm1791, %v1775, %v1687
        %v1813 = vsel %vm1791, %v1776, %v1689
        %v1814 = vsel %vm1791, %v1777, %v1691
        %v1815 = vsel %vm1791, %v1778, %v1693
        %v1816 = vsel %vm1791, %v1779, %v1695
        %v1817 = vsel %vm1791, %v1780, %v1697
        %v1818 = vsel %vm1791, %v1781, %v1699
        %v1819 = vsel %vm1791, %v1782, %v1701
        %v1820 = vsel %vm1791, %v1783, %v1703
        %v1821 = vsel %vm1791, %v1784, %v1705
        %v1822 = vsel %vm1791, %v1785, %v1707
        %v1823 = vsel %vm1791, %v1786, %v1709
        %v1824 = vsel %vm1791, %v1787, %v1711
        %v1825 = vsel %vm1791, %v1788, %v1713
        %v1826 = vsel %vm1791, %v1789, %v1715
        %v1827 = vsel %vm1791, %v1790, %v1717
        %v1828 = vld [vmem:[%s4] sm:$0x1]
        %v1829 = vld [vmem:[%s3] sm:$0xff]
        %v1830 = vld [vmem:[%s3 + $0x8] sm:$0xff]
        %v1831 = vld [vmem:[%s3 + $0x10] sm:$0xff]
        %v1832 = vld [vmem:[%s3 + $0x18] sm:$0xff]
        %v1833 = vld [vmem:[%s3 + $0x20] sm:$0xff]
        %v1834 = vld [vmem:[%s3 + $0x28] sm:$0xff]
        %v1835 = vld [vmem:[%s3 + $0x30] sm:$0xff]
        %v1836 = vld [vmem:[%s3 + $0x38] sm:$0xff]
        %v1837 = vld [vmem:[%s3 + $0x40] sm:$0xff]
        %v1838 = vld [vmem:[%s3 + $0x48] sm:$0xff]
        %v1839 = vld [vmem:[%s3 + $0x50] sm:$0xff]
        %v1840 = vld [vmem:[%s3 + $0x58] sm:$0xff]
        %vm1841 = vcmask 785408
        %v1843 = vsel %vm1841, %v1792, 0
        %v1846 = vsel %vm1841, %v1793, 0
        %v1849 = vsel %vm1841, %v1794, 0
        %v1852 = vsel %vm1841, %v1795, 0
        %v1855 = vsel %vm1841, %v1796, 0
        %v1858 = vsel %vm1841, %v1797, 0
        %v1861 = vsel %vm1841, %v1798, 0
        %v1864 = vsel %vm1841, %v1799, 0
        %v1867 = vsel %vm1841, %v1800, 0
        %v1870 = vsel %vm1841, %v1801, 0
        %v1873 = vsel %vm1841, %v1802, 0
        %v1876 = vsel %vm1841, %v1803, 0
        %v1879 = vsel %vm1841, %v1804, 0
        %v1882 = vsel %vm1841, %v1805, 0
        %v1885 = vsel %vm1841, %v1806, 0
        %v1888 = vsel %vm1841, %v1807, 0
        %v1891 = vsel %vm1841, %v1808, 0
        %v1894 = vsel %vm1841, %v1809, 0
        %v1897 = vsel %vm1841, %v1810, 0
        %v1900 = vsel %vm1841, %v1811, 0
        %v1903 = vsel %vm1841, %v1812, 0
        %v1906 = vsel %vm1841, %v1813, 0
        %v1909 = vsel %vm1841, %v1814, 0
        %v1912 = vsel %vm1841, %v1815, 0
        %v1915 = vsel %vm1841, %v1816, 0
        %v1918 = vsel %vm1841, %v1817, 0
        %v1921 = vsel %vm1841, %v1818, 0
        %v1924 = vsel %vm1841, %v1819, 0
        %v1927 = vsel %vm1841, %v1820, 0
        %v1930 = vsel %vm1841, %v1821, 0
        %v1933 = vsel %vm1841, %v1822, 0
        %v1936 = vsel %vm1841, %v1823, 0
        %1938 = vmatprep.subr.mxu0 0.0
        %1939 = vmatpush1.msra.mxu0 %v1829
        %1940 = vmatprep.subr.mxu0 0.0
        %1941 = vmatpush1.msra.mxu0 %v1830
        %1942 = vmatprep.subr.mxu0 0.0
        %1943 = vmatpush1.msra.mxu0 %v1831
        %1944 = vmatprep.subr.mxu0 0.0
        %1945 = vmatpush1.msra.mxu0 %v1832
        %1946 = vmatprep.subr.mxu0 0.0
        %1947 = vmatpush1.msra.mxu0 %v1833
        %1948 = vmatprep.subr.mxu0 0.0
        %1949 = vmatpush1.msra.mxu0 %v1834
        %1950 = vmatprep.subr.mxu0 0.0
        %1951 = vmatpush1.msra.mxu0 %v1835
        %1952 = vmatprep.subr.mxu0 0.0
        %1953 = vmatpush1.msra.mxu0 %v1836
        %1954 = vmatprep.subr.mxu0 0.0
        %1955 = vmatpush1.msra.mxu0 %v1837
        %1956 = vmatprep.subr.mxu0 0.0
        %1957 = vmatpush1.msra.mxu0 %v1838
        %1958 = vmatprep.subr.mxu0 0.0
        %1959 = vmatpush1.msra.mxu0 %v1839
        %1960 = vmatprep.subr.mxu0 0.0
        %1961 = vmatpush1.msra.mxu0 %v1840
        %1962 = vmatprep.subr.mxu0 0.0
        %1963 = vmatpush1.msra.mxu0 0.0
        %1964 = vmatprep.subr.mxu0 0.0
        %1965 = vmatpush1.msra.mxu0 0.0
        %1966 = vmatprep.subr.mxu0 0.0
        %1967 = vmatpush1.msra.mxu0 0.0
        %1968 = vmatprep.subr.mxu0 0.0
        %1969 = vmatpush1.msra.mxu0 0.0
        %1970 = vmatprep.subr.mxu0 0.0
        %1971 = vmatpush1.msra.mxu0 0.0
        %1972 = vmatprep.subr.mxu0 0.0
        %1973 = vmatpush1.msra.mxu0 0.0
        %1974 = vmatprep.subr.mxu0 0.0
        %1975 = vmatpush1.msra.mxu0 0.0
        %1976 = vmatprep.subr.mxu0 0.0
        %1977 = vmatpush1.msra.mxu0 0.0
        %1978 = vmatprep.subr.mxu0 0.0
        %1979 = vmatpush1.msra.mxu0 0.0
        %1980 = vmatprep.subr.mxu0 0.0
        %1981 = vmatpush1.msra.mxu0 0.0
        %1982 = vmatprep.subr.mxu0 0.0
        %1983 = vmatpush1.msra.mxu0 0.0
        %1984 = vmatprep.subr.mxu0 0.0
        %1985 = vmatpush1.msra.mxu0 0.0
        %1986 = vmatprep.subr.mxu0 0.0
        %1987 = vmatpush1.msra.mxu0 0.0
        %1988 = vmatprep.subr.mxu0 0.0
        %1989 = vmatpush1.msra.mxu0 0.0
        %1990 = vmatprep.subr.mxu0 0.0
        %1991 = vmatpush1.msra.mxu0 0.0
        %1992 = vmatprep.subr.mxu0 0.0
        %1993 = vmatpush1.msra.mxu0 0.0
        %1994 = vmatprep.subr.mxu0 0.0
        %1995 = vmatpush1.msra.mxu0 0.0
        %1996 = vmatprep.subr.mxu0 0.0
        %1997 = vmatpush1.msra.mxu0 0.0
        %1998 = vmatprep.subr.mxu0 0.0
        %1999 = vmatpush1.msra.mxu0 0.0
        %2000 = vmatprep.subr.mxu0 0.0
        %2001 = vmatpush1.msra.mxu0 0.0
        %2002 = vmatprep.mubr.f32.mxu0 0.0
        %2003 = vmatmul.mubr.f32.gmra.mrb[0].mxu0 %v1843
        %v2004 = vpop.f32.mrb[0].mxu0
        %v2005 = vadd.f32 0.0, %v2004
        %v2006 = vpop.f32.mrb[0].mxu0
        %2007 = vmatprep.mubr.f32.mxu0 0.0
        %2008 = vmatmul.mubr.f32.gmra.mrb[0].mxu0 %v1846
        %v2009 = vpop.f32.mrb[0].mxu0
        %v2010 = vadd.f32 0.0, %v2009
        %v2011 = vpop.f32.mrb[0].mxu0
        %2012 = vmatprep.mubr.f32.mxu0 0.0
        %2013 = vmatmul.mubr.f32.gmra.mrb[0].mxu0 %v1849
        %v2014 = vpop.f32.mrb[0].mxu0
        %v2015 = vadd.f32 0.0, %v2014
        %v2016 = vpop.f32.mrb[0].mxu0
        %2017 = vmatprep.mubr.f32.mxu0 0.0
        %2018 = vmatmul.mubr.f32.gmra.mrb[0].mxu0 %v1852
        %v2019 = vpop.f32.mrb[0].mxu0
        %v2020 = vadd.f32 0.0, %v2019
        %v2021 = vpop.f32.mrb[0].mxu0
        %2022 = vmatprep.mubr.f32.mxu0 0.0
        %2023 = vmatmul.mubr.f32.gmra.mrb[0].mxu0 %v1855
        %v2024 = vpop.f32.mrb[0].mxu0
        %v2025 = vadd.f32 0.0, %v2024
        %v2026 = vpop.f32.mrb[0].mxu0
        %2027 = vmatprep.mubr.f32.mxu0 0.0
        %2028 = vmatmul.mubr.f32.gmra.mrb[0].mxu0 %v1858
        %v2029 = vpop.f32.mrb[0].mxu0
        %v2030 = vadd.f32 0.0, %v2029
        %v2031 = vpop.f32.mrb[0].mxu0
        %2032 = vmatprep.mubr.f32.mxu0 0.0
        %2033 = vmatmul.mubr.f32.gmra.mrb[0].mxu0 %v1861
        %v2034 = vpop.f32.mrb[0].mxu0
        %v2035 = vadd.f32 0.0, %v2034
        %v2036 = vpop.f32.mrb[0].mxu0
        %2037 = vmatprep.mubr.f32.mxu0 0.0
        %2038 = vmatmul.mubr.f32.gmra.mrb[0].mxu0 %v1864
        %v2039 = vpop.f32.mrb[0].mxu0
        %v2040 = vadd.f32 0.0, %v2039
        %v2041 = vpop.f32.mrb[0].mxu0
        %2042 = vmatprep.mubr.f32.mxu0 0.0
        %2043 = vmatmul.mubr.f32.gmra.mrb[0].mxu0 %v1867
        %v2044 = vpop.f32.mrb[0].mxu0
        %v2045 = vadd.f32 0.0, %v2044
        %v2046 = vpop.f32.mrb[0].mxu0
        %2047 = vmatprep.mubr.f32.mxu0 0.0
        %2048 = vmatmul.mubr.f32.gmra.mrb[0].mxu0 %v1870
        %v2049 = vpop.f32.mrb[0].mxu0
        %v2050 = vadd.f32 0.0, %v2049
        %v2051 = vpop.f32.mrb[0].mxu0
        %2052 = vmatprep.mubr.f32.mxu0 0.0
        %2053 = vmatmul.mubr.f32.gmra.mrb[0].mxu0 %v1873
        %v2054 = vpop.f32.mrb[0].mxu0
        %v2055 = vadd.f32 0.0, %v2054
        %v2056 = vpop.f32.mrb[0].mxu0
        %2057 = vmatprep.mubr.f32.mxu0 0.0
        %2058 = vmatmul.mubr.f32.gmra.mrb[0].mxu0 %v1876
        %v2059 = vpop.f32.mrb[0].mxu0
        %v2060 = vadd.f32 0.0, %v2059
        %v2061 = vpop.f32.mrb[0].mxu0
        %2062 = vmatprep.mubr.f32.mxu0 0.0
        %2063 = vmatmul.mubr.f32.gmra.mrb[0].mxu0 %v1879
        %v2064 = vpop.f32.mrb[0].mxu0
        %v2065 = vadd.f32 0.0, %v2064
        %v2066 = vpop.f32.mrb[0].mxu0
        %2067 = vmatprep.mubr.f32.mxu0 0.0
        %2068 = vmatmul.mubr.f32.gmra.mrb[0].mxu0 %v1882
        %v2069 = vpop.f32.mrb[0].mxu0
        %v2070 = vadd.f32 0.0, %v2069
        %v2071 = vpop.f32.mrb[0].mxu0
        %2072 = vmatprep.mubr.f32.mxu0 0.0
        %2073 = vmatmul.mubr.f32.gmra.mrb[0].mxu0 %v1885
        %v2074 = vpop.f32.mrb[0].mxu0
        %v2075 = vadd.f32 0.0, %v2074
        %v2076 = vpop.f32.mrb[0].mxu0
        %2077 = vmatprep.mubr.f32.mxu0 0.0
        %2078 = vmatmul.mubr.f32.gmra.mrb[0].mxu0 %v1888
        %v2079 = vpop.f32.mrb[0].mxu0
        %v2080 = vadd.f32 0.0, %v2079
        %v2081 = vpop.f32.mrb[0].mxu0
        %2082 = vmatprep.mubr.f32.mxu0 0.0
        %2083 = vmatmul.mubr.f32.gmra.mrb[0].mxu0 %v1891
        %v2084 = vpop.f32.mrb[0].mxu0
        %v2085 = vadd.f32 0.0, %v2084
        %v2086 = vpop.f32.mrb[0].mxu0
        %2087 = vmatprep.mubr.f32.mxu0 0.0
        %2088 = vmatmul.mubr.f32.gmra.mrb[0].mxu0 %v1894
        %v2089 = vpop.f32.mrb[0].mxu0
        %v2090 = vadd.f32 0.0, %v2089
        %v2091 = vpop.f32.mrb[0].mxu0
        %2092 = vmatprep.mubr.f32.mxu0 0.0
        %2093 = vmatmul.mubr.f32.gmra.mrb[0].mxu0 %v1897
        %v2094 = vpop.f32.mrb[0].mxu0
        %v2095 = vadd.f32 0.0, %v2094
        %v2096 = vpop.f32.mrb[0].mxu0
        %2097 = vmatprep.mubr.f32.mxu0 0.0
        %2098 = vmatmul.mubr.f32.gmra.mrb[0].mxu0 %v1900
        %v2099 = vpop.f32.mrb[0].mxu0
        %v2100 = vadd.f32 0.0, %v2099
        %v2101 = vpop.f32.mrb[0].mxu0
        %2102 = vmatprep.mubr.f32.mxu0 0.0
        %2103 = vmatmul.mubr.f32.gmra.mrb[0].mxu0 %v1903
        %v2104 = vpop.f32.mrb[0].mxu0
        %v2105 = vadd.f32 0.0, %v2104
        %v2106 = vpop.f32.mrb[0].mxu0
        %2107 = vmatprep.mubr.f32.mxu0 0.0
        %2108 = vmatmul.mubr.f32.gmra.mrb[0].mxu0 %v1906
        %v2109 = vpop.f32.mrb[0].mxu0
        %v2110 = vadd.f32 0.0, %v2109
        %v2111 = vpop.f32.mrb[0].mxu0
        %2112 = vmatprep.mubr.f32.mxu0 0.0
        %2113 = vmatmul.mubr.f32.gmra.mrb[0].mxu0 %v1909
        %v2114 = vpop.f32.mrb[0].mxu0
        %v2115 = vadd.f32 0.0, %v2114
        %v2116 = vpop.f32.mrb[0].mxu0
        %2117 = vmatprep.mubr.f32.mxu0 0.0
        %2118 = vmatmul.mubr.f32.gmra.mrb[0].mxu0 %v1912
        %v2119 = vpop.f32.mrb[0].mxu0
        %v2120 = vadd.f32 0.0, %v2119
        %v2121 = vpop.f32.mrb[0].mxu0
        %2122 = vmatprep.mubr.f32.mxu0 0.0
        %2123 = vmatmul.mubr.f32.gmra.mrb[0].mxu0 %v1915
        %v2124 = vpop.f32.mrb[0].mxu0
        %v2125 = vadd.f32 0.0, %v2124
        %v2126 = vpop.f32.mrb[0].mxu0
        %2127 = vmatprep.mubr.f32.mxu0 0.0
        %2128 = vmatmul.mubr.f32.gmra.mrb[0].mxu0 %v1918
        %v2129 = vpop.f32.mrb[0].mxu0
        %v2130 = vadd.f32 0.0, %v2129
        %v2131 = vpop.f32.mrb[0].mxu0
        %2132 = vmatprep.mubr.f32.mxu0 0.0
        %2133 = vmatmul.mubr.f32.gmra.mrb[0].mxu0 %v1921
        %v2134 = vpop.f32.mrb[0].mxu0
        %v2135 = vadd.f32 0.0, %v2134
        %v2136 = vpop.f32.mrb[0].mxu0
        %2137 = vmatprep.mubr.f32.mxu0 0.0
        %2138 = vmatmul.mubr.f32.gmra.mrb[0].mxu0 %v1924
        %v2139 = vpop.f32.mrb[0].mxu0
        %v2140 = vadd.f32 0.0, %v2139
        %v2141 = vpop.f32.mrb[0].mxu0
        %2142 = vmatprep.mubr.f32.mxu0 0.0
        %2143 = vmatmul.mubr.f32.gmra.mrb[0].mxu0 %v1927
        %v2144 = vpop.f32.mrb[0].mxu0
        %v2145 = vadd.f32 0.0, %v2144
        %v2146 = vpop.f32.mrb[0].mxu0
        %2147 = vmatprep.mubr.f32.mxu0 0.0
        %2148 = vmatmul.mubr.f32.gmra.mrb[0].mxu0 %v1930
        %v2149 = vpop.f32.mrb[0].mxu0
        %v2150 = vadd.f32 0.0, %v2149
        %v2151 = vpop.f32.mrb[0].mxu0
        %2152 = vmatprep.mubr.f32.mxu0 0.0
        %2153 = vmatmul.mubr.f32.gmra.mrb[0].mxu0 %v1933
        %v2154 = vpop.f32.mrb[0].mxu0
        %v2155 = vadd.f32 0.0, %v2154
        %v2156 = vpop.f32.mrb[0].mxu0
        %2157 = vmatprep.mubr.f32.mxu0 0.0
        %2158 = vmatmul.mubr.f32.gmra.mrb[0].mxu0 %v1936
        %v2159 = vpop.f32.mrb[0].mxu0
        %v2160 = vadd.f32 0.0, %v2159
        %v2161 = vpop.f32.mrb[0].mxu0
        %2162 = vdwg.mxu0
        %v2164 = vlaneseq
        %v2165 = vshrl.u32 %v2164, 7
        %v2166 = vsub.s32 0, %v2165
        %v2167 = vrot.slane %v1828, %v2166
        %v2169 = vadd.f32 %v2167, %v2005
        %v2170 = vadd.f32 %v2167, %v2010
        %v2171 = vadd.f32 %v2167, %v2015
        %v2172 = vadd.f32 %v2167, %v2020
        %v2173 = vadd.f32 %v2167, %v2025
        %v2174 = vadd.f32 %v2167, %v2030
        %v2175 = vadd.f32 %v2167, %v2035
        %v2176 = vadd.f32 %v2167, %v2040
        %v2177 = vadd.f32 %v2167, %v2045
        %v2178 = vadd.f32 %v2167, %v2050
        %v2179 = vadd.f32 %v2167, %v2055
        %v2180 = vadd.f32 %v2167, %v2060
        %v2181 = vadd.f32 %v2167, %v2065
        %v2182 = vadd.f32 %v2167, %v2070
        %v2183 = vadd.f32 %v2167, %v2075
        %v2184 = vadd.f32 %v2167, %v2080
        %v2185 = vadd.f32 %v2167, %v2085
        %v2186 = vadd.f32 %v2167, %v2090
        %v2187 = vadd.f32 %v2167, %v2095
        %v2188 = vadd.f32 %v2167, %v2100
        %v2189 = vadd.f32 %v2167, %v2105
        %v2190 = vadd.f32 %v2167, %v2110
        %v2191 = vadd.f32 %v2167, %v2115
        %v2192 = vadd.f32 %v2167, %v2120
        %v2193 = vadd.f32 %v2167, %v2125
        %v2194 = vadd.f32 %v2167, %v2130
        %v2195 = vadd.f32 %v2167, %v2135
        %v2196 = vadd.f32 %v2167, %v2140
        %v2197 = vadd.f32 %v2167, %v2145
        %v2198 = vadd.f32 %v2167, %v2150
        %v2199 = vadd.f32 %v2167, %v2155
        %v2200 = vadd.f32 %v2167, %v2160
        %s2201 = scalar_lea.vmem %s3, 96
        %v2202 = vld [vmem:[%s2201] sm:$0xff]
        %v2203 = vld [vmem:[%s2201 + $0x8] sm:$0xff]
        %v2204 = vld [vmem:[%s2201 + $0x10] sm:$0xff]
        %v2205 = vld [vmem:[%s2201 + $0x18] sm:$0xff]
        %v2206 = vld [vmem:[%s2201 + $0x20] sm:$0xff]
        %v2207 = vld [vmem:[%s2201 + $0x28] sm:$0xff]
        %v2208 = vld [vmem:[%s2201 + $0x30] sm:$0xff]
        %v2209 = vld [vmem:[%s2201 + $0x38] sm:$0xff]
        %v2210 = vld [vmem:[%s2201 + $0x40] sm:$0xff]
        %v2211 = vld [vmem:[%s2201 + $0x48] sm:$0xff]
        %v2212 = vld [vmem:[%s2201 + $0x50] sm:$0xff]
        %v2213 = vld [vmem:[%s2201 + $0x58] sm:$0xff]
        %v2215 = vsel %vm1841, %v1824, 0
        %v2218 = vsel %vm1841, %v1825, 0
        %2220 = vmatprep.subr.mxu0 0.0
        %2221 = vmatpush1.msra.mxu0 %v2202
        %2222 = vmatprep.subr.mxu0 0.0
        %2223 = vmatpush1.msra.mxu0 %v2203
        %2224 = vmatprep.subr.mxu0 0.0
        %2225 = vmatpush1.msra.mxu0 %v2204
        %2226 = vmatprep.subr.mxu0 0.0
        %2227 = vmatpush1.msra.mxu0 %v2205
        %2228 = vmatprep.subr.mxu0 0.0
        %2229 = vmatpush1.msra.mxu0 %v2206
        %2230 = vmatprep.subr.mxu0 0.0
        %2231 = vmatpush1.msra.mxu0 %v2207
        %2232 = vmatprep.subr.mxu0 0.0
        %2233 = vmatpush1.msra.mxu0 %v2208
        %2234 = vmatprep.subr.mxu0 0.0
        %2235 = vmatpush1.msra.mxu0 %v2209
        %2236 = vmatprep.subr.mxu0 0.0
        %2237 = vmatpush1.msra.mxu0 %v2210
        %2238 = vmatprep.subr.mxu0 0.0
        %2239 = vmatpush1.msra.mxu0 %v2211
        %2240 = vmatprep.subr.mxu0 0.0
        %2241 = vmatpush1.msra.mxu0 %v2212
        %2242 = vmatprep.subr.mxu0 0.0
        %2243 = vmatpush1.msra.mxu0 %v2213
        %2244 = vmatprep.subr.mxu0 0.0
        %2245 = vmatpush1.msra.mxu0 0.0
        %2246 = vmatprep.subr.mxu0 0.0
        %2247 = vmatpush1.msra.mxu0 0.0
        %2248 = vmatprep.subr.mxu0 0.0
        %2249 = vmatpush1.msra.mxu0 0.0
        %2250 = vmatprep.subr.mxu0 0.0
        %2251 = vmatpush1.msra.mxu0 0.0
        %2252 = vmatprep.subr.mxu0 0.0
        %2253 = vmatpush1.msra.mxu0 0.0
        %2254 = vmatprep.subr.mxu0 0.0
        %2255 = vmatpush1.msra.mxu0 0.0
        %2256 = vmatprep.subr.mxu0 0.0
        %2257 = vmatpush1.msra.mxu0 0.0
        %2258 = vmatprep.subr.mxu0 0.0
        %2259 = vmatpush1.msra.mxu0 0.0
        %2260 = vmatprep.subr.mxu0 0.0
        %2261 = vmatpush1.msra.mxu0 0.0
        %2262 = vmatprep.subr.mxu0 0.0
        %2263 = vmatpush1.msra.mxu0 0.0
        %2264 = vmatprep.subr.mxu0 0.0
        %2265 = vmatpush1.msra.mxu0 0.0
        %2266 = vmatprep.subr.mxu0 0.0
        %2267 = vmatpush1.msra.mxu0 0.0
        %2268 = vmatprep.subr.mxu0 0.0
        %2269 = vmatpush1.msra.mxu0 0.0
        %2270 = vmatprep.subr.mxu0 0.0
        %2271 = vmatpush1.msra.mxu0 0.0
        %2272 = vmatprep.subr.mxu0 0.0
        %2273 = vmatpush1.msra.mxu0 0.0
        %2274 = vmatprep.subr.mxu0 0.0
        %2275 = vmatpush1.msra.mxu0 0.0
        %2276 = vmatprep.subr.mxu0 0.0
        %2277 = vmatpush1.msra.mxu0 0.0
        %2278 = vmatprep.subr.mxu0 0.0
        %2279 = vmatpush1.msra.mxu0 0.0
        %2280 = vmatprep.subr.mxu0 0.0
        %2281 = vmatpush1.msra.mxu0 0.0
        %2282 = vmatprep.subr.mxu0 0.0
        %2283 = vmatpush1.msra.mxu0 0.0
        %2284 = vmatprep.mubr.f32.mxu0 0.0
        %2285 = vmatmul.mubr.f32.gmra.mrb[0].mxu0 %v1849
        %v2286 = vpop.f32.mrb[0].mxu0
        %v2287 = vadd.f32 0.0, %v2286
        %v2288 = vpop.f32.mrb[0].mxu0
        %2289 = vmatprep.mubr.f32.mxu0 0.0
        %2290 = vmatmul.mubr.f32.gmra.mrb[0].mxu0 %v1852
        %v2291 = vpop.f32.mrb[0].mxu0
        %v2292 = vadd.f32 0.0, %v2291
        %v2293 = vpop.f32.mrb[0].mxu0
        %2294 = vmatprep.mubr.f32.mxu0 0.0
        %2295 = vmatmul.mubr.f32.gmra.mrb[0].mxu0 %v1855
        %v2296 = vpop.f32.mrb[0].mxu0
        %v2297 = vadd.f32 0.0, %v2296
        %v2298 = vpop.f32.mrb[0].mxu0
        %2299 = vmatprep.mubr.f32.mxu0 0.0
        %2300 = vmatmul.mubr.f32.gmra.mrb[0].mxu0 %v1858
        %v2301 = vpop.f32.mrb[0].mxu0
        %v2302 = vadd.f32 0.0, %v2301
        %v2303 = vpop.f32.mrb[0].mxu0
        %2304 = vmatprep.mubr.f32.mxu0 0.0
        %2305 = vmatmul.mubr.f32.gmra.mrb[0].mxu0 %v1861
        %v2306 = vpop.f32.mrb[0].mxu0
        %v2307 = vadd.f32 0.0, %v2306
        %v2308 = vpop.f32.mrb[0].mxu0
        %2309 = vmatprep.mubr.f32.mxu0 0.0
        %2310 = vmatmul.mubr.f32.gmra.mrb[0].mxu0 %v1864
        %v2311 = vpop.f32.mrb[0].mxu0
        %v2312 = vadd.f32 0.0, %v2311
        %v2313 = vpop.f32.mrb[0].mxu0
        %2314 = vmatprep.mubr.f32.mxu0 0.0
        %2315 = vmatmul.mubr.f32.gmra.mrb[0].mxu0 %v1867
        %v2316 = vpop.f32.mrb[0].mxu0
        %v2317 = vadd.f32 0.0, %v2316
        %v2318 = vpop.f32.mrb[0].mxu0
        %2319 = vmatprep.mubr.f32.mxu0 0.0
        %2320 = vmatmul.mubr.f32.gmra.mrb[0].mxu0 %v1870
        %v2321 = vpop.f32.mrb[0].mxu0
        %v2322 = vadd.f32 0.0, %v2321
        %v2323 = vpop.f32.mrb[0].mxu0
        %2324 = vmatprep.mubr.f32.mxu0 0.0
        %2325 = vmatmul.mubr.f32.gmra.mrb[0].mxu0 %v1873
        %v2326 = vpop.f32.mrb[0].mxu0
        %v2327 = vadd.f32 0.0, %v2326
        %v2328 = vpop.f32.mrb[0].mxu0
        %2329 = vmatprep.mubr.f32.mxu0 0.0
        %2330 = vmatmul.mubr.f32.gmra.mrb[0].mxu0 %v1876
        %v2331 = vpop.f32.mrb[0].mxu0
        %v2332 = vadd.f32 0.0, %v2331
        %v2333 = vpop.f32.mrb[0].mxu0
        %2334 = vmatprep.mubr.f32.mxu0 0.0
        %2335 = vmatmul.mubr.f32.gmra.mrb[0].mxu0 %v1879
        %v2336 = vpop.f32.mrb[0].mxu0
        %v2337 = vadd.f32 0.0, %v2336
        %v2338 = vpop.f32.mrb[0].mxu0
        %2339 = vmatprep.mubr.f32.mxu0 0.0
        %2340 = vmatmul.mubr.f32.gmra.mrb[0].mxu0 %v1882
        %v2341 = vpop.f32.mrb[0].mxu0
        %v2342 = vadd.f32 0.0, %v2341
        %v2343 = vpop.f32.mrb[0].mxu0
        %2344 = vmatprep.mubr.f32.mxu0 0.0
        %2345 = vmatmul.mubr.f32.gmra.mrb[0].mxu0 %v1885
        %v2346 = vpop.f32.mrb[0].mxu0
        %v2347 = vadd.f32 0.0, %v2346
        %v2348 = vpop.f32.mrb[0].mxu0
        %2349 = vmatprep.mubr.f32.mxu0 0.0
        %2350 = vmatmul.mubr.f32.gmra.mrb[0].mxu0 %v1888
        %v2351 = vpop.f32.mrb[0].mxu0
        %v2352 = vadd.f32 0.0, %v2351
        %v2353 = vpop.f32.mrb[0].mxu0
        %2354 = vmatprep.mubr.f32.mxu0 0.0
        %2355 = vmatmul.mubr.f32.gmra.mrb[0].mxu0 %v1891
        %v2356 = vpop.f32.mrb[0].mxu0
        %v2357 = vadd.f32 0.0, %v2356
        %v2358 = vpop.f32.mrb[0].mxu0
        %2359 = vmatprep.mubr.f32.mxu0 0.0
        %2360 = vmatmul.mubr.f32.gmra.mrb[0].mxu0 %v1894
        %v2361 = vpop.f32.mrb[0].mxu0
        %v2362 = vadd.f32 0.0, %v2361
        %v2363 = vpop.f32.mrb[0].mxu0
        %2364 = vmatprep.mubr.f32.mxu0 0.0
        %2365 = vmatmul.mubr.f32.gmra.mrb[0].mxu0 %v1897
        %v2366 = vpop.f32.mrb[0].mxu0
        %v2367 = vadd.f32 0.0, %v2366
        %v2368 = vpop.f32.mrb[0].mxu0
        %2369 = vmatprep.mubr.f32.mxu0 0.0
        %2370 = vmatmul.mubr.f32.gmra.mrb[0].mxu0 %v1900
        %v2371 = vpop.f32.mrb[0].mxu0
        %v2372 = vadd.f32 0.0, %v2371
        %v2373 = vpop.f32.mrb[0].mxu0
        %2374 = vmatprep.mubr.f32.mxu0 0.0
        %2375 = vmatmul.mubr.f32.gmra.mrb[0].mxu0 %v1903
        %v2376 = vpop.f32.mrb[0].mxu0
        %v2377 = vadd.f32 0.0, %v2376
        %v2378 = vpop.f32.mrb[0].mxu0
        %2379 = vmatprep.mubr.f32.mxu0 0.0
        %2380 = vmatmul.mubr.f32.gmra.mrb[0].mxu0 %v1906
        %v2381 = vpop.f32.mrb[0].mxu0
        %v2382 = vadd.f32 0.0, %v2381
        %v2383 = vpop.f32.mrb[0].mxu0
        %2384 = vmatprep.mubr.f32.mxu0 0.0
        %2385 = vmatmul.mubr.f32.gmra.mrb[0].mxu0 %v1909
        %v2386 = vpop.f32.mrb[0].mxu0
        %v2387 = vadd.f32 0.0, %v2386
        %v2388 = vpop.f32.mrb[0].mxu0
        %2389 = vmatprep.mubr.f32.mxu0 0.0
        %2390 = vmatmul.mubr.f32.gmra.mrb[0].mxu0 %v1912
        %v2391 = vpop.f32.mrb[0].mxu0
        %v2392 = vadd.f32 0.0, %v2391
        %v2393 = vpop.f32.mrb[0].mxu0
        %2394 = vmatprep.mubr.f32.mxu0 0.0
        %2395 = vmatmul.mubr.f32.gmra.mrb[0].mxu0 %v1915
        %v2396 = vpop.f32.mrb[0].mxu0
        %v2397 = vadd.f32 0.0, %v2396
        %v2398 = vpop.f32.mrb[0].mxu0
        %2399 = vmatprep.mubr.f32.mxu0 0.0
        %2400 = vmatmul.mubr.f32.gmra.mrb[0].mxu0 %v1918
        %v2401 = vpop.f32.mrb[0].mxu0
        %v2402 = vadd.f32 0.0, %v2401
        %v2403 = vpop.f32.mrb[0].mxu0
        %2404 = vmatprep.mubr.f32.mxu0 0.0
        %2405 = vmatmul.mubr.f32.gmra.mrb[0].mxu0 %v1921
        %v2406 = vpop.f32.mrb[0].mxu0
        %v2407 = vadd.f32 0.0, %v2406
        %v2408 = vpop.f32.mrb[0].mxu0
        %2409 = vmatprep.mubr.f32.mxu0 0.0
        %2410 = vmatmul.mubr.f32.gmra.mrb[0].mxu0 %v1924
        %v2411 = vpop.f32.mrb[0].mxu0
        %v2412 = vadd.f32 0.0, %v2411
        %v2413 = vpop.f32.mrb[0].mxu0
        %2414 = vmatprep.mubr.f32.mxu0 0.0
        %2415 = vmatmul.mubr.f32.gmra.mrb[0].mxu0 %v1927
        %v2416 = vpop.f32.mrb[0].mxu0
        %v2417 = vadd.f32 0.0, %v2416
        %v2418 = vpop.f32.mrb[0].mxu0
        %2419 = vmatprep.mubr.f32.mxu0 0.0
        %2420 = vmatmul.mubr.f32.gmra.mrb[0].mxu0 %v1930
        %v2421 = vpop.f32.mrb[0].mxu0
        %v2422 = vadd.f32 0.0, %v2421
        %v2423 = vpop.f32.mrb[0].mxu0
        %2424 = vmatprep.mubr.f32.mxu0 0.0
        %2425 = vmatmul.mubr.f32.gmra.mrb[0].mxu0 %v1933
        %v2426 = vpop.f32.mrb[0].mxu0
        %v2427 = vadd.f32 0.0, %v2426
        %v2428 = vpop.f32.mrb[0].mxu0
        %2429 = vmatprep.mubr.f32.mxu0 0.0
        %2430 = vmatmul.mubr.f32.gmra.mrb[0].mxu0 %v1936
        %v2431 = vpop.f32.mrb[0].mxu0
        %v2432 = vadd.f32 0.0, %v2431
        %v2433 = vpop.f32.mrb[0].mxu0
        %2434 = vmatprep.mubr.f32.mxu0 0.0
        %2435 = vmatmul.mubr.f32.gmra.mrb[0].mxu0 %v2215
        %v2436 = vpop.f32.mrb[0].mxu0
        %v2437 = vadd.f32 0.0, %v2436
        %v2438 = vpop.f32.mrb[0].mxu0
        %2439 = vmatprep.mubr.f32.mxu0 0.0
        %2440 = vmatmul.mubr.f32.gmra.mrb[0].mxu0 %v2218
        %v2441 = vpop.f32.mrb[0].mxu0
        %v2442 = vadd.f32 0.0, %v2441
        %v2443 = vpop.f32.mrb[0].mxu0
        %2444 = vdwg.mxu0
        %v2445 = vadd.f32 %v2169, %v2287
        %v2446 = vadd.f32 %v2170, %v2292
        %v2447 = vadd.f32 %v2171, %v2297
        %v2448 = vadd.f32 %v2172, %v2302
        %v2449 = vadd.f32 %v2173, %v2307
        %v2450 = vadd.f32 %v2174, %v2312
        %v2451 = vadd.f32 %v2175, %v2317
        %v2452 = vadd.f32 %v2176, %v2322
        %v2453 = vadd.f32 %v2177, %v2327
        %v2454 = vadd.f32 %v2178, %v2332
        %v2455 = vadd.f32 %v2179, %v2337
        %v2456 = vadd.f32 %v2180, %v2342
        %v2457 = vadd.f32 %v2181, %v2347
        %v2458 = vadd.f32 %v2182, %v2352
        %v2459 = vadd.f32 %v2183, %v2357
        %v2460 = vadd.f32 %v2184, %v2362
        %v2461 = vadd.f32 %v2185, %v2367
        %v2462 = vadd.f32 %v2186, %v2372
        %v2463 = vadd.f32 %v2187, %v2377
        %v2464 = vadd.f32 %v2188, %v2382
        %v2465 = vadd.f32 %v2189, %v2387
        %v2466 = vadd.f32 %v2190, %v2392
        %v2467 = vadd.f32 %v2191, %v2397
        %v2468 = vadd.f32 %v2192, %v2402
        %v2469 = vadd.f32 %v2193, %v2407
        %v2470 = vadd.f32 %v2194, %v2412
        %v2471 = vadd.f32 %v2195, %v2417
        %v2472 = vadd.f32 %v2196, %v2422
        %v2473 = vadd.f32 %v2197, %v2427
        %v2474 = vadd.f32 %v2198, %v2432
        %v2475 = vadd.f32 %v2199, %v2437
        %v2476 = vadd.f32 %v2200, %v2442
        %s2477 = scalar_lea.vmem %s3, 192
        %v2478 = vld [vmem:[%s2477] sm:$0xff]
        %v2479 = vld [vmem:[%s2477 + $0x8] sm:$0xff]
        %v2480 = vld [vmem:[%s2477 + $0x10] sm:$0xff]
        %v2481 = vld [vmem:[%s2477 + $0x18] sm:$0xff]
        %v2482 = vld [vmem:[%s2477 + $0x20] sm:$0xff]
        %v2483 = vld [vmem:[%s2477 + $0x28] sm:$0xff]
        %v2484 = vld [vmem:[%s2477 + $0x30] sm:$0xff]
        %v2485 = vld [vmem:[%s2477 + $0x38] sm:$0xff]
        %v2486 = vld [vmem:[%s2477 + $0x40] sm:$0xff]
        %v2487 = vld [vmem:[%s2477 + $0x48] sm:$0xff]
        %v2488 = vld [vmem:[%s2477 + $0x50] sm:$0xff]
        %v2489 = vld [vmem:[%s2477 + $0x58] sm:$0xff]
        %v2491 = vsel %vm1841, %v1826, 0
        %v2494 = vsel %vm1841, %v1827, 0
        %2496 = vmatprep.subr.mxu0 0.0
        %2497 = vmatpush1.msra.mxu0 %v2478
        %2498 = vmatprep.subr.mxu0 0.0
        %2499 = vmatpush1.msra.mxu0 %v2479
        %2500 = vmatprep.subr.mxu0 0.0
        %2501 = vmatpush1.msra.mxu0 %v2480
        %2502 = vmatprep.subr.mxu0 0.0
        %2503 = vmatpush1.msra.mxu0 %v2481
        %2504 = vmatprep.subr.mxu0 0.0
        %2505 = vmatpush1.msra.mxu0 %v2482
        %2506 = vmatprep.subr.mxu0 0.0
        %2507 = vmatpush1.msra.mxu0 %v2483
        %2508 = vmatprep.subr.mxu0 0.0
        %2509 = vmatpush1.msra.mxu0 %v2484
        %2510 = vmatprep.subr.mxu0 0.0
        %2511 = vmatpush1.msra.mxu0 %v2485
        %2512 = vmatprep.subr.mxu0 0.0
        %2513 = vmatpush1.msra.mxu0 %v2486
        %2514 = vmatprep.subr.mxu0 0.0
        %2515 = vmatpush1.msra.mxu0 %v2487
        %2516 = vmatprep.subr.mxu0 0.0
        %2517 = vmatpush1.msra.mxu0 %v2488
        %2518 = vmatprep.subr.mxu0 0.0
        %2519 = vmatpush1.msra.mxu0 %v2489
        %2520 = vmatprep.subr.mxu0 0.0
        %2521 = vmatpush1.msra.mxu0 0.0
        %2522 = vmatprep.subr.mxu0 0.0
        %2523 = vmatpush1.msra.mxu0 0.0
        %2524 = vmatprep.subr.mxu0 0.0
        %2525 = vmatpush1.msra.mxu0 0.0
        %2526 = vmatprep.subr.mxu0 0.0
        %2527 = vmatpush1.msra.mxu0 0.0
        %2528 = vmatprep.subr.mxu0 0.0
        %2529 = vmatpush1.msra.mxu0 0.0
        %2530 = vmatprep.subr.mxu0 0.0
        %2531 = vmatpush1.msra.mxu0 0.0
        %2532 = vmatprep.subr.mxu0 0.0
        %2533 = vmatpush1.msra.mxu0 0.0
        %2534 = vmatprep.subr.mxu0 0.0
        %2535 = vmatpush1.msra.mxu0 0.0
        %2536 = vmatprep.subr.mxu0 0.0
        %2537 = vmatpush1.msra.mxu0 0.0
        %2538 = vmatprep.subr.mxu0 0.0
        %2539 = vmatpush1.msra.mxu0 0.0
        %2540 = vmatprep.subr.mxu0 0.0
        %2541 = vmatpush1.msra.mxu0 0.0
        %2542 = vmatprep.subr.mxu0 0.0
        %2543 = vmatpush1.msra.mxu0 0.0
        %2544 = vmatprep.subr.mxu0 0.0
        %2545 = vmatpush1.msra.mxu0 0.0
        %2546 = vmatprep.subr.mxu0 0.0
        %2547 = vmatpush1.msra.mxu0 0.0
        %2548 = vmatprep.subr.mxu0 0.0
        %2549 = vmatpush1.msra.mxu0 0.0
        %2550 = vmatprep.subr.mxu0 0.0
        %2551 = vmatpush1.msra.mxu0 0.0
        %2552 = vmatprep.subr.mxu0 0.0
        %2553 = vmatpush1.msra.mxu0 0.0
        %2554 = vmatprep.subr.mxu0 0.0
        %2555 = vmatpush1.msra.mxu0 0.0
        %2556 = vmatprep.subr.mxu0 0.0
        %2557 = vmatpush1.msra.mxu0 0.0
        %2558 = vmatprep.subr.mxu0 0.0
        %2559 = vmatpush1.msra.mxu0 0.0
        %2560 = vmatprep.mubr.f32.mxu0 0.0
        %2561 = vmatmul.mubr.f32.gmra.mrb[0].mxu0 %v1855
        %v2562 = vpop.f32.mrb[0].mxu0
        %v2563 = vadd.f32 0.0, %v2562
        %v2564 = vpop.f32.mrb[0].mxu0
        %2565 = vmatprep.mubr.f32.mxu0 0.0
        %2566 = vmatmul.mubr.f32.gmra.mrb[0].mxu0 %v1858
        %v2567 = vpop.f32.mrb[0].mxu0
        %v2568 = vadd.f32 0.0, %v2567
        %v2569 = vpop.f32.mrb[0].mxu0
        %2570 = vmatprep.mubr.f32.mxu0 0.0
        %2571 = vmatmul.mubr.f32.gmra.mrb[0].mxu0 %v1861
        %v2572 = vpop.f32.mrb[0].mxu0
        %v2573 = vadd.f32 0.0, %v2572
        %v2574 = vpop.f32.mrb[0].mxu0
        %2575 = vmatprep.mubr.f32.mxu0 0.0
        %2576 = vmatmul.mubr.f32.gmra.mrb[0].mxu0 %v1864
        %v2577 = vpop.f32.mrb[0].mxu0
        %v2578 = vadd.f32 0.0, %v2577
        %v2579 = vpop.f32.mrb[0].mxu0
        %2580 = vmatprep.mubr.f32.mxu0 0.0
        %2581 = vmatmul.mubr.f32.gmra.mrb[0].mxu0 %v1867
        %v2582 = vpop.f32.mrb[0].mxu0
        %v2583 = vadd.f32 0.0, %v2582
        %v2584 = vpop.f32.mrb[0].mxu0
        %2585 = vmatprep.mubr.f32.mxu0 0.0
        %2586 = vmatmul.mubr.f32.gmra.mrb[0].mxu0 %v1870
        %v2587 = vpop.f32.mrb[0].mxu0
        %v2588 = vadd.f32 0.0, %v2587
        %v2589 = vpop.f32.mrb[0].mxu0
        %2590 = vmatprep.mubr.f32.mxu0 0.0
        %2591 = vmatmul.mubr.f32.gmra.mrb[0].mxu0 %v1873
        %v2592 = vpop.f32.mrb[0].mxu0
        %v2593 = vadd.f32 0.0, %v2592
        %v2594 = vpop.f32.mrb[0].mxu0
        %2595 = vmatprep.mubr.f32.mxu0 0.0
        %2596 = vmatmul.mubr.f32.gmra.mrb[0].mxu0 %v1876
        %v2597 = vpop.f32.mrb[0].mxu0
        %v2598 = vadd.f32 0.0, %v2597
        %v2599 = vpop.f32.mrb[0].mxu0
        %2600 = vmatprep.mubr.f32.mxu0 0.0
        %2601 = vmatmul.mubr.f32.gmra.mrb[0].mxu0 %v1879
        %v2602 = vpop.f32.mrb[0].mxu0
        %v2603 = vadd.f32 0.0, %v2602
        %v2604 = vpop.f32.mrb[0].mxu0
        %2605 = vmatprep.mubr.f32.mxu0 0.0
        %2606 = vmatmul.mubr.f32.gmra.mrb[0].mxu0 %v1882
        %v2607 = vpop.f32.mrb[0].mxu0
        %v2608 = vadd.f32 0.0, %v2607
        %v2609 = vpop.f32.mrb[0].mxu0
        %2610 = vmatprep.mubr.f32.mxu0 0.0
        %2611 = vmatmul.mubr.f32.gmra.mrb[0].mxu0 %v1885
        %v2612 = vpop.f32.mrb[0].mxu0
        %v2613 = vadd.f32 0.0, %v2612
        %v2614 = vpop.f32.mrb[0].mxu0
        %2615 = vmatprep.mubr.f32.mxu0 0.0
        %2616 = vmatmul.mubr.f32.gmra.mrb[0].mxu0 %v1888
        %v2617 = vpop.f32.mrb[0].mxu0
        %v2618 = vadd.f32 0.0, %v2617
        %v2619 = vpop.f32.mrb[0].mxu0
        %2620 = vmatprep.mubr.f32.mxu0 0.0
        %2621 = vmatmul.mubr.f32.gmra.mrb[0].mxu0 %v1891
        %v2622 = vpop.f32.mrb[0].mxu0
        %v2623 = vadd.f32 0.0, %v2622
        %v2624 = vpop.f32.mrb[0].mxu0
        %2625 = vmatprep.mubr.f32.mxu0 0.0
        %2626 = vmatmul.mubr.f32.gmra.mrb[0].mxu0 %v1894
        %v2627 = vpop.f32.mrb[0].mxu0
        %v2628 = vadd.f32 0.0, %v2627
        %v2629 = vpop.f32.mrb[0].mxu0
        %2630 = vmatprep.mubr.f32.mxu0 0.0
        %2631 = vmatmul.mubr.f32.gmra.mrb[0].mxu0 %v1897
        %v2632 = vpop.f32.mrb[0].mxu0
        %v2633 = vadd.f32 0.0, %v2632
        %v2634 = vpop.f32.mrb[0].mxu0
        %2635 = vmatprep.mubr.f32.mxu0 0.0
        %2636 = vmatmul.mubr.f32.gmra.mrb[0].mxu0 %v1900
        %v2637 = vpop.f32.mrb[0].mxu0
        %v2638 = vadd.f32 0.0, %v2637
        %v2639 = vpop.f32.mrb[0].mxu0
        %2640 = vmatprep.mubr.f32.mxu0 0.0
        %2641 = vmatmul.mubr.f32.gmra.mrb[0].mxu0 %v1903
        %v2642 = vpop.f32.mrb[0].mxu0
        %v2643 = vadd.f32 0.0, %v2642
        %v2644 = vpop.f32.mrb[0].mxu0
        %2645 = vmatprep.mubr.f32.mxu0 0.0
        %2646 = vmatmul.mubr.f32.gmra.mrb[0].mxu0 %v1906
        %v2647 = vpop.f32.mrb[0].mxu0
        %v2648 = vadd.f32 0.0, %v2647
        %v2649 = vpop.f32.mrb[0].mxu0
        %2650 = vmatprep.mubr.f32.mxu0 0.0
        %2651 = vmatmul.mubr.f32.gmra.mrb[0].mxu0 %v1909
        %v2652 = vpop.f32.mrb[0].mxu0
        %v2653 = vadd.f32 0.0, %v2652
        %v2654 = vpop.f32.mrb[0].mxu0
        %2655 = vmatprep.mubr.f32.mxu0 0.0
        %2656 = vmatmul.mubr.f32.gmra.mrb[0].mxu0 %v1912
        %v2657 = vpop.f32.mrb[0].mxu0
        %v2658 = vadd.f32 0.0, %v2657
        %v2659 = vpop.f32.mrb[0].mxu0
        %2660 = vmatprep.mubr.f32.mxu0 0.0
        %2661 = vmatmul.mubr.f32.gmra.mrb[0].mxu0 %v1915
        %v2662 = vpop.f32.mrb[0].mxu0
        %v2663 = vadd.f32 0.0, %v2662
        %v2664 = vpop.f32.mrb[0].mxu0
        %2665 = vmatprep.mubr.f32.mxu0 0.0
        %2666 = vmatmul.mubr.f32.gmra.mrb[0].mxu0 %v1918
        %v2667 = vpop.f32.mrb[0].mxu0
        %v2668 = vadd.f32 0.0, %v2667
        %v2669 = vpop.f32.mrb[0].mxu0
        %2670 = vmatprep.mubr.f32.mxu0 0.0
        %2671 = vmatmul.mubr.f32.gmra.mrb[0].mxu0 %v1921
        %v2672 = vpop.f32.mrb[0].mxu0
        %v2673 = vadd.f32 0.0, %v2672
        %v2674 = vpop.f32.mrb[0].mxu0
        %2675 = vmatprep.mubr.f32.mxu0 0.0
        %2676 = vmatmul.mubr.f32.gmra.mrb[0].mxu0 %v1924
        %v2677 = vpop.f32.mrb[0].mxu0
        %v2678 = vadd.f32 0.0, %v2677
        %v2679 = vpop.f32.mrb[0].mxu0
        %2680 = vmatprep.mubr.f32.mxu0 0.0
        %2681 = vmatmul.mubr.f32.gmra.mrb[0].mxu0 %v1927
        %v2682 = vpop.f32.mrb[0].mxu0
        %v2683 = vadd.f32 0.0, %v2682
        %v2684 = vpop.f32.mrb[0].mxu0
        %2685 = vmatprep.mubr.f32.mxu0 0.0
        %2686 = vmatmul.mubr.f32.gmra.mrb[0].mxu0 %v1930
        %v2687 = vpop.f32.mrb[0].mxu0
        %v2688 = vadd.f32 0.0, %v2687
        %v2689 = vpop.f32.mrb[0].mxu0
        %2690 = vmatprep.mubr.f32.mxu0 0.0
        %2691 = vmatmul.mubr.f32.gmra.mrb[0].mxu0 %v1933
        %v2692 = vpop.f32.mrb[0].mxu0
        %v2693 = vadd.f32 0.0, %v2692
        %v2694 = vpop.f32.mrb[0].mxu0
        %2695 = vmatprep.mubr.f32.mxu0 0.0
        %2696 = vmatmul.mubr.f32.gmra.mrb[0].mxu0 %v1936
        %v2697 = vpop.f32.mrb[0].mxu0
        %v2698 = vadd.f32 0.0, %v2697
        %v2699 = vpop.f32.mrb[0].mxu0
        %2700 = vmatprep.mubr.f32.mxu0 0.0
        %2701 = vmatmul.mubr.f32.gmra.mrb[0].mxu0 %v2215
        %v2702 = vpop.f32.mrb[0].mxu0
        %v2703 = vadd.f32 0.0, %v2702
        %v2704 = vpop.f32.mrb[0].mxu0
        %2705 = vmatprep.mubr.f32.mxu0 0.0
        %2706 = vmatmul.mubr.f32.gmra.mrb[0].mxu0 %v2218
        %v2707 = vpop.f32.mrb[0].mxu0
        %v2708 = vadd.f32 0.0, %v2707
        %v2709 = vpop.f32.mrb[0].mxu0
        %2710 = vmatprep.mubr.f32.mxu0 0.0
        %2711 = vmatmul.mubr.f32.gmra.mrb[0].mxu0 %v2491
        %v2712 = vpop.f32.mrb[0].mxu0
        %v2713 = vadd.f32 0.0, %v2712
        %v2714 = vpop.f32.mrb[0].mxu0
        %2715 = vmatprep.mubr.f32.mxu0 0.0
        %2716 = vmatmul.mubr.f32.gmra.mrb[0].mxu0 %v2494
        %v2717 = vpop.f32.mrb[0].mxu0
        %v2718 = vadd.f32 0.0, %v2717
        %v2719 = vpop.f32.mrb[0].mxu0
        %2720 = vdwg.mxu0
        %v2721 = vadd.f32 %v2445, %v2563
        %v2722 = vadd.f32 %v2446, %v2568
        %v2723 = vadd.f32 %v2447, %v2573
        %v2724 = vadd.f32 %v2448, %v2578
        %v2725 = vadd.f32 %v2449, %v2583
        %v2726 = vadd.f32 %v2450, %v2588
        %v2727 = vadd.f32 %v2451, %v2593
        %v2728 = vadd.f32 %v2452, %v2598
        %v2729 = vadd.f32 %v2453, %v2603
        %v2730 = vadd.f32 %v2454, %v2608
        %v2731 = vadd.f32 %v2455, %v2613
        %v2732 = vadd.f32 %v2456, %v2618
        %v2733 = vadd.f32 %v2457, %v2623
        %v2734 = vadd.f32 %v2458, %v2628
        %v2735 = vadd.f32 %v2459, %v2633
        %v2736 = vadd.f32 %v2460, %v2638
        %v2737 = vadd.f32 %v2461, %v2643
        %v2738 = vadd.f32 %v2462, %v2648
        %v2739 = vadd.f32 %v2463, %v2653
        %v2740 = vadd.f32 %v2464, %v2658
        %v2741 = vadd.f32 %v2465, %v2663
        %v2742 = vadd.f32 %v2466, %v2668
        %v2743 = vadd.f32 %v2467, %v2673
        %v2744 = vadd.f32 %v2468, %v2678
        %v2745 = vadd.f32 %v2469, %v2683
        %v2746 = vadd.f32 %v2470, %v2688
        %v2747 = vadd.f32 %v2471, %v2693
        %v2748 = vadd.f32 %v2472, %v2698
        %v2749 = vadd.f32 %v2473, %v2703
        %v2750 = vadd.f32 %v2474, %v2708
        %v2751 = vadd.f32 %v2475, %v2713
        %v2752 = vadd.f32 %v2476, %v2718
        %v2753 = vmax.f32 %v2721, 0.0
        %v2754 = vmax.f32 %v2722, 0.0
        %v2755 = vmax.f32 %v2723, 0.0
        %v2756 = vmax.f32 %v2724, 0.0
        %v2757 = vmax.f32 %v2725, 0.0
        %v2758 = vmax.f32 %v2726, 0.0
        %v2759 = vmax.f32 %v2727, 0.0
        %v2760 = vmax.f32 %v2728, 0.0
        %v2761 = vmax.f32 %v2729, 0.0
        %v2762 = vmax.f32 %v2730, 0.0
        %v2763 = vmax.f32 %v2731, 0.0
        %v2764 = vmax.f32 %v2732, 0.0
        %v2765 = vmax.f32 %v2733, 0.0
        %v2766 = vmax.f32 %v2734, 0.0
        %v2767 = vmax.f32 %v2735, 0.0
        %v2768 = vmax.f32 %v2736, 0.0
        %v2769 = vmax.f32 %v2737, 0.0
        %v2770 = vmax.f32 %v2738, 0.0
        %v2771 = vmax.f32 %v2739, 0.0
        %v2772 = vmax.f32 %v2740, 0.0
        %v2773 = vmax.f32 %v2741, 0.0
        %v2774 = vmax.f32 %v2742, 0.0
        %v2775 = vmax.f32 %v2743, 0.0
        %v2776 = vmax.f32 %v2744, 0.0
        %v2777 = vmax.f32 %v2745, 0.0
        %v2778 = vmax.f32 %v2746, 0.0
        %v2779 = vmax.f32 %v2747, 0.0
        %v2780 = vmax.f32 %v2748, 0.0
        %v2781 = vmax.f32 %v2749, 0.0
        %v2782 = vmax.f32 %v2750, 0.0
        %v2783 = vmax.f32 %v2751, 0.0
        %v2784 = vmax.f32 %v2752, 0.0
        %v2785 = vld [vmem:[%s5] sm:$0xff]
        %v2786 = vld [vmem:[%s5 + $0x8] sm:$0xff]
        %v2787 = vld [vmem:[%s5 + $0x10] sm:$0xff]
        %v2788 = vld [vmem:[%s5 + $0x18] sm:$0xff]
        %v2789 = vld [vmem:[%s6] sm:$0x1]
        %v2791 = vlaneseq
        %v2792 = vshrl.u32 %v2791, 7
        %v2793 = vsub.s32 0, %v2792
        %v2794 = vrot.slane %v2789, %v2793
        %v2797 = vsel %vm1754, %v2753, 0
        %v2800 = vsel %vm1754, %v2754, 0
        %v2803 = vsel %vm1754, %v2755, 0
        %v2806 = vsel %vm1754, %v2756, 0
        %v2809 = vsel %vm1754, %v2757, 0
        %v2812 = vsel %vm1754, %v2758, 0
        %v2815 = vsel %vm1754, %v2759, 0
        %v2818 = vsel %vm1754, %v2760, 0
        %v2821 = vsel %vm1754, %v2761, 0
        %v2824 = vsel %vm1754, %v2762, 0
        %v2827 = vsel %vm1754, %v2763, 0
        %v2830 = vsel %vm1754, %v2764, 0
        %v2833 = vsel %vm1754, %v2765, 0
        %v2836 = vsel %vm1754, %v2766, 0
        %v2839 = vsel %vm1754, %v2767, 0
        %v2842 = vsel %vm1754, %v2768, 0
        %v2845 = vsel %vm1754, %v2769, 0
        %v2848 = vsel %vm1754, %v2770, 0
        %v2851 = vsel %vm1754, %v2771, 0
        %v2854 = vsel %vm1754, %v2772, 0
        %v2857 = vsel %vm1754, %v2773, 0
        %v2860 = vsel %vm1754, %v2774, 0
        %v2863 = vsel %vm1754, %v2775, 0
        %v2866 = vsel %vm1754, %v2776, 0
        %v2869 = vsel %vm1754, %v2777, 0
        %v2872 = vsel %vm1754, %v2778, 0
        %v2875 = vsel %vm1754, %v2779, 0
        %v2878 = vsel %vm1754, %v2780, 0
        %v2881 = vsel %vm1754, %v2781, 0
        %v2884 = vsel %vm1754, %v2782, 0
        %v2887 = vsel %vm1754, %v2783, 0
        %v2890 = vsel %vm1754, %v2784, 0
        %2892 = vmatprep.subr.mxu0 0.0
        %2893 = vmatpush1.msra.mxu0 %v2785
        %2894 = vmatprep.subr.mxu0 0.0
        %2895 = vmatpush1.msra.mxu0 %v2786
        %2896 = vmatprep.subr.mxu0 0.0
        %2897 = vmatpush1.msra.mxu0 %v2787
        %2898 = vmatprep.subr.mxu0 0.0
        %2899 = vmatpush1.msra.mxu0 %v2788
        %2900 = vmatprep.subr.mxu0 0.0
        %2901 = vmatpush1.msra.mxu0 0.0
        %2902 = vmatprep.subr.mxu0 0.0
        %2903 = vmatpush1.msra.mxu0 0.0
        %2904 = vmatprep.subr.mxu0 0.0
        %2905 = vmatpush1.msra.mxu0 0.0
        %2906 = vmatprep.subr.mxu0 0.0
        %2907 = vmatpush1.msra.mxu0 0.0
        %2908 = vmatprep.subr.mxu0 0.0
        %2909 = vmatpush1.msra.mxu0 0.0
        %2910 = vmatprep.subr.mxu0 0.0
        %2911 = vmatpush1.msra.mxu0 0.0
        %2912 = vmatprep.subr.mxu0 0.0
        %2913 = vmatpush1.msra.mxu0 0.0
        %2914 = vmatprep.subr.mxu0 0.0
        %2915 = vmatpush1.msra.mxu0 0.0
        %2916 = vmatprep.subr.mxu0 0.0
        %2917 = vmatpush1.msra.mxu0 0.0
        %2918 = vmatprep.subr.mxu0 0.0
        %2919 = vmatpush1.msra.mxu0 0.0
        %2920 = vmatprep.subr.mxu0 0.0
        %2921 = vmatpush1.msra.mxu0 0.0
        %2922 = vmatprep.subr.mxu0 0.0
        %2923 = vmatpush1.msra.mxu0 0.0
        %2924 = vmatprep.subr.mxu0 0.0
        %2925 = vmatpush1.msra.mxu0 0.0
        %2926 = vmatprep.subr.mxu0 0.0
        %2927 = vmatpush1.msra.mxu0 0.0
        %2928 = vmatprep.subr.mxu0 0.0
        %2929 = vmatpush1.msra.mxu0 0.0
        %2930 = vmatprep.subr.mxu0 0.0
        %2931 = vmatpush1.msra.mxu0 0.0
        %2932 = vmatprep.subr.mxu0 0.0
        %2933 = vmatpush1.msra.mxu0 0.0
        %2934 = vmatprep.subr.mxu0 0.0
        %2935 = vmatpush1.msra.mxu0 0.0
        %2936 = vmatprep.subr.mxu0 0.0
        %2937 = vmatpush1.msra.mxu0 0.0
        %2938 = vmatprep.subr.mxu0 0.0
        %2939 = vmatpush1.msra.mxu0 0.0
        %2940 = vmatprep.subr.mxu0 0.0
        %2941 = vmatpush1.msra.mxu0 0.0
        %2942 = vmatprep.subr.mxu0 0.0
        %2943 = vmatpush1.msra.mxu0 0.0
        %2944 = vmatprep.subr.mxu0 0.0
        %2945 = vmatpush1.msra.mxu0 0.0
        %2946 = vmatprep.subr.mxu0 0.0
        %2947 = vmatpush1.msra.mxu0 0.0
        %2948 = vmatprep.subr.mxu0 0.0
        %2949 = vmatpush1.msra.mxu0 0.0
        %2950 = vmatprep.subr.mxu0 0.0
        %2951 = vmatpush1.msra.mxu0 0.0
        %2952 = vmatprep.subr.mxu0 0.0
        %2953 = vmatpush1.msra.mxu0 0.0
        %2954 = vmatprep.subr.mxu0 0.0
        %2955 = vmatpush1.msra.mxu0 0.0
        %2956 = vmatprep.mubr.f32.mxu0 0.0
        %2957 = vmatmul.mubr.f32.gmra.mrb[0].mxu0 %v2797
        %v2958 = vpop.f32.mrb[0].mxu0
        %v2959 = vadd.f32 %v2794, %v2958
        %v2960 = vpop.f32.mrb[0].mxu0
        %2961 = vmatprep.mubr.f32.mxu0 0.0
        %2962 = vmatmul.mubr.f32.gmra.mrb[0].mxu0 %v2800
        %v2963 = vpop.f32.mrb[0].mxu0
        %v2964 = vadd.f32 %v2794, %v2963
        %v2965 = vpop.f32.mrb[0].mxu0
        %2966 = vmatprep.mubr.f32.mxu0 0.0
        %2967 = vmatmul.mubr.f32.gmra.mrb[0].mxu0 %v2803
        %v2968 = vpop.f32.mrb[0].mxu0
        %v2969 = vadd.f32 %v2794, %v2968
        %v2970 = vpop.f32.mrb[0].mxu0
        %2971 = vmatprep.mubr.f32.mxu0 0.0
        %2972 = vmatmul.mubr.f32.gmra.mrb[0].mxu0 %v2806
        %v2973 = vpop.f32.mrb[0].mxu0
        %v2974 = vadd.f32 %v2794, %v2973
        %v2975 = vpop.f32.mrb[0].mxu0
        %2976 = vmatprep.mubr.f32.mxu0 0.0
        %2977 = vmatmul.mubr.f32.gmra.mrb[0].mxu0 %v2809
        %v2978 = vpop.f32.mrb[0].mxu0
        %v2979 = vadd.f32 %v2794, %v2978
        %v2980 = vpop.f32.mrb[0].mxu0
        %2981 = vmatprep.mubr.f32.mxu0 0.0
        %2982 = vmatmul.mubr.f32.gmra.mrb[0].mxu0 %v2812
        %v2983 = vpop.f32.mrb[0].mxu0
        %v2984 = vadd.f32 %v2794, %v2983
        %v2985 = vpop.f32.mrb[0].mxu0
        %2986 = vmatprep.mubr.f32.mxu0 0.0
        %2987 = vmatmul.mubr.f32.gmra.mrb[0].mxu0 %v2815
        %v2988 = vpop.f32.mrb[0].mxu0
        %v2989 = vadd.f32 %v2794, %v2988
        %v2990 = vpop.f32.mrb[0].mxu0
        %2991 = vmatprep.mubr.f32.mxu0 0.0
        %2992 = vmatmul.mubr.f32.gmra.mrb[0].mxu0 %v2818
        %v2993 = vpop.f32.mrb[0].mxu0
        %v2994 = vadd.f32 %v2794, %v2993
        %v2995 = vpop.f32.mrb[0].mxu0
        %2996 = vmatprep.mubr.f32.mxu0 0.0
        %2997 = vmatmul.mubr.f32.gmra.mrb[0].mxu0 %v2821
        %v2998 = vpop.f32.mrb[0].mxu0
        %v2999 = vadd.f32 %v2794, %v2998
        %v3000 = vpop.f32.mrb[0].mxu0
        %3001 = vmatprep.mubr.f32.mxu0 0.0
        %3002 = vmatmul.mubr.f32.gmra.mrb[0].mxu0 %v2824
        %v3003 = vpop.f32.mrb[0].mxu0
        %v3004 = vadd.f32 %v2794, %v3003
        %v3005 = vpop.f32.mrb[0].mxu0
        %3006 = vmatprep.mubr.f32.mxu0 0.0
        %3007 = vmatmul.mubr.f32.gmra.mrb[0].mxu0 %v2827
        %v3008 = vpop.f32.mrb[0].mxu0
        %v3009 = vadd.f32 %v2794, %v3008
        %v3010 = vpop.f32.mrb[0].mxu0
        %3011 = vmatprep.mubr.f32.mxu0 0.0
        %3012 = vmatmul.mubr.f32.gmra.mrb[0].mxu0 %v2830
        %v3013 = vpop.f32.mrb[0].mxu0
        %v3014 = vadd.f32 %v2794, %v3013
        %v3015 = vpop.f32.mrb[0].mxu0
        %3016 = vmatprep.mubr.f32.mxu0 0.0
        %3017 = vmatmul.mubr.f32.gmra.mrb[0].mxu0 %v2833
        %v3018 = vpop.f32.mrb[0].mxu0
        %v3019 = vadd.f32 %v2794, %v3018
        %v3020 = vpop.f32.mrb[0].mxu0
        %3021 = vmatprep.mubr.f32.mxu0 0.0
        %3022 = vmatmul.mubr.f32.gmra.mrb[0].mxu0 %v2836
        %v3023 = vpop.f32.mrb[0].mxu0
        %v3024 = vadd.f32 %v2794, %v3023
        %v3025 = vpop.f32.mrb[0].mxu0
        %3026 = vmatprep.mubr.f32.mxu0 0.0
        %3027 = vmatmul.mubr.f32.gmra.mrb[0].mxu0 %v2839
        %v3028 = vpop.f32.mrb[0].mxu0
        %v3029 = vadd.f32 %v2794, %v3028
        %v3030 = vpop.f32.mrb[0].mxu0
        %3031 = vmatprep.mubr.f32.mxu0 0.0
        %3032 = vmatmul.mubr.f32.gmra.mrb[0].mxu0 %v2842
        %v3033 = vpop.f32.mrb[0].mxu0
        %v3034 = vadd.f32 %v2794, %v3033
        %v3035 = vpop.f32.mrb[0].mxu0
        %3036 = vmatprep.mubr.f32.mxu0 0.0
        %3037 = vmatmul.mubr.f32.gmra.mrb[0].mxu0 %v2845
        %v3038 = vpop.f32.mrb[0].mxu0
        %v3039 = vadd.f32 %v2794, %v3038
        %v3040 = vpop.f32.mrb[0].mxu0
        %3041 = vmatprep.mubr.f32.mxu0 0.0
        %3042 = vmatmul.mubr.f32.gmra.mrb[0].mxu0 %v2848
        %v3043 = vpop.f32.mrb[0].mxu0
        %v3044 = vadd.f32 %v2794, %v3043
        %v3045 = vpop.f32.mrb[0].mxu0
        %3046 = vmatprep.mubr.f32.mxu0 0.0
        %3047 = vmatmul.mubr.f32.gmra.mrb[0].mxu0 %v2851
        %v3048 = vpop.f32.mrb[0].mxu0
        %v3049 = vadd.f32 %v2794, %v3048
        %v3050 = vpop.f32.mrb[0].mxu0
        %3051 = vmatprep.mubr.f32.mxu0 0.0
        %3052 = vmatmul.mubr.f32.gmra.mrb[0].mxu0 %v2854
        %v3053 = vpop.f32.mrb[0].mxu0
        %v3054 = vadd.f32 %v2794, %v3053
        %v3055 = vpop.f32.mrb[0].mxu0
        %3056 = vmatprep.mubr.f32.mxu0 0.0
        %3057 = vmatmul.mubr.f32.gmra.mrb[0].mxu0 %v2857
        %v3058 = vpop.f32.mrb[0].mxu0
        %v3059 = vadd.f32 %v2794, %v3058
        %v3060 = vpop.f32.mrb[0].mxu0
        %3061 = vmatprep.mubr.f32.mxu0 0.0
        %3062 = vmatmul.mubr.f32.gmra.mrb[0].mxu0 %v2860
        %v3063 = vpop.f32.mrb[0].mxu0
        %v3064 = vadd.f32 %v2794, %v3063
        %v3065 = vpop.f32.mrb[0].mxu0
        %3066 = vmatprep.mubr.f32.mxu0 0.0
        %3067 = vmatmul.mubr.f32.gmra.mrb[0].mxu0 %v2863
        %v3068 = vpop.f32.mrb[0].mxu0
        %v3069 = vadd.f32 %v2794, %v3068
        %v3070 = vpop.f32.mrb[0].mxu0
        %3071 = vmatprep.mubr.f32.mxu0 0.0
        %3072 = vmatmul.mubr.f32.gmra.mrb[0].mxu0 %v2866
        %v3073 = vpop.f32.mrb[0].mxu0
        %v3074 = vadd.f32 %v2794, %v3073
        %v3075 = vpop.f32.mrb[0].mxu0
        %3076 = vmatprep.mubr.f32.mxu0 0.0
        %3077 = vmatmul.mubr.f32.gmra.mrb[0].mxu0 %v2869
        %v3078 = vpop.f32.mrb[0].mxu0
        %v3079 = vadd.f32 %v2794, %v3078
        %v3080 = vpop.f32.mrb[0].mxu0
        %3081 = vmatprep.mubr.f32.mxu0 0.0
        %3082 = vmatmul.mubr.f32.gmra.mrb[0].mxu0 %v2872
        %v3083 = vpop.f32.mrb[0].mxu0
        %v3084 = vadd.f32 %v2794, %v3083
        %v3085 = vpop.f32.mrb[0].mxu0
        %3086 = vmatprep.mubr.f32.mxu0 0.0
        %3087 = vmatmul.mubr.f32.gmra.mrb[0].mxu0 %v2875
        %v3088 = vpop.f32.mrb[0].mxu0
        %v3089 = vadd.f32 %v2794, %v3088
        %v3090 = vpop.f32.mrb[0].mxu0
        %3091 = vmatprep.mubr.f32.mxu0 0.0
        %3092 = vmatmul.mubr.f32.gmra.mrb[0].mxu0 %v2878
        %v3093 = vpop.f32.mrb[0].mxu0
        %v3094 = vadd.f32 %v2794, %v3093
        %v3095 = vpop.f32.mrb[0].mxu0
        %3096 = vmatprep.mubr.f32.mxu0 0.0
        %3097 = vmatmul.mubr.f32.gmra.mrb[0].mxu0 %v2881
        %v3098 = vpop.f32.mrb[0].mxu0
        %v3099 = vadd.f32 %v2794, %v3098
        %v3100 = vpop.f32.mrb[0].mxu0
        %3101 = vmatprep.mubr.f32.mxu0 0.0
        %3102 = vmatmul.mubr.f32.gmra.mrb[0].mxu0 %v2884
        %v3103 = vpop.f32.mrb[0].mxu0
        %v3104 = vadd.f32 %v2794, %v3103
        %v3105 = vpop.f32.mrb[0].mxu0
        %3106 = vmatprep.mubr.f32.mxu0 0.0
        %3107 = vmatmul.mubr.f32.gmra.mrb[0].mxu0 %v2887
        %v3108 = vpop.f32.mrb[0].mxu0
        %v3109 = vadd.f32 %v2794, %v3108
        %v3110 = vpop.f32.mrb[0].mxu0
        %3111 = vmatprep.mubr.f32.mxu0 0.0
        %3112 = vmatmul.mubr.f32.gmra.mrb[0].mxu0 %v2890
        %v3113 = vpop.f32.mrb[0].mxu0
        %v3114 = vadd.f32 %v2794, %v3113
        %v3115 = vpop.f32.mrb[0].mxu0
        %3116 = vdwg.mxu0
        %v3117 = vadd.f32 %v2959, %v277
        %v3118 = vadd.f32 %v2964, %v278
        %v3119 = vadd.f32 %v2969, %v279
        %v3120 = vadd.f32 %v2974, %v280
        %v3121 = vadd.f32 %v2979, %v281
        %v3122 = vadd.f32 %v2984, %v282
        %v3123 = vadd.f32 %v2989, %v283
        %v3124 = vadd.f32 %v2994, %v284
        %v3125 = vadd.f32 %v2999, %v285
        %v3126 = vadd.f32 %v3004, %v286
        %v3127 = vadd.f32 %v3009, %v287
        %v3128 = vadd.f32 %v3014, %v288
        %v3129 = vadd.f32 %v3019, %v289
        %v3130 = vadd.f32 %v3024, %v290
        %v3131 = vadd.f32 %v3029, %v291
        %v3132 = vadd.f32 %v3034, %v292
        %v3133 = vadd.f32 %v3039, %v293
        %v3134 = vadd.f32 %v3044, %v294
        %v3135 = vadd.f32 %v3049, %v295
        %v3136 = vadd.f32 %v3054, %v296
        %v3137 = vadd.f32 %v3059, %v297
        %v3138 = vadd.f32 %v3064, %v298
        %v3139 = vadd.f32 %v3069, %v299
        %v3140 = vadd.f32 %v3074, %v300
        %v3141 = vadd.f32 %v3079, %v301
        %v3142 = vadd.f32 %v3084, %v302
        %v3143 = vadd.f32 %v3089, %v303
        %v3144 = vadd.f32 %v3094, %v304
        %v3145 = vadd.f32 %v3099, %v305
        %v3146 = vadd.f32 %v3104, %v306
        %v3147 = vadd.f32 %v3109, %v307
        %v3148 = vadd.f32 %v3114, %v308
        %v3149 = vmax.f32 %v3117, 0.0
        %v3150 = vmax.f32 %v3118, 0.0
        %v3151 = vmax.f32 %v3119, 0.0
        %v3152 = vmax.f32 %v3120, 0.0
        %v3153 = vmax.f32 %v3121, 0.0
        %v3154 = vmax.f32 %v3122, 0.0
        %v3155 = vmax.f32 %v3123, 0.0
        %v3156 = vmax.f32 %v3124, 0.0
        %v3157 = vmax.f32 %v3125, 0.0
        %v3158 = vmax.f32 %v3126, 0.0
        %v3159 = vmax.f32 %v3127, 0.0
        %v3160 = vmax.f32 %v3128, 0.0
        %v3161 = vmax.f32 %v3129, 0.0
        %v3162 = vmax.f32 %v3130, 0.0
        %v3163 = vmax.f32 %v3131, 0.0
        %v3164 = vmax.f32 %v3132, 0.0
        %v3165 = vmax.f32 %v3133, 0.0
        %v3166 = vmax.f32 %v3134, 0.0
        %v3167 = vmax.f32 %v3135, 0.0
        %v3168 = vmax.f32 %v3136, 0.0
        %v3169 = vmax.f32 %v3137, 0.0
        %v3170 = vmax.f32 %v3138, 0.0
        %v3171 = vmax.f32 %v3139, 0.0
        %v3172 = vmax.f32 %v3140, 0.0
        %v3173 = vmax.f32 %v3141, 0.0
        %v3174 = vmax.f32 %v3142, 0.0
        %v3175 = vmax.f32 %v3143, 0.0
        %v3176 = vmax.f32 %v3144, 0.0
        %v3177 = vmax.f32 %v3145, 0.0
        %v3178 = vmax.f32 %v3146, 0.0
        %v3179 = vmax.f32 %v3147, 0.0
        %v3180 = vmax.f32 %v3148, 0.0
        %3181 = vst [vmem:[%s271] sm:$0xff] %v3149
        %3182 = vst [vmem:[%s271 + $0x8] sm:$0xff] %v3150
        %3183 = vst [vmem:[%s271 + $0x10] sm:$0xff] %v3151
        %3184 = vst [vmem:[%s271 + $0x18] sm:$0xff] %v3152
        %3185 = vst [vmem:[%s271 + $0x20] sm:$0xff] %v3153
        %3186 = vst [vmem:[%s271 + $0x28] sm:$0xff] %v3154
        %3187 = vst [vmem:[%s271 + $0x30] sm:$0xff] %v3155
        %3188 = vst [vmem:[%s271 + $0x38] sm:$0xff] %v3156
        %3189 = vst [vmem:[%s271 + $0x40] sm:$0xff] %v3157
        %3190 = vst [vmem:[%s271 + $0x48] sm:$0xff] %v3158
        %3191 = vst [vmem:[%s271 + $0x50] sm:$0xff] %v3159
        %3192 = vst [vmem:[%s271 + $0x58] sm:$0xff] %v3160
        %3193 = vst [vmem:[%s271 + $0x60] sm:$0xff] %v3161
        %3194 = vst [vmem:[%s271 + $0x68] sm:$0xff] %v3162
        %3195 = vst [vmem:[%s271 + $0x70] sm:$0xff] %v3163
        %3196 = vst [vmem:[%s271 + $0x78] sm:$0xff] %v3164
        %3197 = vst [vmem:[%s271 + $0x80] sm:$0xff] %v3165
        %3198 = vst [vmem:[%s271 + $0x88] sm:$0xff] %v3166
        %3199 = vst [vmem:[%s271 + $0x90] sm:$0xff] %v3167
        %3200 = vst [vmem:[%s271 + $0x98] sm:$0xff] %v3168
        %3201 = vst [vmem:[%s271 + $0xa0] sm:$0xff] %v3169
        %3202 = vst [vmem:[%s271 + $0xa8] sm:$0xff] %v3170
        %3203 = vst [vmem:[%s271 + $0xb0] sm:$0xff] %v3171
        %3204 = vst [vmem:[%s271 + $0xb8] sm:$0xff] %v3172
        %3205 = vst [vmem:[%s271 + $0xc0] sm:$0xff] %v3173
        %3206 = vst [vmem:[%s271 + $0xc8] sm:$0xff] %v3174
        %3207 = vst [vmem:[%s271 + $0xd0] sm:$0xff] %v3175
        %3208 = vst [vmem:[%s271 + $0xd8] sm:$0xff] %v3176
        %3209 = vst [vmem:[%s271 + $0xe0] sm:$0xff] %v3177
        %3210 = vst [vmem:[%s271 + $0xe8] sm:$0xff] %v3178
        %3211 = vst [vmem:[%s271 + $0xf0] sm:$0xff] %v3179
        %3212 = vst [vmem:[%s271 + $0xf8] sm:$0xff] %v3180
        %s3213 = sand.u32 %s181, 1
        %s3214 = scalar_lea.sflag [#allocation3], %s3213
        %s3215 = sand.u32 %s181, 1
        %s3216 = smul.addr %s3215, 256
        %s3217 = scalar_lea.vmem [#allocation2], %s3216
        // Predicated region
        $region49: #{bottleneck_forward.1} parent=47 // pred_check
          %p3218 = pneg %p191
        $region50: #{bottleneck_forward.1} parent=47 // pred_check_branch
          %3220 = sbr.rel (%p3218) target = $region52
        $region51: #{bottleneck_forward.1} parent=47 // pred_region
          %s3222 = ssub.s32 4096, 4096
          %3223 = vsyncadd %s3214, %s3222
          %s3224 = smul.addr %s21, 32
          %s3225 = smul.addr %s3224, 128
          %s3226 = scalar_lea.hbm %s7, %s3225
          %s3227 = sshll.u32 %s3217, 4
          %s3228 = int_to_ptr.vmem [resolvable:$true] %s3227
          %3233 = dma.vmem_to_hbm [thread:$0]  %s3228, 4096, %s3226, %s3214, 128, 128, 8
        $region52: #{bottleneck_forward.1} parent=47 // pred_fallthru
          _
      $region48: #{bottleneck_forward.1} parent=5 // pred_fallthru
        _
      %p3234 = scmp.le.s32.totalorder 2, %s16
      // Predicated region
      $region53: #{bottleneck_forward.1} parent=5 // pred_check
        %p3235 = pneg %p3234
      $region54: #{bottleneck_forward.1} parent=5 // pred_check_branch
        %3237 = sbr.rel (%p3235) target = $region56
      $region55: #{bottleneck_forward.1} parent=5 // pred_region
        %s3238 = ssub.s32 %s16, 2
        // Predicated region
        $region57: #{bottleneck_forward.1} parent=55 // pred_check
          %p3239 = pneg %p197
        $region58: #{bottleneck_forward.1} parent=55 // pred_check_branch
          %3241 = sbr.rel (%p3239) target = $region60
        $region59: #{bottleneck_forward.1} parent=55 // pred_region
          %s3242 = sand.u32 %s182, 1
          %s3243 = scalar_lea.sflag [#allocation3], %s3242
          %s3244 = sand.u32 %s182, 1
          %s3245 = smul.addr %s3244, 256
          %s3246 = scalar_lea.vmem [#allocation2], %s3245
          %3247 = dma.done %s3243, 4096
        $region60: #{bottleneck_forward.1} parent=55 // pred_fallthru
          _
      $region56: #{bottleneck_forward.1} parent=5 // pred_fallthru
        _
    $region6: #{bottleneck_forward.1} parent=1 // loop_footer
      %s20 = sadd.s32 1, %s16
    $region7: #{bottleneck_forward.1} parent=1 // loop_footer_branch
      %15 = sbr.rel target = $region3
    $region8: #{bottleneck_forward.1} parent=1 // loop_exit
      _
    %3248 = vsyncpa [#allocation3], 1
    %s3249 = scalar_lea.sflag [#allocation3], 1
    %3250 = vsyncpa %s3249, 1

</llo_original>
